<compile_context>
chip_gen: v5e
topology: v5e:2x2
jax: 0.10.0
libtpu: 0.0.40
codegen_flags: <defaults>
</compile_context>

<pallas_src>
import jax
import jax.numpy as jnp
import numpy as np
from jax.experimental import pallas as pl
from jax.experimental.pallas import tpu as pltpu

# Column offset of the conv2 "interior" region inside the halo scratch.
# Multiple of 8 so the interior store is sublane-tile aligned.
_COL0 = 8


# ------------------------------ fused kernel -------------------------------

def _bottleneck_kernel(x_ref, w1_ref, b1_ref, w2_ref, b2_ref, w3_ref, b3_ref,
                       o_ref, h1_ref):
    """Fully fused Bottleneck block for one NHWC image.

    x_ref : (H, W, Cin)      bf16  input image (also the residual identity)
    w1_ref: (Cin, P)         bf16  conv1 1x1 weight, bn1 scale folded in
    b1_ref: (1, P)           f32   bn1 shift
    w2_ref: (9, P, P)        bf16  conv2 3x3 taps (t = ky*3 + kx), bn2 folded
    b2_ref: (1, P)           f32   bn2 shift
    w3_ref: (P, 4P)          bf16  conv3 1x1 weight, bn3 scale folded in
    b3_ref: (1, 4P)          f32   bn3 shift
    o_ref : (H, W, 4P)       f32   output
    h1_ref: (H+2, W+16, P)   f32   VMEM scratch: stage-1 activation + zero halo
    """
    H, W, Cin = x_ref.shape
    P = w1_ref.shape[1]
    C4 = w3_ref.shape[1]

    x = x_ref[...]                              # (H, W, Cin) bf16, reused below
    x2d = x.reshape(H * W, Cin)

    # ---- stage 1: conv1x1 (+ folded bn1) + relu1 (stays in VMEM) ----
    y1 = jnp.dot(x2d, w1_ref[...], preferred_element_type=jnp.float32)
    y1 = jnp.maximum(y1 + b1_ref[...], 0.0)     # (H*W, P) f32

    # Zero the halo ring once (it is never overwritten afterwards).
    @pl.when(pl.program_id(0) == 0)
    def _zero_halo():
        h1_ref[...] = jnp.zeros_like(h1_ref)

    # Interior lives at rows [1, H+1), cols [_COL0, _COL0 + W)  (aligned store).
    h1_ref[pl.ds(1, H), pl.ds(_COL0, W), :] = y1.reshape(H, W, P)

    # ---- stage 2: conv3x3 (stride 1, pad 1, + folded bn2) + relu2 ----
    # 9 shifted-tap matmuls over the halo'd VMEM scratch; no im2col in HBM.
    acc = jnp.zeros((H * W, P), jnp.float32)
    for t in range(9):
        ky, kx = t // 3, t % 3
        tap = h1_ref[pl.ds(ky, H), pl.ds(_COL0 - 1 + kx, W), :]
        tap = tap.reshape(H * W, P).astype(jnp.bfloat16)
        acc = acc + jnp.dot(tap, w2_ref[t], preferred_element_type=jnp.float32)
    y2 = jnp.maximum(acc + b2_ref[...], 0.0).astype(jnp.bfloat16)

    # ---- stage 3: conv1x1 (+ folded bn3) + residual add + relu3 ----
    y3 = jnp.dot(y2, w3_ref[...], preferred_element_type=jnp.float32)
    y3 = y3 + b3_ref[...] + x2d.astype(jnp.float32)       # identity = x
    o_ref[...] = jnp.maximum(y3, 0.0).reshape(H, W, C4).astype(o_ref.dtype)


# ------------------------------- wrapper ------------------------------------

def bottleneck_forward(x_nchw, params):
    N, Cin, H, W = x_nchw.shape
    P = params["w1"].shape[1]
    C4 = params["w3"].shape[1]
    assert Cin == C4, "downsample=None requires inplanes == planes * expansion"

    x = jnp.transpose(x_nchw, (0, 2, 3, 1)).astype(jnp.bfloat16)   # NHWC, bf16

    out = pl.pallas_call(
        _bottleneck_kernel,
        out_shape=jax.ShapeDtypeStruct((N, H, W, C4), jnp.float32),
        grid_spec=pltpu.PrefetchScalarGridSpec(
            num_scalar_prefetch=0,
            grid=(N,),                                  # one image per grid step
            in_specs=[
                pl.BlockSpec((None, H, W, Cin), lambda n: (n, 0, 0, 0)),
                pl.BlockSpec((Cin, P), lambda n: (0, 0)),
                pl.BlockSpec((1, P), lambda n: (0, 0)),
                pl.BlockSpec((9, P, P), lambda n: (0, 0, 0)),
                pl.BlockSpec((1, P), lambda n: (0, 0)),
                pl.BlockSpec((P, C4), lambda n: (0, 0)),
                pl.BlockSpec((1, C4), lambda n: (0, 0)),
            ],
            out_specs=pl.BlockSpec((None, H, W, C4), lambda n: (n, 0, 0, 0)),
            scratch_shapes=[
                pltpu.VMEM((H + 2, W + 2 * _COL0, P), jnp.float32),
            ],
        ),
        compiler_params=pltpu.CompilerParams(
            dimension_semantics=("parallel",),
            vmem_limit_bytes=32 * 1024 * 1024,
        ),
    )(x, params["w1"], params["b1"], params["w2"], params["b2"],
      params["w3"], params["b3"])

    return jnp.transpose(out, (0, 3, 1, 2))             # back to NCHW, f32


# ------------------------------- parameters ---------------------------------

def _fold_bn(gamma, beta, mean, var, eps=1e-5):
    scale = gamma / jnp.sqrt(var + eps)
    shift = beta - mean * scale
    return scale, shift


def init_params(key, inplanes, planes):
    exp = 4
    ks = jax.random.split(key, 15)
    # Conv weights generated directly in matmul/HWIO layout
    # (torch layouts: w1 (planes,inplanes,1,1); w2 (planes,planes,3,3); w3 (4p,planes,1,1))
    w1 = 0.1 * jax.random.normal(ks[0], (inplanes, planes), jnp.float32)
    w2_hwio = 0.1 * jax.random.normal(ks[1], (3, 3, planes, planes), jnp.float32)
    w3 = 0.1 * jax.random.normal(ks[2], (planes, planes * exp), jnp.float32)

    def bn(kk, c):
        g = 0.5 + jax.random.uniform(kk[0], (c,), jnp.float32)
        b = 0.1 * jax.random.normal(kk[1], (c,), jnp.float32)
        m = 0.1 * jax.random.normal(kk[2], (c,), jnp.float32)
        v = 0.5 + jax.random.uniform(kk[3], (c,), jnp.float32)
        return _fold_bn(g, b, m, v)

    s1, sh1 = bn(ks[3:7], planes)
    s2, sh2 = bn(ks[7:11], planes)
    s3, sh3 = bn(ks[11:15], planes * exp)

    # Fold BN scale into the conv weights (per output channel); cast to bf16.
    w1f = (w1 * s1[None, :]).astype(jnp.bfloat16)
    w2f_hwio = (w2_hwio * s2[None, None, None, :]).astype(jnp.bfloat16)
    w3f = (w3 * s3[None, :]).astype(jnp.bfloat16)

    return {
        "w1": w1f,                                      # (Cin, P)     bf16
        "w2": w2f_hwio.reshape(9, planes, planes),      # (9, P, P)    bf16
        "w2_hwio": w2f_hwio,                            # (3,3,P,P)    bf16 (reference)
        "w3": w3f,                                      # (P, 4P)      bf16
        "b1": sh1.reshape(1, -1).astype(jnp.float32),
        "b2": sh2.reshape(1, -1).astype(jnp.float32),
        "b3": sh3.reshape(1, -1).astype(jnp.float32),
    }


# --------------------------- pure-JAX reference ------------------------------

def bottleneck_reference(x_nchw, params):
    hi = jax.lax.Precision.HIGHEST
    x = jnp.transpose(x_nchw, (0, 2, 3, 1)).astype(jnp.bfloat16).astype(jnp.float32)

    o = jnp.einsum("nhwc,cp->nhwp", x, params["w1"].astype(jnp.float32),
                   precision=hi) + params["b1"][0]
    o = jnp.maximum(o, 0.0)
    o = o.astype(jnp.bfloat16).astype(jnp.float32)

    o = jax.lax.conv_general_dilated(
        o, params["w2_hwio"].astype(jnp.float32), (1, 1), "SAME",
        dimension_numbers=("NHWC", "HWIO", "NHWC"), precision=hi)
    o = jnp.maximum(o + params["b2"][0], 0.0)
    o = o.astype(jnp.bfloat16).astype(jnp.float32)

    o = jnp.einsum("nhwp,pc->nhwc", o, params["w3"].astype(jnp.float32),
                   precision=hi) + params["b3"][0]
    o = jnp.maximum(o + x, 0.0)
    return jnp.transpose(o, (0, 3, 1, 2))


# ---------------------------------- main -------------------------------------

if __name__ == "__main__":
    key = jax.random.PRNGKey(0)
    kx, kp = jax.random.split(key)

    N, planes, H, W = 2, 32, 16, 16
    inplanes = planes * 4          # required when downsample is None
    x = jax.random.normal(kx, (N, inplanes, H, W), jnp.float32)   # NCHW, like PyTorch
    params = init_params(kp, inplanes, planes)

    out = jax.block_until_ready(bottleneck_forward(x, params))
    ref = jax.block_until_ready(bottleneck_reference(x, params))

    assert out.shape == (N, planes * 4, H, W)
    np.testing.assert_allclose(np.asarray(out), np.asarray(ref), rtol=2e-3, atol=2e-3)

    print("KERNEL_OK")
</pallas_src>

<mosaic_0001>
module attributes {stable_mosaic.version = 11 : i64} {
  func.func @_bottleneck_kernel(%arg0: i32, %arg1: memref<1x16x16x128xbf16, #tpu.memory_space<vmem>>, %arg2: memref<128x32xbf16, #tpu.memory_space<vmem>>, %arg3: memref<1x32xf32, #tpu.memory_space<vmem>>, %arg4: memref<9x32x32xbf16, #tpu.memory_space<vmem>>, %arg5: memref<1x32xf32, #tpu.memory_space<vmem>>, %arg6: memref<32x128xbf16, #tpu.memory_space<vmem>>, %arg7: memref<1x128xf32, #tpu.memory_space<vmem>>, %arg8: memref<1x16x16x128xf32, #tpu.memory_space<vmem>>, %arg9: memref<18x32x32xf32, #tpu.memory_space<vmem>>) attributes {dimension_semantics = [#tpu.dimension_semantics<parallel>], iteration_bounds = array<i64: 2>, scalar_prefetch = 0 : i64, scratch_operands = 1 : i64, tpu.core_type = #tpu.core_type<tc>, window_params = [{transform_indices = @transform_0, window_bounds = array<i64: 1, 16, 16, 128>}, {pipeline_mode = #tpu.pipeline_mode<synchronous>, transform_indices = @transform_1, window_bounds = array<i64: 128, 32>}, {pipeline_mode = #tpu.pipeline_mode<synchronous>, transform_indices = @transform_2, window_bounds = array<i64: 1, 32>}, {pipeline_mode = #tpu.pipeline_mode<synchronous>, transform_indices = @transform_3, window_bounds = array<i64: 9, 32, 32>}, {pipeline_mode = #tpu.pipeline_mode<synchronous>, transform_indices = @transform_4, window_bounds = array<i64: 1, 32>}, {pipeline_mode = #tpu.pipeline_mode<synchronous>, transform_indices = @transform_5, window_bounds = array<i64: 32, 128>}, {pipeline_mode = #tpu.pipeline_mode<synchronous>, transform_indices = @transform_6, window_bounds = array<i64: 1, 128>}, {transform_indices = @transform_7, window_bounds = array<i64: 1, 16, 16, 128>}]} {
    %c0 = arith.constant 0 : index
    %c0_0 = arith.constant 0 : index
    %c0_1 = arith.constant 0 : index
    %c0_2 = arith.constant 0 : index
    %0 = vector.load %arg1[%c0, %c0_0, %c0_1, %c0_2] : memref<1x16x16x128xbf16, #tpu.memory_space<vmem>>, vector<1x16x16x128xbf16>
    %1 = vector.shape_cast %0 : vector<1x16x16x128xbf16> to vector<16x16x128xbf16>
    %2 = vector.shape_cast %1 : vector<16x16x128xbf16> to vector<256x128xbf16>
    %c0_3 = arith.constant 0 : index
    %c0_4 = arith.constant 0 : index
    %3 = vector.load %arg2[%c0_3, %c0_4] : memref<128x32xbf16, #tpu.memory_space<vmem>>, vector<128x32xbf16>
    %cst = arith.constant dense<0.000000e+00> : vector<256x32xf32>
    %4 = tpu.matmul %2, %3, %cst {dimension_numbers = #tpu.dot_dimension_numbers<[1], [0], [0], [1], [0, 0, 1, 1], [], []>} : vector<256x128xbf16>, vector<128x32xbf16>, vector<256x32xf32> -> vector<256x32xf32>
    %c0_5 = arith.constant 0 : index
    %c0_6 = arith.constant 0 : index
    %5 = vector.load %arg3[%c0_5, %c0_6] : memref<1x32xf32, #tpu.memory_space<vmem>>, vector<1x32xf32>
    %6 = vector.broadcast %5 : vector<1x32xf32> to vector<256x32xf32>
    %7 = arith.addf %4, %6 : vector<256x32xf32>
    %cst_7 = arith.constant 0.000000e+00 : f32
    %8 = vector.broadcast %cst_7 : f32 to vector<256x32xf32>
    %9 = arith.maximumf %7, %8 : vector<256x32xf32>
    %c0_i32 = arith.constant 0 : i32
    %10 = arith.cmpi eq, %arg0, %c0_i32 : i32
    %11 = arith.extui %10 : i1 to i32
    %c0_i32_8 = arith.constant 0 : i32
    %12 = arith.cmpi ne, %11, %c0_i32_8 : i32
    scf.if %12 {
      %cst_80 = arith.constant 0.000000e+00 : f32
      %98 = vector.broadcast %cst_80 : f32 to vector<18x32x32xf32>
      %c0_81 = arith.constant 0 : index
      %c0_82 = arith.constant 0 : index
      %c0_83 = arith.constant 0 : index
      %99 = vector.load %arg9[%c0_81, %c0_82, %c0_83] : memref<18x32x32xf32, #tpu.memory_space<vmem>>, vector<18x32x32xf32>
      tpu.vector_store %arg9[%c0_81, %c0_82, %c0_83], %98 {strides = array<i32>} : memref<18x32x32xf32, #tpu.memory_space<vmem>>, vector<18x32x32xf32>,
    } else {
    }
    %13 = vector.shape_cast %9 : vector<256x32xf32> to vector<16x16x32xf32>
    %c1 = arith.constant 1 : index
    %c8 = arith.constant 8 : index
    %c0_9 = arith.constant 0 : index
    %14 = vector.load %arg9[%c1, %c8, %c0_9] : memref<18x32x32xf32, #tpu.memory_space<vmem>>, vector<16x16x32xf32>
    tpu.vector_store %arg9[%c1, %c8, %c0_9], %13 {strides = array<i32>} : memref<18x32x32xf32, #tpu.memory_space<vmem>>, vector<16x16x32xf32>,
    %cst_10 = arith.constant 0.000000e+00 : f32
    %15 = vector.broadcast %cst_10 : f32 to vector<256x32xf32>
    %c0_11 = arith.constant 0 : index
    %c7 = arith.constant 7 : index
    %c0_12 = arith.constant 0 : index
    %16 = vector.load %arg9[%c0_11, %c7, %c0_12] : memref<18x32x32xf32, #tpu.memory_space<vmem>>, vector<16x16x32xf32>
    %17 = vector.shape_cast %16 : vector<16x16x32xf32> to vector<256x32xf32>
    %18 = arith.truncf %17 : vector<256x32xf32> to vector<256x32xbf16>
    %c0_13 = arith.constant 0 : index
    %c0_14 = arith.constant 0 : index
    %c0_15 = arith.constant 0 : index
    %19 = vector.load %arg4[%c0_13, %c0_14, %c0_15] : memref<9x32x32xbf16, #tpu.memory_space<vmem>>, vector<1x32x32xbf16>
    %20 = vector.shape_cast %19 : vector<1x32x32xbf16> to vector<32x32xbf16>
    %cst_16 = arith.constant dense<0.000000e+00> : vector<256x32xf32>
    %21 = tpu.matmul %18, %20, %cst_16 {dimension_numbers = #tpu.dot_dimension_numbers<[1], [0], [0], [1], [0, 0, 1, 1], [], []>} : vector<256x32xbf16>, vector<32x32xbf16>, vector<256x32xf32> -> vector<256x32xf32>
    %22 = arith.addf %15, %21 : vector<256x32xf32>
    %c0_17 = arith.constant 0 : index
    %c8_18 = arith.constant 8 : index
    %c0_19 = arith.constant 0 : index
    %23 = vector.load %arg9[%c0_17, %c8_18, %c0_19] : memref<18x32x32xf32, #tpu.memory_space<vmem>>, vector<16x16x32xf32>
    %24 = vector.shape_cast %23 : vector<16x16x32xf32> to vector<256x32xf32>
    %25 = arith.truncf %24 : vector<256x32xf32> to vector<256x32xbf16>
    %c1_20 = arith.constant 1 : index
    %c0_21 = arith.constant 0 : index
    %c0_22 = arith.constant 0 : index
    %26 = vector.load %arg4[%c1_20, %c0_21, %c0_22] : memref<9x32x32xbf16, #tpu.memory_space<vmem>>, vector<1x32x32xbf16>
    %27 = vector.shape_cast %26 : vector<1x32x32xbf16> to vector<32x32xbf16>
    %cst_23 = arith.constant dense<0.000000e+00> : vector<256x32xf32>
    %28 = tpu.matmul %25, %27, %cst_23 {dimension_numbers = #tpu.dot_dimension_numbers<[1], [0], [0], [1], [0, 0, 1, 1], [], []>} : vector<256x32xbf16>, vector<32x32xbf16>, vector<256x32xf32> -> vector<256x32xf32>
    %29 = arith.addf %22, %28 : vector<256x32xf32>
    %c0_24 = arith.constant 0 : index
    %c9 = arith.constant 9 : index
    %c0_25 = arith.constant 0 : index
    %30 = vector.load %arg9[%c0_24, %c9, %c0_25] : memref<18x32x32xf32, #tpu.memory_space<vmem>>, vector<16x16x32xf32>
    %31 = vector.shape_cast %30 : vector<16x16x32xf32> to vector<256x32xf32>
    %32 = arith.truncf %31 : vector<256x32xf32> to vector<256x32xbf16>
    %c2 = arith.constant 2 : index
    %c0_26 = arith.constant 0 : index
    %c0_27 = arith.constant 0 : index
    %33 = vector.load %arg4[%c2, %c0_26, %c0_27] : memref<9x32x32xbf16, #tpu.memory_space<vmem>>, vector<1x32x32xbf16>
    %34 = vector.shape_cast %33 : vector<1x32x32xbf16> to vector<32x32xbf16>
    %cst_28 = arith.constant dense<0.000000e+00> : vector<256x32xf32>
    %35 = tpu.matmul %32, %34, %cst_28 {dimension_numbers = #tpu.dot_dimension_numbers<[1], [0], [0], [1], [0, 0, 1, 1], [], []>} : vector<256x32xbf16>, vector<32x32xbf16>, vector<256x32xf32> -> vector<256x32xf32>
    %36 = arith.addf %29, %35 : vector<256x32xf32>
    %c1_29 = arith.constant 1 : index
    %c7_30 = arith.constant 7 : index
    %c0_31 = arith.constant 0 : index
    %37 = vector.load %arg9[%c1_29, %c7_30, %c0_31] : memref<18x32x32xf32, #tpu.memory_space<vmem>>, vector<16x16x32xf32>
    %38 = vector.shape_cast %37 : vector<16x16x32xf32> to vector<256x32xf32>
    %39 = arith.truncf %38 : vector<256x32xf32> to vector<256x32xbf16>
    %c3 = arith.constant 3 : index
    %c0_32 = arith.constant 0 : index
    %c0_33 = arith.constant 0 : index
    %40 = vector.load %arg4[%c3, %c0_32, %c0_33] : memref<9x32x32xbf16, #tpu.memory_space<vmem>>, vector<1x32x32xbf16>
    %41 = vector.shape_cast %40 : vector<1x32x32xbf16> to vector<32x32xbf16>
    %cst_34 = arith.constant dense<0.000000e+00> : vector<256x32xf32>
    %42 = tpu.matmul %39, %41, %cst_34 {dimension_numbers = #tpu.dot_dimension_numbers<[1], [0], [0], [1], [0, 0, 1, 1], [], []>} : vector<256x32xbf16>, vector<32x32xbf16>, vector<256x32xf32> -> vector<256x32xf32>
    %43 = arith.addf %36, %42 : vector<256x32xf32>
    %c1_35 = arith.constant 1 : index
    %c8_36 = arith.constant 8 : index
    %c0_37 = arith.constant 0 : index
    %44 = vector.load %arg9[%c1_35, %c8_36, %c0_37] : memref<18x32x32xf32, #tpu.memory_space<vmem>>, vector<16x16x32xf32>
    %45 = vector.shape_cast %44 : vector<16x16x32xf32> to vector<256x32xf32>
    %46 = arith.truncf %45 : vector<256x32xf32> to vector<256x32xbf16>
    %c4 = arith.constant 4 : index
    %c0_38 = arith.constant 0 : index
    %c0_39 = arith.constant 0 : index
    %47 = vector.load %arg4[%c4, %c0_38, %c0_39] : memref<9x32x32xbf16, #tpu.memory_space<vmem>>, vector<1x32x32xbf16>
    %48 = vector.shape_cast %47 : vector<1x32x32xbf16> to vector<32x32xbf16>
    %cst_40 = arith.constant dense<0.000000e+00> : vector<256x32xf32>
    %49 = tpu.matmul %46, %48, %cst_40 {dimension_numbers = #tpu.dot_dimension_numbers<[1], [0], [0], [1], [0, 0, 1, 1], [], []>} : vector<256x32xbf16>, vector<32x32xbf16>, vector<256x32xf32> -> vector<256x32xf32>
    %50 = arith.addf %43, %49 : vector<256x32xf32>
    %c1_41 = arith.constant 1 : index
    %c9_42 = arith.constant 9 : index
    %c0_43 = arith.constant 0 : index
    %51 = vector.load %arg9[%c1_41, %c9_42, %c0_43] : memref<18x32x32xf32, #tpu.memory_space<vmem>>, vector<16x16x32xf32>
    %52 = vector.shape_cast %51 : vector<16x16x32xf32> to vector<256x32xf32>
    %53 = arith.truncf %52 : vector<256x32xf32> to vector<256x32xbf16>
    %c5 = arith.constant 5 : index
    %c0_44 = arith.constant 0 : index
    %c0_45 = arith.constant 0 : index
    %54 = vector.load %arg4[%c5, %c0_44, %c0_45] : memref<9x32x32xbf16, #tpu.memory_space<vmem>>, vector<1x32x32xbf16>
    %55 = vector.shape_cast %54 : vector<1x32x32xbf16> to vector<32x32xbf16>
    %cst_46 = arith.constant dense<0.000000e+00> : vector<256x32xf32>
    %56 = tpu.matmul %53, %55, %cst_46 {dimension_numbers = #tpu.dot_dimension_numbers<[1], [0], [0], [1], [0, 0, 1, 1], [], []>} : vector<256x32xbf16>, vector<32x32xbf16>, vector<256x32xf32> -> vector<256x32xf32>
    %57 = arith.addf %50, %56 : vector<256x32xf32>
    %c2_47 = arith.constant 2 : index
    %c7_48 = arith.constant 7 : index
    %c0_49 = arith.constant 0 : index
    %58 = vector.load %arg9[%c2_47, %c7_48, %c0_49] : memref<18x32x32xf32, #tpu.memory_space<vmem>>, vector<16x16x32xf32>
    %59 = vector.shape_cast %58 : vector<16x16x32xf32> to vector<256x32xf32>
    %60 = arith.truncf %59 : vector<256x32xf32> to vector<256x32xbf16>
    %c6 = arith.constant 6 : index
    %c0_50 = arith.constant 0 : index
    %c0_51 = arith.constant 0 : index
    %61 = vector.load %arg4[%c6, %c0_50, %c0_51] : memref<9x32x32xbf16, #tpu.memory_space<vmem>>, vector<1x32x32xbf16>
    %62 = vector.shape_cast %61 : vector<1x32x32xbf16> to vector<32x32xbf16>
    %cst_52 = arith.constant dense<0.000000e+00> : vector<256x32xf32>
    %63 = tpu.matmul %60, %62, %cst_52 {dimension_numbers = #tpu.dot_dimension_numbers<[1], [0], [0], [1], [0, 0, 1, 1], [], []>} : vector<256x32xbf16>, vector<32x32xbf16>, vector<256x32xf32> -> vector<256x32xf32>
    %64 = arith.addf %57, %63 : vector<256x32xf32>
    %c2_53 = arith.constant 2 : index
    %c8_54 = arith.constant 8 : index
    %c0_55 = arith.constant 0 : index
    %65 = vector.load %arg9[%c2_53, %c8_54, %c0_55] : memref<18x32x32xf32, #tpu.memory_space<vmem>>, vector<16x16x32xf32>
    %66 = vector.shape_cast %65 : vector<16x16x32xf32> to vector<256x32xf32>
    %67 = arith.truncf %66 : vector<256x32xf32> to vector<256x32xbf16>
    %c7_56 = arith.constant 7 : index
    %c0_57 = arith.constant 0 : index
    %c0_58 = arith.constant 0 : index
    %68 = vector.load %arg4[%c7_56, %c0_57, %c0_58] : memref<9x32x32xbf16, #tpu.memory_space<vmem>>, vector<1x32x32xbf16>
    %69 = vector.shape_cast %68 : vector<1x32x32xbf16> to vector<32x32xbf16>
    %cst_59 = arith.constant dense<0.000000e+00> : vector<256x32xf32>
    %70 = tpu.matmul %67, %69, %cst_59 {dimension_numbers = #tpu.dot_dimension_numbers<[1], [0], [0], [1], [0, 0, 1, 1], [], []>} : vector<256x32xbf16>, vector<32x32xbf16>, vector<256x32xf32> -> vector<256x32xf32>
    %71 = arith.addf %64, %70 : vector<256x32xf32>
    %c2_60 = arith.constant 2 : index
    %c9_61 = arith.constant 9 : index
    %c0_62 = arith.constant 0 : index
    %72 = vector.load %arg9[%c2_60, %c9_61, %c0_62] : memref<18x32x32xf32, #tpu.memory_space<vmem>>, vector<16x16x32xf32>
    %73 = vector.shape_cast %72 : vector<16x16x32xf32> to vector<256x32xf32>
    %74 = arith.truncf %73 : vector<256x32xf32> to vector<256x32xbf16>
    %c8_63 = arith.constant 8 : index
    %c0_64 = arith.constant 0 : index
    %c0_65 = arith.constant 0 : index
    %75 = vector.load %arg4[%c8_63, %c0_64, %c0_65] : memref<9x32x32xbf16, #tpu.memory_space<vmem>>, vector<1x32x32xbf16>
    %76 = vector.shape_cast %75 : vector<1x32x32xbf16> to vector<32x32xbf16>
    %cst_66 = arith.constant dense<0.000000e+00> : vector<256x32xf32>
    %77 = tpu.matmul %74, %76, %cst_66 {dimension_numbers = #tpu.dot_dimension_numbers<[1], [0], [0], [1], [0, 0, 1, 1], [], []>} : vector<256x32xbf16>, vector<32x32xbf16>, vector<256x32xf32> -> vector<256x32xf32>
    %78 = arith.addf %71, %77 : vector<256x32xf32>
    %c0_67 = arith.constant 0 : index
    %c0_68 = arith.constant 0 : index
    %79 = vector.load %arg5[%c0_67, %c0_68] : memref<1x32xf32, #tpu.memory_space<vmem>>, vector<1x32xf32>
    %80 = vector.broadcast %79 : vector<1x32xf32> to vector<256x32xf32>
    %81 = arith.addf %78, %80 : vector<256x32xf32>
    %cst_69 = arith.constant 0.000000e+00 : f32
    %82 = vector.broadcast %cst_69 : f32 to vector<256x32xf32>
    %83 = arith.maximumf %81, %82 : vector<256x32xf32>
    %84 = arith.truncf %83 : vector<256x32xf32> to vector<256x32xbf16>
    %c0_70 = arith.constant 0 : index
    %c0_71 = arith.constant 0 : index
    %85 = vector.load %arg6[%c0_70, %c0_71] : memref<32x128xbf16, #tpu.memory_space<vmem>>, vector<32x128xbf16>
    %cst_72 = arith.constant dense<0.000000e+00> : vector<256x128xf32>
    %86 = tpu.matmul %84, %85, %cst_72 {dimension_numbers = #tpu.dot_dimension_numbers<[1], [0], [0], [1], [0, 0, 1, 1], [], []>} : vector<256x32xbf16>, vector<32x128xbf16>, vector<256x128xf32> -> vector<256x128xf32>
    %c0_73 = arith.constant 0 : index
    %c0_74 = arith.constant 0 : index
    %87 = vector.load %arg7[%c0_73, %c0_74] : memref<1x128xf32, #tpu.memory_space<vmem>>, vector<1x128xf32>
    %88 = vector.broadcast %87 : vector<1x128xf32> to vector<256x128xf32>
    %89 = arith.addf %86, %88 : vector<256x128xf32>
    %90 = arith.extf %2 : vector<256x128xbf16> to vector<256x128xf32>
    %91 = arith.addf %89, %90 : vector<256x128xf32>
    %cst_75 = arith.constant 0.000000e+00 : f32
    %92 = vector.broadcast %cst_75 : f32 to vector<256x128xf32>
    %93 = arith.maximumf %91, %92 : vector<256x128xf32>
    %94 = vector.shape_cast %93 : vector<256x128xf32> to vector<16x16x128xf32>
    %c0_76 = arith.constant 0 : index
    %c0_77 = arith.constant 0 : index
    %c0_78 = arith.constant 0 : index
    %c0_79 = arith.constant 0 : index
    %95 = vector.load %arg8[%c0_76, %c0_77, %c0_78, %c0_79] : memref<1x16x16x128xf32, #tpu.memory_space<vmem>>, vector<1x16x16x128xf32>
    %96 = vector.shape_cast %95 : vector<1x16x16x128xf32> to vector<16x16x128xf32>
    %97 = vector.shape_cast %94 : vector<16x16x128xf32> to vector<1x16x16x128xf32>
    tpu.vector_store %arg8[%c0_76, %c0_77, %c0_78, %c0_79], %97 {strides = array<i32>} : memref<1x16x16x128xf32, #tpu.memory_space<vmem>>, vector<1x16x16x128xf32>,
    return
  }
  func.func @transform_0(%arg0: i32) -> (i32, i32, i32, i32) {
    %c0_i32 = arith.constant 0 : i32
    %c0_i32_0 = arith.constant 0 : i32
    %c0_i32_1 = arith.constant 0 : i32
    %c0_i32_2 = arith.constant 0 : i32
    return %arg0, %c0_i32, %c0_i32_0, %c0_i32_1 : i32, i32, i32, i32
  }
  func.func @transform_1(%arg0: i32) -> (i32, i32) {
    %c0_i32 = arith.constant 0 : i32
    %c0_i32_0 = arith.constant 0 : i32
    %c0_i32_1 = arith.constant 0 : i32
    return %c0_i32, %c0_i32_0 : i32, i32
  }
  func.func @transform_2(%arg0: i32) -> (i32, i32) {
    %c0_i32 = arith.constant 0 : i32
    %c0_i32_0 = arith.constant 0 : i32
    %c0_i32_1 = arith.constant 0 : i32
    return %c0_i32, %c0_i32_0 : i32, i32
  }
  func.func @transform_3(%arg0: i32) -> (i32, i32, i32) {
    %c0_i32 = arith.constant 0 : i32
    %c0_i32_0 = arith.constant 0 : i32
    %c0_i32_1 = arith.constant 0 : i32
    %c0_i32_2 = arith.constant 0 : i32
    return %c0_i32, %c0_i32_0, %c0_i32_1 : i32, i32, i32
  }
  func.func @transform_4(%arg0: i32) -> (i32, i32) {
    %c0_i32 = arith.constant 0 : i32
    %c0_i32_0 = arith.constant 0 : i32
    %c0_i32_1 = arith.constant 0 : i32
    return %c0_i32, %c0_i32_0 : i32, i32
  }
  func.func @transform_5(%arg0: i32) -> (i32, i32) {
    %c0_i32 = arith.constant 0 : i32
    %c0_i32_0 = arith.constant 0 : i32
    %c0_i32_1 = arith.constant 0 : i32
    return %c0_i32, %c0_i32_0 : i32, i32
  }
  func.func @transform_6(%arg0: i32) -> (i32, i32) {
    %c0_i32 = arith.constant 0 : i32
    %c0_i32_0 = arith.constant 0 : i32
    %c0_i32_1 = arith.constant 0 : i32
    return %c0_i32, %c0_i32_0 : i32, i32
  }
  func.func @transform_7(%arg0: i32) -> (i32, i32, i32, i32) {
    %c0_i32 = arith.constant 0 : i32
    %c0_i32_0 = arith.constant 0 : i32
    %c0_i32_1 = arith.constant 0 : i32
    %c0_i32_2 = arith.constant 0 : i32
    return %arg0, %c0_i32, %c0_i32_0, %c0_i32_1 : i32, i32, i32, i32
  }
}

</mosaic_0001>

<llo_original>
// kernel: tpu_custom_call.1
$region0: #{tpu_custom_call.1}
  #allocation0 [shape = 'u32[]', space=smem, size = 0x4, offset = 0x4, fixed_abs, tag = 'smem constant byte address 0x4 - core index']
  #allocation1 [shape = 'u32[72,128]{1,0:T(1,128)}', space=vmem, size = 0x9000, scoped, tag = 'internal scratch']
  #allocation2 [shape = 'f32[18,32,32]{2,1,0:T(8,128)}', space=vmem, size = 0x48000, scoped, tag = 'scratch operand']
  %s0 = inlined_call_operand.hbm [shape: bf16[2,16,16,128], index: 0, kind: input, shape index: {}]
  %s1 = inlined_call_operand.vmem [shape: bf16[128,32], index: 1, kind: input, shape index: {}]
  %s2 = inlined_call_operand.vmem [shape: f32[1,32], index: 2, kind: input, shape index: {}]
  %s3 = inlined_call_operand.hbm [shape: bf16[9,32,32], index: 3, kind: input, shape index: {}]
  %s4 = inlined_call_operand.vmem [shape: f32[1,32], index: 4, kind: input, shape index: {}]
  %s5 = inlined_call_operand.vmem [shape: bf16[32,128], index: 5, kind: input, shape index: {}]
  %s6 = inlined_call_operand.vmem [shape: f32[1,128], index: 6, kind: input, shape index: {}]
  %s7 = inlined_call_operand.hbm [shape: f32[2,16,16,128], index: 7, kind: output, shape index: {}]
  %s8 = sld [smem:[#allocation0]]
  $region73: #{tpu_custom_call.1} parent=0
    _
  %s10 = ssub.s32 1, %s8
  %s11 = scalar_select 0, %s10, %s8
  $region1: #{tpu_custom_call.1} parent=0
    #allocation3 [shape = 'u8[131072]{0}', space=vmem, size = 0x20000, scoped, tag = 'input window, operand 0']
    #allocation4 [shape = 's32[2]{0}', space=sflag, size = 0x8, scoped, tag = 'scoped memory for tpu_custom_call.1']
    #allocation5 [shape = 's32[2]{0}', space=sflag, size = 0x8, scoped, tag = 'scoped memory for tpu_custom_call.1']
    #allocation6 [shape = 'u8[73728]{0}', space=vmem, size = 0x12000, scoped, tag = 'input window, operand 3, single buffered']
    #allocation7 [shape = 's32[1]{0}', space=sflag, size = 0x4, scoped, tag = 'scoped memory for tpu_custom_call.1']
    #allocation8 [shape = 'u8[262144]{0}', space=vmem, size = 0x40000, scoped, tag = 'output window, operand 0']
    %12 = vsyncpa [#allocation4], 0
    %s13 = scalar_lea.sflag [#allocation4], 1
    %14 = vsyncpa %s13, 0
    %15 = vsyncpa [#allocation7], 0
    %16 = vsyncpa [#allocation5], 0
    %s17 = scalar_lea.sflag [#allocation5], 1
    %18 = vsyncpa %s17, 0
    loop: start=0, step=1, limit=4
    $region2: #{tpu_custom_call.1} parent=1 // loop_pre_header
      _
    $region3: #{tpu_custom_call.1} parent=1 // loop_header
      %s20 = sphi 0, %s24
      %p21 = scmp.ge.s32.totalorder %s20, 4
      %s30 = sphi 0, %s32
      %s33 = sphi 0, %s30
      %s34 = sphi 0, %s33
      %s50 = sphi 0, %s34
      %s54 = sphi 0, %s54
      %s56 = sphi 0, %s54
      %s57 = sphi 0, %s56
      %s71 = sphi 0, %s57
      %s75 = sphi 0, %s75
      %s77 = sphi 0, %s75
      %s78 = sphi 0, %s77
      %s92 = sphi 0, %s78
      %s96 = sphi 0, %s96
      %s98 = sphi 0, %s96
      %s99 = sphi 0, %s98
      %s113 = sphi 0, %s99
      %s117 = sphi 0, %s117
      %s119 = sphi 0, %s117
      %s120 = sphi 0, %s119
      %s134 = sphi 0, %s120
      %s138 = sphi 0, %s138
      %s140 = sphi 0, %s138
      %s141 = sphi 0, %s140
      %s155 = sphi 0, %s141
      %s159 = sphi 0, %s159
      %s161 = sphi 0, %s159
      %s162 = sphi 0, %s161
      %s176 = sphi 0, %s162
      %s182 = sphi 0, %s184
      %s185 = sphi 0, %s182
      %s186 = sphi 0, %s185
      %s202 = sphi 0, %s186
    $region4: #{tpu_custom_call.1} parent=1 // loop_header_branch
      %23 = sbr.rel (%p21) target = $region8
    $region5: #{tpu_custom_call.1} parent=1 // loop_body
      %s25 = ssub.s32 %s20, 1
      %s26 = ssub.s32 %s20, 2
      %s27 = sadd.s32 %s20, 1
      %s28 = ssub.s32 %s20, %s27
      %p29 = scmp.eq.s32.totalorder %s28, 0
      %s31 = sadd.s32 %s30, 1
      %s32 = scalar_select %p29, %s30, %s31
      %p35 = pneg %p29
      %p36 = scmp.eq.s32.totalorder %s20, 1
      %p37 = por %p35, %p36
      %p38 = scmp.ne.s32.totalorder %s30, %s33
      %p39 = scmp.eq.s32.totalorder %s20, 0
      %p40 = por %p38, %p39
      %p41 = scmp.ne.s32.totalorder %s30, %s33
      %p42 = scmp.eq.s32.totalorder %s25, 1
      %p43 = por %p41, %p42
      %p44 = scmp.ne.s32.totalorder %s33, %s34
      %p45 = scmp.eq.s32.totalorder %s25, 0
      %p46 = por %p44, %p45
      %p47 = scmp.ne.s32.totalorder %s33, %s34
      %p48 = scmp.eq.s32.totalorder %s26, 1
      %p49 = por %p47, %p48
      %p51 = scmp.ne.s32.totalorder %s34, %s50
      %p52 = scmp.eq.s32.totalorder %s26, 0
      %p53 = por %p51, %p52
      %s55 = sadd.s32 %s54, 1
      %p58 = scmp.eq.s32.totalorder %s20, 1
      %p59 = scmp.ne.s32.totalorder %s54, %s56
      %p60 = scmp.eq.s32.totalorder %s20, 0
      %p61 = por %p59, %p60
      %p62 = scmp.ne.s32.totalorder %s54, %s56
      %p63 = scmp.eq.s32.totalorder %s25, 1
      %p64 = por %p62, %p63
      %p65 = scmp.ne.s32.totalorder %s56, %s57
      %p66 = scmp.eq.s32.totalorder %s25, 0
      %p67 = por %p65, %p66
      %p68 = scmp.ne.s32.totalorder %s56, %s57
      %p69 = scmp.eq.s32.totalorder %s26, 1
      %p70 = por %p68, %p69
      %p72 = scmp.ne.s32.totalorder %s57, %s71
      %p73 = scmp.eq.s32.totalorder %s26, 0
      %p74 = por %p72, %p73
      %s76 = sadd.s32 %s75, 1
      %p79 = scmp.eq.s32.totalorder %s20, 1
      %p80 = scmp.ne.s32.totalorder %s75, %s77
      %p81 = scmp.eq.s32.totalorder %s20, 0
      %p82 = por %p80, %p81
      %p83 = scmp.ne.s32.totalorder %s75, %s77
      %p84 = scmp.eq.s32.totalorder %s25, 1
      %p85 = por %p83, %p84
      %p86 = scmp.ne.s32.totalorder %s77, %s78
      %p87 = scmp.eq.s32.totalorder %s25, 0
      %p88 = por %p86, %p87
      %p89 = scmp.ne.s32.totalorder %s77, %s78
      %p90 = scmp.eq.s32.totalorder %s26, 1
      %p91 = por %p89, %p90
      %p93 = scmp.ne.s32.totalorder %s78, %s92
      %p94 = scmp.eq.s32.totalorder %s26, 0
      %p95 = por %p93, %p94
      %s97 = sadd.s32 %s96, 1
      %p100 = scmp.eq.s32.totalorder %s20, 1
      %p101 = scmp.ne.s32.totalorder %s96, %s98
      %p102 = scmp.eq.s32.totalorder %s20, 0
      %p103 = por %p101, %p102
      %p104 = scmp.ne.s32.totalorder %s96, %s98
      %p105 = scmp.eq.s32.totalorder %s25, 1
      %p106 = por %p104, %p105
      %p107 = scmp.ne.s32.totalorder %s98, %s99
      %p108 = scmp.eq.s32.totalorder %s25, 0
      %p109 = por %p107, %p108
      %p110 = scmp.ne.s32.totalorder %s98, %s99
      %p111 = scmp.eq.s32.totalorder %s26, 1
      %p112 = por %p110, %p111
      %p114 = scmp.ne.s32.totalorder %s99, %s113
      %p115 = scmp.eq.s32.totalorder %s26, 0
      %p116 = por %p114, %p115
      %s118 = sadd.s32 %s117, 1
      %p121 = scmp.eq.s32.totalorder %s20, 1
      %p122 = scmp.ne.s32.totalorder %s117, %s119
      %p123 = scmp.eq.s32.totalorder %s20, 0
      %p124 = por %p122, %p123
      %p125 = scmp.ne.s32.totalorder %s117, %s119
      %p126 = scmp.eq.s32.totalorder %s25, 1
      %p127 = por %p125, %p126
      %p128 = scmp.ne.s32.totalorder %s119, %s120
      %p129 = scmp.eq.s32.totalorder %s25, 0
      %p130 = por %p128, %p129
      %p131 = scmp.ne.s32.totalorder %s119, %s120
      %p132 = scmp.eq.s32.totalorder %s26, 1
      %p133 = por %p131, %p132
      %p135 = scmp.ne.s32.totalorder %s120, %s134
      %p136 = scmp.eq.s32.totalorder %s26, 0
      %p137 = por %p135, %p136
      %s139 = sadd.s32 %s138, 1
      %p142 = scmp.eq.s32.totalorder %s20, 1
      %p143 = scmp.ne.s32.totalorder %s138, %s140
      %p144 = scmp.eq.s32.totalorder %s20, 0
      %p145 = por %p143, %p144
      %p146 = scmp.ne.s32.totalorder %s138, %s140
      %p147 = scmp.eq.s32.totalorder %s25, 1
      %p148 = por %p146, %p147
      %p149 = scmp.ne.s32.totalorder %s140, %s141
      %p150 = scmp.eq.s32.totalorder %s25, 0
      %p151 = por %p149, %p150
      %p152 = scmp.ne.s32.totalorder %s140, %s141
      %p153 = scmp.eq.s32.totalorder %s26, 1
      %p154 = por %p152, %p153
      %p156 = scmp.ne.s32.totalorder %s141, %s155
      %p157 = scmp.eq.s32.totalorder %s26, 0
      %p158 = por %p156, %p157
      %s160 = sadd.s32 %s159, 1
      %p163 = scmp.eq.s32.totalorder %s20, 1
      %p164 = scmp.ne.s32.totalorder %s159, %s161
      %p165 = scmp.eq.s32.totalorder %s20, 0
      %p166 = por %p164, %p165
      %p167 = scmp.ne.s32.totalorder %s159, %s161
      %p168 = scmp.eq.s32.totalorder %s25, 1
      %p169 = por %p167, %p168
      %p170 = scmp.ne.s32.totalorder %s161, %s162
      %p171 = scmp.eq.s32.totalorder %s25, 0
      %p172 = por %p170, %p171
      %p173 = scmp.ne.s32.totalorder %s161, %s162
      %p174 = scmp.eq.s32.totalorder %s26, 1
      %p175 = por %p173, %p174
      %p177 = scmp.ne.s32.totalorder %s162, %s176
      %p178 = scmp.eq.s32.totalorder %s26, 0
      %p179 = por %p177, %p178
      %s180 = ssub.s32 %s20, %s27
      %p181 = scmp.eq.s32.totalorder %s180, 0
      %s183 = sadd.s32 %s182, 1
      %s184 = scalar_select %p181, %s182, %s183
      %p187 = pneg %p181
      %p188 = scmp.eq.s32.totalorder %s20, 1
      %p189 = por %p187, %p188
      %p190 = scmp.ne.s32.totalorder %s182, %s185
      %p191 = scmp.eq.s32.totalorder %s20, 0
      %p192 = por %p190, %p191
      %p193 = scmp.ne.s32.totalorder %s182, %s185
      %p194 = scmp.eq.s32.totalorder %s25, 1
      %p195 = por %p193, %p194
      %p196 = scmp.ne.s32.totalorder %s185, %s186
      %p197 = scmp.eq.s32.totalorder %s25, 0
      %p198 = por %p196, %p197
      %p199 = scmp.ne.s32.totalorder %s185, %s186
      %p200 = scmp.eq.s32.totalorder %s26, 1
      %p201 = por %p199, %p200
      %p203 = scmp.ne.s32.totalorder %s186, %s202
      %p204 = scmp.eq.s32.totalorder %s26, 0
      %p205 = por %p203, %p204
      %p206 = scmp.le.s32.totalorder 1, %s20
      %p207 = scmp.lt.s32.totalorder %s20, 3
      %p208 = pnand %p206, %p207
      %p209 = pneg %p208
      // Predicated region
      $region9: #{tpu_custom_call.1} parent=5 // pred_check
        _
      $region10: #{tpu_custom_call.1} parent=5 // pred_check_branch
        %211 = sbr.rel (%p208) target = $region12
      $region11: #{tpu_custom_call.1} parent=5 // pred_region
        %s212 = ssub.s32 %s20, 1
        // Predicated region
        $region13: #{tpu_custom_call.1} parent=11 // pred_check
          %p213 = pneg %p67
        $region14: #{tpu_custom_call.1} parent=11 // pred_check_branch
          %215 = sbr.rel (%p213) target = $region16
        $region15: #{tpu_custom_call.1} parent=11 // pred_region
          _
        $region16: #{tpu_custom_call.1} parent=11 // pred_fallthru
          _
        // Predicated region
        $region17: #{tpu_custom_call.1} parent=11 // pred_check
          %p216 = pneg %p88
        $region18: #{tpu_custom_call.1} parent=11 // pred_check_branch
          %218 = sbr.rel (%p216) target = $region20
        $region19: #{tpu_custom_call.1} parent=11 // pred_region
          _
        $region20: #{tpu_custom_call.1} parent=11 // pred_fallthru
          _
        // Predicated region
        $region21: #{tpu_custom_call.1} parent=11 // pred_check
          %p219 = pneg %p109
        $region22: #{tpu_custom_call.1} parent=11 // pred_check_branch
          %221 = sbr.rel (%p219) target = $region24
        $region23: #{tpu_custom_call.1} parent=11 // pred_region
          %223 = vsyncadd [#allocation7], 0
          %s224 = sshll.u32 %s3, 4
          %s225 = int_to_ptr.hbm [resolvable:$true] %s224
          %s226 = sshll.u32 [#allocation6], 4
          %s227 = int_to_ptr.vmem [resolvable:$true] %s226
          %232 = dma.hbm_to_vmem [thread:$0]  %s225, 2304, %s227, [#allocation7], 64, 64, 4
        $region24: #{tpu_custom_call.1} parent=11 // pred_fallthru
          _
        // Predicated region
        $region25: #{tpu_custom_call.1} parent=11 // pred_check
          %p233 = pneg %p130
        $region26: #{tpu_custom_call.1} parent=11 // pred_check_branch
          %235 = sbr.rel (%p233) target = $region28
        $region27: #{tpu_custom_call.1} parent=11 // pred_region
          _
        $region28: #{tpu_custom_call.1} parent=11 // pred_fallthru
          _
        // Predicated region
        $region29: #{tpu_custom_call.1} parent=11 // pred_check
          %p236 = pneg %p151
        $region30: #{tpu_custom_call.1} parent=11 // pred_check_branch
          %238 = sbr.rel (%p236) target = $region32
        $region31: #{tpu_custom_call.1} parent=11 // pred_region
          _
        $region32: #{tpu_custom_call.1} parent=11 // pred_fallthru
          _
        // Predicated region
        $region33: #{tpu_custom_call.1} parent=11 // pred_check
          %p239 = pneg %p172
        $region34: #{tpu_custom_call.1} parent=11 // pred_check_branch
          %241 = sbr.rel (%p239) target = $region36
        $region35: #{tpu_custom_call.1} parent=11 // pred_region
          _
        $region36: #{tpu_custom_call.1} parent=11 // pred_fallthru
          _
      $region12: #{tpu_custom_call.1} parent=5 // pred_fallthru
        _
      %p242 = scmp.lt.s32.totalorder %s20, 2
      // Predicated region
      $region37: #{tpu_custom_call.1} parent=5 // pred_check
        %p243 = pneg %p242
      $region38: #{tpu_custom_call.1} parent=5 // pred_check_branch
        %245 = sbr.rel (%p243) target = $region40
      $region39: #{tpu_custom_call.1} parent=5 // pred_region
        // Predicated region
        $region41: #{tpu_custom_call.1} parent=39 // pred_check
          %p246 = pneg %p40
        $region42: #{tpu_custom_call.1} parent=39 // pred_check_branch
          %248 = sbr.rel (%p246) target = $region44
        $region43: #{tpu_custom_call.1} parent=39 // pred_region
          %s249 = sand.u32 %s30, 1
          %s250 = scalar_lea.sflag [#allocation4], %s249
          %s251 = sand.u32 %s30, 1
          %s252 = smul.addr %s251, 128
          %s253 = scalar_lea.vmem [#allocation3], %s252
          %255 = vsyncadd %s250, 0
          %s256 = smul.addr %s20, 32
          %s257 = smul.addr %s256, 4
          %s258 = scalar_lea.hbm %s0, %s257
          %s259 = sshll.u32 %s258, 4
          %s260 = int_to_ptr.hbm [resolvable:$true] %s259
          %s261 = sshll.u32 %s253, 4
          %s262 = int_to_ptr.vmem [resolvable:$true] %s261
          %267 = dma.hbm_to_vmem [thread:$0]  %s260, 2048, %s262, %s250, 64, 64, 4
        $region44: #{tpu_custom_call.1} parent=39 // pred_fallthru
          _
      $region40: #{tpu_custom_call.1} parent=5 // pred_fallthru
        _
      %p268 = scmp.le.s32.totalorder 1, %s20
      %p269 = scmp.lt.s32.totalorder %s20, 3
      %p270 = pnand %p268, %p269
      %p271 = pneg %p270
      // Predicated region
      $region45: #{tpu_custom_call.1} parent=5 // pred_check
        _
      $region46: #{tpu_custom_call.1} parent=5 // pred_check_branch
        %273 = sbr.rel (%p270) target = $region48
      $region47: #{tpu_custom_call.1} parent=5 // pred_region
        %s274 = ssub.s32 %s20, 1
        %s275 = sand.u32 %s33, 1
        %s276 = scalar_lea.sflag [#allocation4], %s275
        %s277 = sand.u32 %s33, 1
        %s278 = smul.addr %s277, 128
        %s279 = scalar_lea.vmem [#allocation3], %s278
        // Predicated region
        $region49: #{tpu_custom_call.1} parent=47 // pred_check
          %p280 = pneg %p46
        $region50: #{tpu_custom_call.1} parent=47 // pred_check_branch
          %282 = sbr.rel (%p280) target = $region52
        $region51: #{tpu_custom_call.1} parent=47 // pred_region
          %284 = dma.done %s276, 2048
        $region52: #{tpu_custom_call.1} parent=47 // pred_fallthru
          _
        // Predicated region
        $region53: #{tpu_custom_call.1} parent=47 // pred_check
          %p285 = pneg %p109
        $region54: #{tpu_custom_call.1} parent=47 // pred_check_branch
          %287 = sbr.rel (%p285) target = $region56
        $region55: #{tpu_custom_call.1} parent=47 // pred_region
          %289 = dma.done [#allocation7], 2304
        $region56: #{tpu_custom_call.1} parent=47 // pred_fallthru
          _
        %s290 = sand.u32 %s33, 1
        %s291 = scalar_lea.sflag [#allocation4], %s290
        %s292 = sand.u32 %s33, 1
        %s293 = smul.addr %s292, 128
        %s294 = scalar_lea.vmem [#allocation3], %s293
        %p295 = pneg %p46
        %p296 = pneg %p43
        %p297 = pneg %p67
        %p298 = pneg %p64
        %p299 = pneg %p88
        %p300 = pneg %p85
        %p301 = pneg %p109
        %p302 = pneg %p106
        %p303 = pneg %p130
        %p304 = pneg %p127
        %p305 = pneg %p151
        %p306 = pneg %p148
        %p307 = pneg %p172
        %p308 = pneg %p169
        %p309 = pneg %p198
        %p310 = pneg %p195
        %s311 = sand.u32 %s185, 1
        %s312 = scalar_lea.sflag [#allocation5], %s311
        %s313 = sand.u32 %s185, 1
        %s314 = smul.addr %s313, 256
        %s315 = scalar_lea.vmem [#allocation8], %s314
        %v317 = vld [vmem:[%s279] sm:$0xf]
        %v318 = vld [vmem:[%s279 + $0x4] sm:$0xf]
        %v319 = vld [vmem:[%s279 + $0x8] sm:$0xf]
        %v320 = vld [vmem:[%s279 + $0xc] sm:$0xf]
        %v321 = vld [vmem:[%s279 + $0x10] sm:$0xf]
        %v322 = vld [vmem:[%s279 + $0x14] sm:$0xf]
        %v323 = vld [vmem:[%s279 + $0x18] sm:$0xf]
        %v324 = vld [vmem:[%s279 + $0x1c] sm:$0xf]
        %v325 = vld [vmem:[%s279 + $0x20] sm:$0xf]
        %v326 = vld [vmem:[%s279 + $0x24] sm:$0xf]
        %v327 = vld [vmem:[%s279 + $0x28] sm:$0xf]
        %v328 = vld [vmem:[%s279 + $0x2c] sm:$0xf]
        %v329 = vld [vmem:[%s279 + $0x30] sm:$0xf]
        %v330 = vld [vmem:[%s279 + $0x34] sm:$0xf]
        %v331 = vld [vmem:[%s279 + $0x38] sm:$0xf]
        %v332 = vld [vmem:[%s279 + $0x3c] sm:$0xf]
        %v333 = vld [vmem:[%s279 + $0x40] sm:$0xf]
        %v334 = vld [vmem:[%s279 + $0x44] sm:$0xf]
        %v335 = vld [vmem:[%s279 + $0x48] sm:$0xf]
        %v336 = vld [vmem:[%s279 + $0x4c] sm:$0xf]
        %v337 = vld [vmem:[%s279 + $0x50] sm:$0xf]
        %v338 = vld [vmem:[%s279 + $0x54] sm:$0xf]
        %v339 = vld [vmem:[%s279 + $0x58] sm:$0xf]
        %v340 = vld [vmem:[%s279 + $0x5c] sm:$0xf]
        %v341 = vld [vmem:[%s279 + $0x60] sm:$0xf]
        %v342 = vld [vmem:[%s279 + $0x64] sm:$0xf]
        %v343 = vld [vmem:[%s279 + $0x68] sm:$0xf]
        %v344 = vld [vmem:[%s279 + $0x6c] sm:$0xf]
        %v345 = vld [vmem:[%s279 + $0x70] sm:$0xf]
        %v346 = vld [vmem:[%s279 + $0x74] sm:$0xf]
        %v347 = vld [vmem:[%s279 + $0x78] sm:$0xf]
        %v348 = vld [vmem:[%s279 + $0x7c] sm:$0xf]
        %v349 = vld [vmem:[%s1] sm:$0xf]
        %v350 = vld [vmem:[%s1 + $0x4] sm:$0xf]
        %v351 = vld [vmem:[%s1 + $0x8] sm:$0xf]
        %v352 = vld [vmem:[%s1 + $0xc] sm:$0xf]
        %v353 = vld [vmem:[%s1 + $0x10] sm:$0xf]
        %v354 = vld [vmem:[%s1 + $0x14] sm:$0xf]
        %v355 = vld [vmem:[%s1 + $0x18] sm:$0xf]
        %v356 = vld [vmem:[%s1 + $0x1c] sm:$0xf]
        %v357 = vld [vmem:[%s1 + $0x20] sm:$0xf]
        %v358 = vld [vmem:[%s1 + $0x24] sm:$0xf]
        %v359 = vld [vmem:[%s1 + $0x28] sm:$0xf]
        %v360 = vld [vmem:[%s1 + $0x2c] sm:$0xf]
        %v361 = vld [vmem:[%s1 + $0x30] sm:$0xf]
        %v362 = vld [vmem:[%s1 + $0x34] sm:$0xf]
        %v363 = vld [vmem:[%s1 + $0x38] sm:$0xf]
        %v364 = vld [vmem:[%s1 + $0x3c] sm:$0xf]
        %v365 = vld [vmem:[%s2] sm:$0x1]
        %v367 = vperm.slane %v365, 0
        %v401 = vunpack.c.l.b16 %v317
        %v402 = vunpack.c.l.b16 %v318
        %v403 = vunpack.c.l.b16 %v319
        %v404 = vunpack.c.l.b16 %v320
        %v405 = vunpack.c.l.b16 %v321
        %v406 = vunpack.c.l.b16 %v322
        %v407 = vunpack.c.l.b16 %v323
        %v408 = vunpack.c.l.b16 %v324
        %v409 = vunpack.c.l.b16 %v325
        %v410 = vunpack.c.l.b16 %v326
        %v411 = vunpack.c.l.b16 %v327
        %v412 = vunpack.c.l.b16 %v328
        %v413 = vunpack.c.l.b16 %v329
        %v414 = vunpack.c.l.b16 %v330
        %v415 = vunpack.c.l.b16 %v331
        %v416 = vunpack.c.l.b16 %v332
        %v417 = vunpack.c.l.b16 %v333
        %v418 = vunpack.c.l.b16 %v334
        %v419 = vunpack.c.l.b16 %v335
        %v420 = vunpack.c.l.b16 %v336
        %v421 = vunpack.c.l.b16 %v337
        %v422 = vunpack.c.l.b16 %v338
        %v423 = vunpack.c.l.b16 %v339
        %v424 = vunpack.c.l.b16 %v340
        %v425 = vunpack.c.l.b16 %v341
        %v426 = vunpack.c.l.b16 %v342
        %v427 = vunpack.c.l.b16 %v343
        %v428 = vunpack.c.l.b16 %v344
        %v429 = vunpack.c.l.b16 %v345
        %v430 = vunpack.c.l.b16 %v346
        %v431 = vunpack.c.l.b16 %v347
        %v432 = vunpack.c.l.b16 %v348
        %v433 = vpack.c.b16 %v402, %v401
        %v434 = vpack.c.b16 %v404, %v403
        %v435 = vpack.c.b16 %v406, %v405
        %v436 = vpack.c.b16 %v408, %v407
        %v437 = vpack.c.b16 %v410, %v409
        %v438 = vpack.c.b16 %v412, %v411
        %v439 = vpack.c.b16 %v414, %v413
        %v440 = vpack.c.b16 %v416, %v415
        %v441 = vpack.c.b16 %v418, %v417
        %v442 = vpack.c.b16 %v420, %v419
        %v443 = vpack.c.b16 %v422, %v421
        %v444 = vpack.c.b16 %v424, %v423
        %v445 = vpack.c.b16 %v426, %v425
        %v446 = vpack.c.b16 %v428, %v427
        %v447 = vpack.c.b16 %v430, %v429
        %v448 = vpack.c.b16 %v432, %v431
        %v481 = vunpack.c.l.b16 %v349
        %v482 = vunpack.c.l.b16 %v350
        %v483 = vunpack.c.l.b16 %v351
        %v484 = vunpack.c.l.b16 %v352
        %v485 = vunpack.c.l.b16 %v353
        %v486 = vunpack.c.l.b16 %v354
        %v487 = vunpack.c.l.b16 %v355
        %v488 = vunpack.c.l.b16 %v356
        %v489 = vunpack.c.l.b16 %v357
        %v490 = vunpack.c.l.b16 %v358
        %v491 = vunpack.c.l.b16 %v359
        %v492 = vunpack.c.l.b16 %v360
        %v493 = vunpack.c.l.b16 %v361
        %v494 = vunpack.c.l.b16 %v362
        %v495 = vunpack.c.l.b16 %v363
        %v496 = vunpack.c.l.b16 %v364
        %v497 = vpack.c.b16 %v482, %v481
        %v498 = vpack.c.b16 %v484, %v483
        %v499 = vpack.c.b16 %v486, %v485
        %v500 = vpack.c.b16 %v488, %v487
        %v501 = vpack.c.b16 %v490, %v489
        %v502 = vpack.c.b16 %v492, %v491
        %v503 = vpack.c.b16 %v494, %v493
        %v504 = vpack.c.b16 %v496, %v495
        %513 = vmatpush.bf16.msra.mxu0 %v504
        %514 = vmatpush.bf16.msra.mxu0 %v503
        %515 = vmatpush.bf16.msra.mxu0 %v502
        %516 = vmatpush.bf16.msra.mxu0 %v501
        %517 = vmatpush.bf16.msra.mxu0 %v500
        %518 = vmatpush.bf16.msra.mxu0 %v499
        %519 = vmatpush.bf16.msra.mxu0 %v498
        %520 = vmatpush.bf16.msra.mxu0 %v497
        %521 = vmatmul.bf16.gmra.mxu0 %v433
        %v522 = vpop.f32.mrf.mxu0
        %v523 = vadd.f32 %v367, %v522
        %v524 = vpop.f32.mrf.mxu0
        %v525 = vadd.f32 %v367, %v524
        %526 = vmatmul.bf16.gmra.mxu0 %v434
        %v527 = vpop.f32.mrf.mxu0
        %v528 = vadd.f32 %v367, %v527
        %v529 = vpop.f32.mrf.mxu0
        %v530 = vadd.f32 %v367, %v529
        %531 = vmatmul.bf16.gmra.mxu0 %v435
        %v532 = vpop.f32.mrf.mxu0
        %v533 = vadd.f32 %v367, %v532
        %v534 = vpop.f32.mrf.mxu0
        %v535 = vadd.f32 %v367, %v534
        %536 = vmatmul.bf16.gmra.mxu0 %v436
        %v537 = vpop.f32.mrf.mxu0
        %v538 = vadd.f32 %v367, %v537
        %v539 = vpop.f32.mrf.mxu0
        %v540 = vadd.f32 %v367, %v539
        %541 = vmatmul.bf16.gmra.mxu0 %v437
        %v542 = vpop.f32.mrf.mxu0
        %v543 = vadd.f32 %v367, %v542
        %v544 = vpop.f32.mrf.mxu0
        %v545 = vadd.f32 %v367, %v544
        %546 = vmatmul.bf16.gmra.mxu0 %v438
        %v547 = vpop.f32.mrf.mxu0
        %v548 = vadd.f32 %v367, %v547
        %v549 = vpop.f32.mrf.mxu0
        %v550 = vadd.f32 %v367, %v549
        %551 = vmatmul.bf16.gmra.mxu0 %v439
        %v552 = vpop.f32.mrf.mxu0
        %v553 = vadd.f32 %v367, %v552
        %v554 = vpop.f32.mrf.mxu0
        %v555 = vadd.f32 %v367, %v554
        %556 = vmatmul.bf16.gmra.mxu0 %v440
        %v557 = vpop.f32.mrf.mxu0
        %v558 = vadd.f32 %v367, %v557
        %v559 = vpop.f32.mrf.mxu0
        %v560 = vadd.f32 %v367, %v559
        %561 = vmatmul.bf16.gmra.mxu0 %v441
        %v562 = vpop.f32.mrf.mxu0
        %v563 = vadd.f32 %v367, %v562
        %v564 = vpop.f32.mrf.mxu0
        %v565 = vadd.f32 %v367, %v564
        %566 = vmatmul.bf16.gmra.mxu0 %v442
        %v567 = vpop.f32.mrf.mxu0
        %v568 = vadd.f32 %v367, %v567
        %v569 = vpop.f32.mrf.mxu0
        %v570 = vadd.f32 %v367, %v569
        %571 = vmatmul.bf16.gmra.mxu0 %v443
        %v572 = vpop.f32.mrf.mxu0
        %v573 = vadd.f32 %v367, %v572
        %v574 = vpop.f32.mrf.mxu0
        %v575 = vadd.f32 %v367, %v574
        %576 = vmatmul.bf16.gmra.mxu0 %v444
        %v577 = vpop.f32.mrf.mxu0
        %v578 = vadd.f32 %v367, %v577
        %v579 = vpop.f32.mrf.mxu0
        %v580 = vadd.f32 %v367, %v579
        %581 = vmatmul.bf16.gmra.mxu0 %v445
        %v582 = vpop.f32.mrf.mxu0
        %v583 = vadd.f32 %v367, %v582
        %v584 = vpop.f32.mrf.mxu0
        %v585 = vadd.f32 %v367, %v584
        %586 = vmatmul.bf16.gmra.mxu0 %v446
        %v587 = vpop.f32.mrf.mxu0
        %v588 = vadd.f32 %v367, %v587
        %v589 = vpop.f32.mrf.mxu0
        %v590 = vadd.f32 %v367, %v589
        %591 = vmatmul.bf16.gmra.mxu0 %v447
        %v592 = vpop.f32.mrf.mxu0
        %v593 = vadd.f32 %v367, %v592
        %v594 = vpop.f32.mrf.mxu0
        %v595 = vadd.f32 %v367, %v594
        %596 = vmatmul.bf16.gmra.mxu0 %v448
        %v597 = vpop.f32.mrf.mxu0
        %v598 = vadd.f32 %v367, %v597
        %v599 = vpop.f32.mrf.mxu0
        %v600 = vadd.f32 %v367, %v599
        %601 = vdwg.mxu0
        %v602 = vmax.f32 %v523, 0.0
        %v603 = vmax.f32 %v525, 0.0
        %v604 = vmax.f32 %v528, 0.0
        %v605 = vmax.f32 %v530, 0.0
        %v606 = vmax.f32 %v533, 0.0
        %v607 = vmax.f32 %v535, 0.0
        %v608 = vmax.f32 %v538, 0.0
        %v609 = vmax.f32 %v540, 0.0
        %v610 = vmax.f32 %v543, 0.0
        %v611 = vmax.f32 %v545, 0.0
        %v612 = vmax.f32 %v548, 0.0
        %v613 = vmax.f32 %v550, 0.0
        %v614 = vmax.f32 %v553, 0.0
        %v615 = vmax.f32 %v555, 0.0
        %v616 = vmax.f32 %v558, 0.0
        %v617 = vmax.f32 %v560, 0.0
        %v618 = vmax.f32 %v563, 0.0
        %v619 = vmax.f32 %v565, 0.0
        %v620 = vmax.f32 %v568, 0.0
        %v621 = vmax.f32 %v570, 0.0
        %v622 = vmax.f32 %v573, 0.0
        %v623 = vmax.f32 %v575, 0.0
        %v624 = vmax.f32 %v578, 0.0
        %v625 = vmax.f32 %v580, 0.0
        %v626 = vmax.f32 %v583, 0.0
        %v627 = vmax.f32 %v585, 0.0
        %v628 = vmax.f32 %v588, 0.0
        %v629 = vmax.f32 %v590, 0.0
        %v630 = vmax.f32 %v593, 0.0
        %v631 = vmax.f32 %v595, 0.0
        %v632 = vmax.f32 %v598, 0.0
        %v633 = vmax.f32 %v600, 0.0
        %p634 = scmp.eq.s32.totalorder %s25, 0
        // Predicated region
        $region57: #{tpu_custom_call.1} parent=47 // pred_check
          %p635 = pneg %p634
        $region58: #{tpu_custom_call.1} parent=47 // pred_check_branch
          %637 = sbr.rel (%p635) target = $region60
        $region59: #{tpu_custom_call.1} parent=47 // pred_region
          %vm638 = vcmask 261120
          %639 = vst.msk [vmem:[#allocation2] sm:$0xff] %vm638, 0.0
          %640 = vst.msk [vmem:[#allocation2 + $0x8] sm:$0xff] %vm638, 0.0
          %641 = vst.msk [vmem:[#allocation2 + $0x10] sm:$0xff] %vm638, 0.0
          %642 = vst.msk [vmem:[#allocation2 + $0x18] sm:$0xff] %vm638, 0.0
          %643 = vst.msk [vmem:[#allocation2 + $0x20] sm:$0xff] %vm638, 0.0
          %644 = vst.msk [vmem:[#allocation2 + $0x28] sm:$0xff] %vm638, 0.0
          %645 = vst.msk [vmem:[#allocation2 + $0x30] sm:$0xff] %vm638, 0.0
          %646 = vst.msk [vmem:[#allocation2 + $0x38] sm:$0xff] %vm638, 0.0
          %647 = vst.msk [vmem:[#allocation2 + $0x40] sm:$0xff] %vm638, 0.0
          %648 = vst.msk [vmem:[#allocation2 + $0x48] sm:$0xff] %vm638, 0.0
          %649 = vst.msk [vmem:[#allocation2 + $0x50] sm:$0xff] %vm638, 0.0
          %650 = vst.msk [vmem:[#allocation2 + $0x58] sm:$0xff] %vm638, 0.0
          %651 = vst.msk [vmem:[#allocation2 + $0x60] sm:$0xff] %vm638, 0.0
          %652 = vst.msk [vmem:[#allocation2 + $0x68] sm:$0xff] %vm638, 0.0
          %653 = vst.msk [vmem:[#allocation2 + $0x70] sm:$0xff] %vm638, 0.0
          %654 = vst.msk [vmem:[#allocation2 + $0x78] sm:$0xff] %vm638, 0.0
          %655 = vst.msk [vmem:[#allocation2 + $0x80] sm:$0xff] %vm638, 0.0
          %656 = vst.msk [vmem:[#allocation2 + $0x88] sm:$0xff] %vm638, 0.0
          %657 = vst.msk [vmem:[#allocation2 + $0x90] sm:$0xff] %vm638, 0.0
          %658 = vst.msk [vmem:[#allocation2 + $0x98] sm:$0xff] %vm638, 0.0
          %659 = vst.msk [vmem:[#allocation2 + $0xa0] sm:$0xff] %vm638, 0.0
          %660 = vst.msk [vmem:[#allocation2 + $0xa8] sm:$0xff] %vm638, 0.0
          %661 = vst.msk [vmem:[#allocation2 + $0xb0] sm:$0xff] %vm638, 0.0
          %662 = vst.msk [vmem:[#allocation2 + $0xb8] sm:$0xff] %vm638, 0.0
          %663 = vst.msk [vmem:[#allocation2 + $0xc0] sm:$0xff] %vm638, 0.0
          %664 = vst.msk [vmem:[#allocation2 + $0xc8] sm:$0xff] %vm638, 0.0
          %665 = vst.msk [vmem:[#allocation2 + $0xd0] sm:$0xff] %vm638, 0.0
          %666 = vst.msk [vmem:[#allocation2 + $0xd8] sm:$0xff] %vm638, 0.0
          %667 = vst.msk [vmem:[#allocation2 + $0xe0] sm:$0xff] %vm638, 0.0
          %668 = vst.msk [vmem:[#allocation2 + $0xe8] sm:$0xff] %vm638, 0.0
          %669 = vst.msk [vmem:[#allocation2 + $0xf0] sm:$0xff] %vm638, 0.0
          %670 = vst.msk [vmem:[#allocation2 + $0xf8] sm:$0xff] %vm638, 0.0
          %671 = vst.msk [vmem:[#allocation2 + $0x100] sm:$0xff] %vm638, 0.0
          %672 = vst.msk [vmem:[#allocation2 + $0x108] sm:$0xff] %vm638, 0.0
          %673 = vst.msk [vmem:[#allocation2 + $0x110] sm:$0xff] %vm638, 0.0
          %674 = vst.msk [vmem:[#allocation2 + $0x118] sm:$0xff] %vm638, 0.0
          %675 = vst.msk [vmem:[#allocation2 + $0x120] sm:$0xff] %vm638, 0.0
          %676 = vst.msk [vmem:[#allocation2 + $0x128] sm:$0xff] %vm638, 0.0
          %677 = vst.msk [vmem:[#allocation2 + $0x130] sm:$0xff] %vm638, 0.0
          %678 = vst.msk [vmem:[#allocation2 + $0x138] sm:$0xff] %vm638, 0.0
          %679 = vst.msk [vmem:[#allocation2 + $0x140] sm:$0xff] %vm638, 0.0
          %680 = vst.msk [vmem:[#allocation2 + $0x148] sm:$0xff] %vm638, 0.0
          %681 = vst.msk [vmem:[#allocation2 + $0x150] sm:$0xff] %vm638, 0.0
          %682 = vst.msk [vmem:[#allocation2 + $0x158] sm:$0xff] %vm638, 0.0
          %683 = vst.msk [vmem:[#allocation2 + $0x160] sm:$0xff] %vm638, 0.0
          %684 = vst.msk [vmem:[#allocation2 + $0x168] sm:$0xff] %vm638, 0.0
          %685 = vst.msk [vmem:[#allocation2 + $0x170] sm:$0xff] %vm638, 0.0
          %686 = vst.msk [vmem:[#allocation2 + $0x178] sm:$0xff] %vm638, 0.0
          %687 = vst.msk [vmem:[#allocation2 + $0x180] sm:$0xff] %vm638, 0.0
          %688 = vst.msk [vmem:[#allocation2 + $0x188] sm:$0xff] %vm638, 0.0
          %689 = vst.msk [vmem:[#allocation2 + $0x190] sm:$0xff] %vm638, 0.0
          %690 = vst.msk [vmem:[#allocation2 + $0x198] sm:$0xff] %vm638, 0.0
          %691 = vst.msk [vmem:[#allocation2 + $0x1a0] sm:$0xff] %vm638, 0.0
          %692 = vst.msk [vmem:[#allocation2 + $0x1a8] sm:$0xff] %vm638, 0.0
          %693 = vst.msk [vmem:[#allocation2 + $0x1b0] sm:$0xff] %vm638, 0.0
          %694 = vst.msk [vmem:[#allocation2 + $0x1b8] sm:$0xff] %vm638, 0.0
          %695 = vst.msk [vmem:[#allocation2 + $0x1c0] sm:$0xff] %vm638, 0.0
          %696 = vst.msk [vmem:[#allocation2 + $0x1c8] sm:$0xff] %vm638, 0.0
          %697 = vst.msk [vmem:[#allocation2 + $0x1d0] sm:$0xff] %vm638, 0.0
          %698 = vst.msk [vmem:[#allocation2 + $0x1d8] sm:$0xff] %vm638, 0.0
          %699 = vst.msk [vmem:[#allocation2 + $0x1e0] sm:$0xff] %vm638, 0.0
          %700 = vst.msk [vmem:[#allocation2 + $0x1e8] sm:$0xff] %vm638, 0.0
          %701 = vst.msk [vmem:[#allocation2 + $0x1f0] sm:$0xff] %vm638, 0.0
          %702 = vst.msk [vmem:[#allocation2 + $0x1f8] sm:$0xff] %vm638, 0.0
          %703 = vst.msk [vmem:[#allocation2 + $0x200] sm:$0xff] %vm638, 0.0
          %704 = vst.msk [vmem:[#allocation2 + $0x208] sm:$0xff] %vm638, 0.0
          %705 = vst.msk [vmem:[#allocation2 + $0x210] sm:$0xff] %vm638, 0.0
          %706 = vst.msk [vmem:[#allocation2 + $0x218] sm:$0xff] %vm638, 0.0
          %707 = vst.msk [vmem:[#allocation2 + $0x220] sm:$0xff] %vm638, 0.0
          %708 = vst.msk [vmem:[#allocation2 + $0x228] sm:$0xff] %vm638, 0.0
          %709 = vst.msk [vmem:[#allocation2 + $0x230] sm:$0xff] %vm638, 0.0
          %710 = vst.msk [vmem:[#allocation2 + $0x238] sm:$0xff] %vm638, 0.0
        $region60: #{tpu_custom_call.1} parent=47 // pred_fallthru
          _
        %s711 = scalar_lea.vmem [#allocation2], 32
        %vm712 = vcmask 261120
        %713 = vst.msk [vmem:[%s711 + $0x8] sm:$0xff] %vm712, %v602
        %714 = vst.msk [vmem:[%s711 + $0x10] sm:$0xff] %vm712, %v603
        %715 = vst.msk [vmem:[%s711 + $0x28] sm:$0xff] %vm712, %v604
        %716 = vst.msk [vmem:[%s711 + $0x30] sm:$0xff] %vm712, %v605
        %717 = vst.msk [vmem:[%s711 + $0x48] sm:$0xff] %vm712, %v606
        %718 = vst.msk [vmem:[%s711 + $0x50] sm:$0xff] %vm712, %v607
        %719 = vst.msk [vmem:[%s711 + $0x68] sm:$0xff] %vm712, %v608
        %720 = vst.msk [vmem:[%s711 + $0x70] sm:$0xff] %vm712, %v609
        %721 = vst.msk [vmem:[%s711 + $0x88] sm:$0xff] %vm712, %v610
        %722 = vst.msk [vmem:[%s711 + $0x90] sm:$0xff] %vm712, %v611
        %723 = vst.msk [vmem:[%s711 + $0xa8] sm:$0xff] %vm712, %v612
        %724 = vst.msk [vmem:[%s711 + $0xb0] sm:$0xff] %vm712, %v613
        %725 = vst.msk [vmem:[%s711 + $0xc8] sm:$0xff] %vm712, %v614
        %726 = vst.msk [vmem:[%s711 + $0xd0] sm:$0xff] %vm712, %v615
        %727 = vst.msk [vmem:[%s711 + $0xe8] sm:$0xff] %vm712, %v616
        %728 = vst.msk [vmem:[%s711 + $0xf0] sm:$0xff] %vm712, %v617
        %729 = vst.msk [vmem:[%s711 + $0x108] sm:$0xff] %vm712, %v618
        %730 = vst.msk [vmem:[%s711 + $0x110] sm:$0xff] %vm712, %v619
        %731 = vst.msk [vmem:[%s711 + $0x128] sm:$0xff] %vm712, %v620
        %732 = vst.msk [vmem:[%s711 + $0x130] sm:$0xff] %vm712, %v621
        %733 = vst.msk [vmem:[%s711 + $0x148] sm:$0xff] %vm712, %v622
        %734 = vst.msk [vmem:[%s711 + $0x150] sm:$0xff] %vm712, %v623
        %735 = vst.msk [vmem:[%s711 + $0x168] sm:$0xff] %vm712, %v624
        %736 = vst.msk [vmem:[%s711 + $0x170] sm:$0xff] %vm712, %v625
        %737 = vst.msk [vmem:[%s711 + $0x188] sm:$0xff] %vm712, %v626
        %738 = vst.msk [vmem:[%s711 + $0x190] sm:$0xff] %vm712, %v627
        %739 = vst.msk [vmem:[%s711 + $0x1a8] sm:$0xff] %vm712, %v628
        %740 = vst.msk [vmem:[%s711 + $0x1b0] sm:$0xff] %vm712, %v629
        %741 = vst.msk [vmem:[%s711 + $0x1c8] sm:$0xff] %vm712, %v630
        %742 = vst.msk [vmem:[%s711 + $0x1d0] sm:$0xff] %vm712, %v631
        %743 = vst.msk [vmem:[%s711 + $0x1e8] sm:$0xff] %vm712, %v632
        %744 = vst.msk [vmem:[%s711 + $0x1f0] sm:$0xff] %vm712, %v633
        %v745 = vld [vmem:[#allocation2 + $0x7] sm:$0xff]
        %v746 = vld [vmem:[#allocation2 + $0xf] sm:$0xff]
        %v747 = vld [vmem:[#allocation2 + $0x27] sm:$0xff]
        %v748 = vld [vmem:[#allocation2 + $0x2f] sm:$0xff]
        %v749 = vld [vmem:[#allocation2 + $0x47] sm:$0xff]
        %v750 = vld [vmem:[#allocation2 + $0x4f] sm:$0xff]
        %v751 = vld [vmem:[#allocation2 + $0x67] sm:$0xff]
        %v752 = vld [vmem:[#allocation2 + $0x6f] sm:$0xff]
        %v753 = vld [vmem:[#allocation2 + $0x87] sm:$0xff]
        %v754 = vld [vmem:[#allocation2 + $0x8f] sm:$0xff]
        %v755 = vld [vmem:[#allocation2 + $0xa7] sm:$0xff]
        %v756 = vld [vmem:[#allocation2 + $0xaf] sm:$0xff]
        %v757 = vld [vmem:[#allocation2 + $0xc7] sm:$0xff]
        %v758 = vld [vmem:[#allocation2 + $0xcf] sm:$0xff]
        %v759 = vld [vmem:[#allocation2 + $0xe7] sm:$0xff]
        %v760 = vld [vmem:[#allocation2 + $0xef] sm:$0xff]
        %v761 = vld [vmem:[#allocation2 + $0x107] sm:$0xff]
        %v762 = vld [vmem:[#allocation2 + $0x10f] sm:$0xff]
        %v763 = vld [vmem:[#allocation2 + $0x127] sm:$0xff]
        %v764 = vld [vmem:[#allocation2 + $0x12f] sm:$0xff]
        %v765 = vld [vmem:[#allocation2 + $0x147] sm:$0xff]
        %v766 = vld [vmem:[#allocation2 + $0x14f] sm:$0xff]
        %v767 = vld [vmem:[#allocation2 + $0x167] sm:$0xff]
        %v768 = vld [vmem:[#allocation2 + $0x16f] sm:$0xff]
        %v769 = vld [vmem:[#allocation2 + $0x187] sm:$0xff]
        %v770 = vld [vmem:[#allocation2 + $0x18f] sm:$0xff]
        %v771 = vld [vmem:[#allocation2 + $0x1a7] sm:$0xff]
        %v772 = vld [vmem:[#allocation2 + $0x1af] sm:$0xff]
        %v773 = vld [vmem:[#allocation2 + $0x1c7] sm:$0xff]
        %v774 = vld [vmem:[#allocation2 + $0x1cf] sm:$0xff]
        %v775 = vld [vmem:[#allocation2 + $0x1e7] sm:$0xff]
        %v776 = vld [vmem:[#allocation2 + $0x1ef] sm:$0xff]
        %v777 = vpack.c.bf16 %v746, %v745
        %v778 = vpack.c.bf16 %v748, %v747
        %v779 = vpack.c.bf16 %v750, %v749
        %v780 = vpack.c.bf16 %v752, %v751
        %v781 = vpack.c.bf16 %v754, %v753
        %v782 = vpack.c.bf16 %v756, %v755
        %v783 = vpack.c.bf16 %v758, %v757
        %v784 = vpack.c.bf16 %v760, %v759
        %v785 = vpack.c.bf16 %v762, %v761
        %v786 = vpack.c.bf16 %v764, %v763
        %v787 = vpack.c.bf16 %v766, %v765
        %v788 = vpack.c.bf16 %v768, %v767
        %v789 = vpack.c.bf16 %v770, %v769
        %v790 = vpack.c.bf16 %v772, %v771
        %v791 = vpack.c.bf16 %v774, %v773
        %v792 = vpack.c.bf16 %v776, %v775
        %v793 = vld [vmem:[#allocation6] sm:$0xf]
        %v794 = vld [vmem:[#allocation6 + $0x4] sm:$0xf]
        %v795 = vld [vmem:[#allocation6 + $0x8] sm:$0xf]
        %v796 = vld [vmem:[#allocation6 + $0xc] sm:$0xf]
        %v797 = vld [vmem:[#allocation2 + $0x8] sm:$0xff]
        %v798 = vld [vmem:[#allocation2 + $0x10] sm:$0xff]
        %v799 = vld [vmem:[#allocation2 + $0x28] sm:$0xff]
        %v800 = vld [vmem:[#allocation2 + $0x30] sm:$0xff]
        %v801 = vld [vmem:[#allocation2 + $0x48] sm:$0xff]
        %v802 = vld [vmem:[#allocation2 + $0x50] sm:$0xff]
        %v803 = vld [vmem:[#allocation2 + $0x68] sm:$0xff]
        %v804 = vld [vmem:[#allocation2 + $0x70] sm:$0xff]
        %v805 = vld [vmem:[#allocation2 + $0x88] sm:$0xff]
        %v806 = vld [vmem:[#allocation2 + $0x90] sm:$0xff]
        %v807 = vld [vmem:[#allocation2 + $0xa8] sm:$0xff]
        %v808 = vld [vmem:[#allocation2 + $0xb0] sm:$0xff]
        %v809 = vld [vmem:[#allocation2 + $0xc8] sm:$0xff]
        %v810 = vld [vmem:[#allocation2 + $0xd0] sm:$0xff]
        %v811 = vld [vmem:[#allocation2 + $0xe8] sm:$0xff]
        %v812 = vld [vmem:[#allocation2 + $0xf0] sm:$0xff]
        %v813 = vld [vmem:[#allocation2 + $0x108] sm:$0xff]
        %v814 = vld [vmem:[#allocation2 + $0x110] sm:$0xff]
        %v815 = vld [vmem:[#allocation2 + $0x128] sm:$0xff]
        %v816 = vld [vmem:[#allocation2 + $0x130] sm:$0xff]
        %v817 = vld [vmem:[#allocation2 + $0x148] sm:$0xff]
        %v818 = vld [vmem:[#allocation2 + $0x150] sm:$0xff]
        %v819 = vld [vmem:[#allocation2 + $0x168] sm:$0xff]
        %v820 = vld [vmem:[#allocation2 + $0x170] sm:$0xff]
        %v821 = vld [vmem:[#allocation2 + $0x188] sm:$0xff]
        %v822 = vld [vmem:[#allocation2 + $0x190] sm:$0xff]
        %v823 = vld [vmem:[#allocation2 + $0x1a8] sm:$0xff]
        %v824 = vld [vmem:[#allocation2 + $0x1b0] sm:$0xff]
        %v825 = vld [vmem:[#allocation2 + $0x1c8] sm:$0xff]
        %v826 = vld [vmem:[#allocation2 + $0x1d0] sm:$0xff]
        %v827 = vld [vmem:[#allocation2 + $0x1e8] sm:$0xff]
        %v828 = vld [vmem:[#allocation2 + $0x1f0] sm:$0xff]
        %v829 = vpack.c.bf16 %v798, %v797
        %v830 = vpack.c.bf16 %v800, %v799
        %v831 = vpack.c.bf16 %v802, %v801
        %v832 = vpack.c.bf16 %v804, %v803
        %v833 = vpack.c.bf16 %v806, %v805
        %v834 = vpack.c.bf16 %v808, %v807
        %v835 = vpack.c.bf16 %v810, %v809
        %v836 = vpack.c.bf16 %v812, %v811
        %v837 = vpack.c.bf16 %v814, %v813
        %v838 = vpack.c.bf16 %v816, %v815
        %v839 = vpack.c.bf16 %v818, %v817
        %v840 = vpack.c.bf16 %v820, %v819
        %v841 = vpack.c.bf16 %v822, %v821
        %v842 = vpack.c.bf16 %v824, %v823
        %v843 = vpack.c.bf16 %v826, %v825
        %v844 = vpack.c.bf16 %v828, %v827
        %s845 = scalar_lea.vmem [#allocation6], 16
        %v846 = vld [vmem:[%s845] sm:$0xf]
        %v847 = vld [vmem:[%s845 + $0x4] sm:$0xf]
        %v848 = vld [vmem:[%s845 + $0x8] sm:$0xf]
        %v849 = vld [vmem:[%s845 + $0xc] sm:$0xf]
        %v854 = vunpack.c.l.b16 %v846
        %v855 = vunpack.c.l.b16 %v847
        %v856 = vunpack.c.l.b16 %v848
        %v857 = vunpack.c.l.b16 %v849
        %v858 = vpack.c.b16 %v855, %v854
        %v859 = vpack.c.b16 %v857, %v856
        %v863 = vsel %vm712, %v829, 0
        %v866 = vsel %vm712, %v830, 0
        %v869 = vsel %vm712, %v831, 0
        %v872 = vsel %vm712, %v832, 0
        %v875 = vsel %vm712, %v833, 0
        %v878 = vsel %vm712, %v834, 0
        %v881 = vsel %vm712, %v835, 0
        %v884 = vsel %vm712, %v836, 0
        %v887 = vsel %vm712, %v837, 0
        %v890 = vsel %vm712, %v838, 0
        %v893 = vsel %vm712, %v839, 0
        %v896 = vsel %vm712, %v840, 0
        %v899 = vsel %vm712, %v841, 0
        %v902 = vsel %vm712, %v842, 0
        %v905 = vsel %vm712, %v843, 0
        %v908 = vsel %vm712, %v844, 0
        %910 = vmatpush.bf16.msra.mxu0 0
        %911 = vmatpush.bf16.msra.mxu0 0
        %912 = vmatpush.bf16.msra.mxu0 0
        %913 = vmatpush.bf16.msra.mxu0 0
        %914 = vmatpush.bf16.msra.mxu0 0
        %915 = vmatpush.bf16.msra.mxu0 0
        %916 = vmatpush.bf16.msra.mxu0 %v859
        %917 = vmatpush.bf16.msra.mxu0 %v858
        %918 = vmatmul.bf16.gmra.mxu0 %v863
        %v919 = vpop.f32.mrf.mxu0
        %v920 = vadd.f32 0.0, %v919
        %v921 = vpop.f32.mrf.mxu0
        %v922 = vadd.f32 0.0, %v921
        %923 = vmatmul.bf16.gmra.mxu0 %v866
        %v924 = vpop.f32.mrf.mxu0
        %v925 = vadd.f32 0.0, %v924
        %v926 = vpop.f32.mrf.mxu0
        %v927 = vadd.f32 0.0, %v926
        %928 = vmatmul.bf16.gmra.mxu0 %v869
        %v929 = vpop.f32.mrf.mxu0
        %v930 = vadd.f32 0.0, %v929
        %v931 = vpop.f32.mrf.mxu0
        %v932 = vadd.f32 0.0, %v931
        %933 = vmatmul.bf16.gmra.mxu0 %v872
        %v934 = vpop.f32.mrf.mxu0
        %v935 = vadd.f32 0.0, %v934
        %v936 = vpop.f32.mrf.mxu0
        %v937 = vadd.f32 0.0, %v936
        %938 = vmatmul.bf16.gmra.mxu0 %v875
        %v939 = vpop.f32.mrf.mxu0
        %v940 = vadd.f32 0.0, %v939
        %v941 = vpop.f32.mrf.mxu0
        %v942 = vadd.f32 0.0, %v941
        %943 = vmatmul.bf16.gmra.mxu0 %v878
        %v944 = vpop.f32.mrf.mxu0
        %v945 = vadd.f32 0.0, %v944
        %v946 = vpop.f32.mrf.mxu0
        %v947 = vadd.f32 0.0, %v946
        %948 = vmatmul.bf16.gmra.mxu0 %v881
        %v949 = vpop.f32.mrf.mxu0
        %v950 = vadd.f32 0.0, %v949
        %v951 = vpop.f32.mrf.mxu0
        %v952 = vadd.f32 0.0, %v951
        %953 = vmatmul.bf16.gmra.mxu0 %v884
        %v954 = vpop.f32.mrf.mxu0
        %v955 = vadd.f32 0.0, %v954
        %v956 = vpop.f32.mrf.mxu0
        %v957 = vadd.f32 0.0, %v956
        %958 = vmatmul.bf16.gmra.mxu0 %v887
        %v959 = vpop.f32.mrf.mxu0
        %v960 = vadd.f32 0.0, %v959
        %v961 = vpop.f32.mrf.mxu0
        %v962 = vadd.f32 0.0, %v961
        %963 = vmatmul.bf16.gmra.mxu0 %v890
        %v964 = vpop.f32.mrf.mxu0
        %v965 = vadd.f32 0.0, %v964
        %v966 = vpop.f32.mrf.mxu0
        %v967 = vadd.f32 0.0, %v966
        %968 = vmatmul.bf16.gmra.mxu0 %v893
        %v969 = vpop.f32.mrf.mxu0
        %v970 = vadd.f32 0.0, %v969
        %v971 = vpop.f32.mrf.mxu0
        %v972 = vadd.f32 0.0, %v971
        %973 = vmatmul.bf16.gmra.mxu0 %v896
        %v974 = vpop.f32.mrf.mxu0
        %v975 = vadd.f32 0.0, %v974
        %v976 = vpop.f32.mrf.mxu0
        %v977 = vadd.f32 0.0, %v976
        %978 = vmatmul.bf16.gmra.mxu0 %v899
        %v979 = vpop.f32.mrf.mxu0
        %v980 = vadd.f32 0.0, %v979
        %v981 = vpop.f32.mrf.mxu0
        %v982 = vadd.f32 0.0, %v981
        %983 = vmatmul.bf16.gmra.mxu0 %v902
        %v984 = vpop.f32.mrf.mxu0
        %v985 = vadd.f32 0.0, %v984
        %v986 = vpop.f32.mrf.mxu0
        %v987 = vadd.f32 0.0, %v986
        %988 = vmatmul.bf16.gmra.mxu0 %v905
        %v989 = vpop.f32.mrf.mxu0
        %v990 = vadd.f32 0.0, %v989
        %v991 = vpop.f32.mrf.mxu0
        %v992 = vadd.f32 0.0, %v991
        %993 = vmatmul.bf16.gmra.mxu0 %v908
        %v994 = vpop.f32.mrf.mxu0
        %v995 = vadd.f32 0.0, %v994
        %v996 = vpop.f32.mrf.mxu0
        %v997 = vadd.f32 0.0, %v996
        %998 = vdwg.mxu0
        %v1003 = vunpack.c.l.b16 %v793
        %v1004 = vunpack.c.l.b16 %v794
        %v1005 = vunpack.c.l.b16 %v795
        %v1006 = vunpack.c.l.b16 %v796
        %v1007 = vpack.c.b16 %v1004, %v1003
        %v1008 = vpack.c.b16 %v1006, %v1005
        %v1012 = vsel %vm712, %v777, 0
        %v1015 = vsel %vm712, %v778, 0
        %v1018 = vsel %vm712, %v779, 0
        %v1021 = vsel %vm712, %v780, 0
        %v1024 = vsel %vm712, %v781, 0
        %v1027 = vsel %vm712, %v782, 0
        %v1030 = vsel %vm712, %v783, 0
        %v1033 = vsel %vm712, %v784, 0
        %v1036 = vsel %vm712, %v785, 0
        %v1039 = vsel %vm712, %v786, 0
        %v1042 = vsel %vm712, %v787, 0
        %v1045 = vsel %vm712, %v788, 0
        %v1048 = vsel %vm712, %v789, 0
        %v1051 = vsel %vm712, %v790, 0
        %v1054 = vsel %vm712, %v791, 0
        %v1057 = vsel %vm712, %v792, 0
        %1059 = vmatpush.bf16.msra.mxu0 0
        %1060 = vmatpush.bf16.msra.mxu0 0
        %1061 = vmatpush.bf16.msra.mxu0 0
        %1062 = vmatpush.bf16.msra.mxu0 0
        %1063 = vmatpush.bf16.msra.mxu0 0
        %1064 = vmatpush.bf16.msra.mxu0 0
        %1065 = vmatpush.bf16.msra.mxu0 %v1008
        %1066 = vmatpush.bf16.msra.mxu0 %v1007
        %1067 = vmatmul.bf16.gmra.mxu0 %v1012
        %v1068 = vpop.f32.mrf.mxu0
        %v1069 = vadd.f32 %v920, %v1068
        %v1070 = vpop.f32.mrf.mxu0
        %v1071 = vadd.f32 %v922, %v1070
        %1072 = vmatmul.bf16.gmra.mxu0 %v1015
        %v1073 = vpop.f32.mrf.mxu0
        %v1074 = vadd.f32 %v925, %v1073
        %v1075 = vpop.f32.mrf.mxu0
        %v1076 = vadd.f32 %v927, %v1075
        %1077 = vmatmul.bf16.gmra.mxu0 %v1018
        %v1078 = vpop.f32.mrf.mxu0
        %v1079 = vadd.f32 %v930, %v1078
        %v1080 = vpop.f32.mrf.mxu0
        %v1081 = vadd.f32 %v932, %v1080
        %1082 = vmatmul.bf16.gmra.mxu0 %v1021
        %v1083 = vpop.f32.mrf.mxu0
        %v1084 = vadd.f32 %v935, %v1083
        %v1085 = vpop.f32.mrf.mxu0
        %v1086 = vadd.f32 %v937, %v1085
        %1087 = vmatmul.bf16.gmra.mxu0 %v1024
        %v1088 = vpop.f32.mrf.mxu0
        %v1089 = vadd.f32 %v940, %v1088
        %v1090 = vpop.f32.mrf.mxu0
        %v1091 = vadd.f32 %v942, %v1090
        %1092 = vmatmul.bf16.gmra.mxu0 %v1027
        %v1093 = vpop.f32.mrf.mxu0
        %v1094 = vadd.f32 %v945, %v1093
        %v1095 = vpop.f32.mrf.mxu0
        %v1096 = vadd.f32 %v947, %v1095
        %1097 = vmatmul.bf16.gmra.mxu0 %v1030
        %v1098 = vpop.f32.mrf.mxu0
        %v1099 = vadd.f32 %v950, %v1098
        %v1100 = vpop.f32.mrf.mxu0
        %v1101 = vadd.f32 %v952, %v1100
        %1102 = vmatmul.bf16.gmra.mxu0 %v1033
        %v1103 = vpop.f32.mrf.mxu0
        %v1104 = vadd.f32 %v955, %v1103
        %v1105 = vpop.f32.mrf.mxu0
        %v1106 = vadd.f32 %v957, %v1105
        %1107 = vmatmul.bf16.gmra.mxu0 %v1036
        %v1108 = vpop.f32.mrf.mxu0
        %v1109 = vadd.f32 %v960, %v1108
        %v1110 = vpop.f32.mrf.mxu0
        %v1111 = vadd.f32 %v962, %v1110
        %1112 = vmatmul.bf16.gmra.mxu0 %v1039
        %v1113 = vpop.f32.mrf.mxu0
        %v1114 = vadd.f32 %v965, %v1113
        %v1115 = vpop.f32.mrf.mxu0
        %v1116 = vadd.f32 %v967, %v1115
        %1117 = vmatmul.bf16.gmra.mxu0 %v1042
        %v1118 = vpop.f32.mrf.mxu0
        %v1119 = vadd.f32 %v970, %v1118
        %v1120 = vpop.f32.mrf.mxu0
        %v1121 = vadd.f32 %v972, %v1120
        %1122 = vmatmul.bf16.gmra.mxu0 %v1045
        %v1123 = vpop.f32.mrf.mxu0
        %v1124 = vadd.f32 %v975, %v1123
        %v1125 = vpop.f32.mrf.mxu0
        %v1126 = vadd.f32 %v977, %v1125
        %1127 = vmatmul.bf16.gmra.mxu0 %v1048
        %v1128 = vpop.f32.mrf.mxu0
        %v1129 = vadd.f32 %v980, %v1128
        %v1130 = vpop.f32.mrf.mxu0
        %v1131 = vadd.f32 %v982, %v1130
        %1132 = vmatmul.bf16.gmra.mxu0 %v1051
        %v1133 = vpop.f32.mrf.mxu0
        %v1134 = vadd.f32 %v985, %v1133
        %v1135 = vpop.f32.mrf.mxu0
        %v1136 = vadd.f32 %v987, %v1135
        %1137 = vmatmul.bf16.gmra.mxu0 %v1054
        %v1138 = vpop.f32.mrf.mxu0
        %v1139 = vadd.f32 %v990, %v1138
        %v1140 = vpop.f32.mrf.mxu0
        %v1141 = vadd.f32 %v992, %v1140
        %1142 = vmatmul.bf16.gmra.mxu0 %v1057
        %v1143 = vpop.f32.mrf.mxu0
        %v1144 = vadd.f32 %v995, %v1143
        %v1145 = vpop.f32.mrf.mxu0
        %v1146 = vadd.f32 %v997, %v1145
        %1147 = vdwg.mxu0
        %v1148 = vld [vmem:[#allocation2 + $0x9] sm:$0xff]
        %v1149 = vld [vmem:[#allocation2 + $0x11] sm:$0xff]
        %v1150 = vld [vmem:[#allocation2 + $0x29] sm:$0xff]
        %v1151 = vld [vmem:[#allocation2 + $0x31] sm:$0xff]
        %v1152 = vld [vmem:[#allocation2 + $0x49] sm:$0xff]
        %v1153 = vld [vmem:[#allocation2 + $0x51] sm:$0xff]
        %v1154 = vld [vmem:[#allocation2 + $0x69] sm:$0xff]
        %v1155 = vld [vmem:[#allocation2 + $0x71] sm:$0xff]
        %v1156 = vld [vmem:[#allocation2 + $0x89] sm:$0xff]
        %v1157 = vld [vmem:[#allocation2 + $0x91] sm:$0xff]
        %v1158 = vld [vmem:[#allocation2 + $0xa9] sm:$0xff]
        %v1159 = vld [vmem:[#allocation2 + $0xb1] sm:$0xff]
        %v1160 = vld [vmem:[#allocation2 + $0xc9] sm:$0xff]
        %v1161 = vld [vmem:[#allocation2 + $0xd1] sm:$0xff]
        %v1162 = vld [vmem:[#allocation2 + $0xe9] sm:$0xff]
        %v1163 = vld [vmem:[#allocation2 + $0xf1] sm:$0xff]
        %v1164 = vld [vmem:[#allocation2 + $0x109] sm:$0xff]
        %v1165 = vld [vmem:[#allocation2 + $0x111] sm:$0xff]
        %v1166 = vld [vmem:[#allocation2 + $0x129] sm:$0xff]
        %v1167 = vld [vmem:[#allocation2 + $0x131] sm:$0xff]
        %v1168 = vld [vmem:[#allocation2 + $0x149] sm:$0xff]
        %v1169 = vld [vmem:[#allocation2 + $0x151] sm:$0xff]
        %v1170 = vld [vmem:[#allocation2 + $0x169] sm:$0xff]
        %v1171 = vld [vmem:[#allocation2 + $0x171] sm:$0xff]
        %v1172 = vld [vmem:[#allocation2 + $0x189] sm:$0xff]
        %v1173 = vld [vmem:[#allocation2 + $0x191] sm:$0xff]
        %v1174 = vld [vmem:[#allocation2 + $0x1a9] sm:$0xff]
        %v1175 = vld [vmem:[#allocation2 + $0x1b1] sm:$0xff]
        %v1176 = vld [vmem:[#allocation2 + $0x1c9] sm:$0xff]
        %v1177 = vld [vmem:[#allocation2 + $0x1d1] sm:$0xff]
        %v1178 = vld [vmem:[#allocation2 + $0x1e9] sm:$0xff]
        %v1179 = vld [vmem:[#allocation2 + $0x1f1] sm:$0xff]
        %v1180 = vpack.c.bf16 %v1149, %v1148
        %v1181 = vpack.c.bf16 %v1151, %v1150
        %v1182 = vpack.c.bf16 %v1153, %v1152
        %v1183 = vpack.c.bf16 %v1155, %v1154
        %v1184 = vpack.c.bf16 %v1157, %v1156
        %v1185 = vpack.c.bf16 %v1159, %v1158
        %v1186 = vpack.c.bf16 %v1161, %v1160
        %v1187 = vpack.c.bf16 %v1163, %v1162
        %v1188 = vpack.c.bf16 %v1165, %v1164
        %v1189 = vpack.c.bf16 %v1167, %v1166
        %v1190 = vpack.c.bf16 %v1169, %v1168
        %v1191 = vpack.c.bf16 %v1171, %v1170
        %v1192 = vpack.c.bf16 %v1173, %v1172
        %v1193 = vpack.c.bf16 %v1175, %v1174
        %v1194 = vpack.c.bf16 %v1177, %v1176
        %v1195 = vpack.c.bf16 %v1179, %v1178
        %s1196 = scalar_lea.vmem [#allocation6], 32
        %v1197 = vld [vmem:[%s1196] sm:$0xf]
        %v1198 = vld [vmem:[%s1196 + $0x4] sm:$0xf]
        %v1199 = vld [vmem:[%s1196 + $0x8] sm:$0xf]
        %v1200 = vld [vmem:[%s1196 + $0xc] sm:$0xf]
        %v1205 = vunpack.c.l.b16 %v1197
        %v1206 = vunpack.c.l.b16 %v1198
        %v1207 = vunpack.c.l.b16 %v1199
        %v1208 = vunpack.c.l.b16 %v1200
        %v1209 = vpack.c.b16 %v1206, %v1205
        %v1210 = vpack.c.b16 %v1208, %v1207
        %v1214 = vsel %vm712, %v1180, 0
        %v1217 = vsel %vm712, %v1181, 0
        %v1220 = vsel %vm712, %v1182, 0
        %v1223 = vsel %vm712, %v1183, 0
        %v1226 = vsel %vm712, %v1184, 0
        %v1229 = vsel %vm712, %v1185, 0
        %v1232 = vsel %vm712, %v1186, 0
        %v1235 = vsel %vm712, %v1187, 0
        %v1238 = vsel %vm712, %v1188, 0
        %v1241 = vsel %vm712, %v1189, 0
        %v1244 = vsel %vm712, %v1190, 0
        %v1247 = vsel %vm712, %v1191, 0
        %v1250 = vsel %vm712, %v1192, 0
        %v1253 = vsel %vm712, %v1193, 0
        %v1256 = vsel %vm712, %v1194, 0
        %v1259 = vsel %vm712, %v1195, 0
        %1261 = vmatpush.bf16.msra.mxu0 0
        %1262 = vmatpush.bf16.msra.mxu0 0
        %1263 = vmatpush.bf16.msra.mxu0 0
        %1264 = vmatpush.bf16.msra.mxu0 0
        %1265 = vmatpush.bf16.msra.mxu0 0
        %1266 = vmatpush.bf16.msra.mxu0 0
        %1267 = vmatpush.bf16.msra.mxu0 %v1210
        %1268 = vmatpush.bf16.msra.mxu0 %v1209
        %1269 = vmatmul.bf16.gmra.mxu0 %v1214
        %v1270 = vpop.f32.mrf.mxu0
        %v1271 = vadd.f32 0.0, %v1270
        %v1272 = vpop.f32.mrf.mxu0
        %v1273 = vadd.f32 0.0, %v1272
        %1274 = vmatmul.bf16.gmra.mxu0 %v1217
        %v1275 = vpop.f32.mrf.mxu0
        %v1276 = vadd.f32 0.0, %v1275
        %v1277 = vpop.f32.mrf.mxu0
        %v1278 = vadd.f32 0.0, %v1277
        %1279 = vmatmul.bf16.gmra.mxu0 %v1220
        %v1280 = vpop.f32.mrf.mxu0
        %v1281 = vadd.f32 0.0, %v1280
        %v1282 = vpop.f32.mrf.mxu0
        %v1283 = vadd.f32 0.0, %v1282
        %1284 = vmatmul.bf16.gmra.mxu0 %v1223
        %v1285 = vpop.f32.mrf.mxu0
        %v1286 = vadd.f32 0.0, %v1285
        %v1287 = vpop.f32.mrf.mxu0
        %v1288 = vadd.f32 0.0, %v1287
        %1289 = vmatmul.bf16.gmra.mxu0 %v1226
        %v1290 = vpop.f32.mrf.mxu0
        %v1291 = vadd.f32 0.0, %v1290
        %v1292 = vpop.f32.mrf.mxu0
        %v1293 = vadd.f32 0.0, %v1292
        %1294 = vmatmul.bf16.gmra.mxu0 %v1229
        %v1295 = vpop.f32.mrf.mxu0
        %v1296 = vadd.f32 0.0, %v1295
        %v1297 = vpop.f32.mrf.mxu0
        %v1298 = vadd.f32 0.0, %v1297
        %1299 = vmatmul.bf16.gmra.mxu0 %v1232
        %v1300 = vpop.f32.mrf.mxu0
        %v1301 = vadd.f32 0.0, %v1300
        %v1302 = vpop.f32.mrf.mxu0
        %v1303 = vadd.f32 0.0, %v1302
        %1304 = vmatmul.bf16.gmra.mxu0 %v1235
        %v1305 = vpop.f32.mrf.mxu0
        %v1306 = vadd.f32 0.0, %v1305
        %v1307 = vpop.f32.mrf.mxu0
        %v1308 = vadd.f32 0.0, %v1307
        %1309 = vmatmul.bf16.gmra.mxu0 %v1238
        %v1310 = vpop.f32.mrf.mxu0
        %v1311 = vadd.f32 0.0, %v1310
        %v1312 = vpop.f32.mrf.mxu0
        %v1313 = vadd.f32 0.0, %v1312
        %1314 = vmatmul.bf16.gmra.mxu0 %v1241
        %v1315 = vpop.f32.mrf.mxu0
        %v1316 = vadd.f32 0.0, %v1315
        %v1317 = vpop.f32.mrf.mxu0
        %v1318 = vadd.f32 0.0, %v1317
        %1319 = vmatmul.bf16.gmra.mxu0 %v1244
        %v1320 = vpop.f32.mrf.mxu0
        %v1321 = vadd.f32 0.0, %v1320
        %v1322 = vpop.f32.mrf.mxu0
        %v1323 = vadd.f32 0.0, %v1322
        %1324 = vmatmul.bf16.gmra.mxu0 %v1247
        %v1325 = vpop.f32.mrf.mxu0
        %v1326 = vadd.f32 0.0, %v1325
        %v1327 = vpop.f32.mrf.mxu0
        %v1328 = vadd.f32 0.0, %v1327
        %1329 = vmatmul.bf16.gmra.mxu0 %v1250
        %v1330 = vpop.f32.mrf.mxu0
        %v1331 = vadd.f32 0.0, %v1330
        %v1332 = vpop.f32.mrf.mxu0
        %v1333 = vadd.f32 0.0, %v1332
        %1334 = vmatmul.bf16.gmra.mxu0 %v1253
        %v1335 = vpop.f32.mrf.mxu0
        %v1336 = vadd.f32 0.0, %v1335
        %v1337 = vpop.f32.mrf.mxu0
        %v1338 = vadd.f32 0.0, %v1337
        %1339 = vmatmul.bf16.gmra.mxu0 %v1256
        %v1340 = vpop.f32.mrf.mxu0
        %v1341 = vadd.f32 0.0, %v1340
        %v1342 = vpop.f32.mrf.mxu0
        %v1343 = vadd.f32 0.0, %v1342
        %1344 = vmatmul.bf16.gmra.mxu0 %v1259
        %v1345 = vpop.f32.mrf.mxu0
        %v1346 = vadd.f32 0.0, %v1345
        %v1347 = vpop.f32.mrf.mxu0
        %v1348 = vadd.f32 0.0, %v1347
        %1349 = vdwg.mxu0
        %v1350 = vadd.f32 %v1069, %v1271
        %v1351 = vadd.f32 %v1071, %v1273
        %v1352 = vadd.f32 %v1074, %v1276
        %v1353 = vadd.f32 %v1076, %v1278
        %v1354 = vadd.f32 %v1079, %v1281
        %v1355 = vadd.f32 %v1081, %v1283
        %v1356 = vadd.f32 %v1084, %v1286
        %v1357 = vadd.f32 %v1086, %v1288
        %v1358 = vadd.f32 %v1089, %v1291
        %v1359 = vadd.f32 %v1091, %v1293
        %v1360 = vadd.f32 %v1094, %v1296
        %v1361 = vadd.f32 %v1096, %v1298
        %v1362 = vadd.f32 %v1099, %v1301
        %v1363 = vadd.f32 %v1101, %v1303
        %v1364 = vadd.f32 %v1104, %v1306
        %v1365 = vadd.f32 %v1106, %v1308
        %v1366 = vadd.f32 %v1109, %v1311
        %v1367 = vadd.f32 %v1111, %v1313
        %v1368 = vadd.f32 %v1114, %v1316
        %v1369 = vadd.f32 %v1116, %v1318
        %v1370 = vadd.f32 %v1119, %v1321
        %v1371 = vadd.f32 %v1121, %v1323
        %v1372 = vadd.f32 %v1124, %v1326
        %v1373 = vadd.f32 %v1126, %v1328
        %v1374 = vadd.f32 %v1129, %v1331
        %v1375 = vadd.f32 %v1131, %v1333
        %v1376 = vadd.f32 %v1134, %v1336
        %v1377 = vadd.f32 %v1136, %v1338
        %v1378 = vadd.f32 %v1139, %v1341
        %v1379 = vadd.f32 %v1141, %v1343
        %v1380 = vadd.f32 %v1144, %v1346
        %v1381 = vadd.f32 %v1146, %v1348
        %v1382 = vld [vmem:[%s711 + $0x7] sm:$0xff]
        %v1383 = vld [vmem:[%s711 + $0xf] sm:$0xff]
        %v1384 = vld [vmem:[%s711 + $0x27] sm:$0xff]
        %v1385 = vld [vmem:[%s711 + $0x2f] sm:$0xff]
        %v1386 = vld [vmem:[%s711 + $0x47] sm:$0xff]
        %v1387 = vld [vmem:[%s711 + $0x4f] sm:$0xff]
        %v1388 = vld [vmem:[%s711 + $0x67] sm:$0xff]
        %v1389 = vld [vmem:[%s711 + $0x6f] sm:$0xff]
        %v1390 = vld [vmem:[%s711 + $0x87] sm:$0xff]
        %v1391 = vld [vmem:[%s711 + $0x8f] sm:$0xff]
        %v1392 = vld [vmem:[%s711 + $0xa7] sm:$0xff]
        %v1393 = vld [vmem:[%s711 + $0xaf] sm:$0xff]
        %v1394 = vld [vmem:[%s711 + $0xc7] sm:$0xff]
        %v1395 = vld [vmem:[%s711 + $0xcf] sm:$0xff]
        %v1396 = vld [vmem:[%s711 + $0xe7] sm:$0xff]
        %v1397 = vld [vmem:[%s711 + $0xef] sm:$0xff]
        %v1398 = vld [vmem:[%s711 + $0x107] sm:$0xff]
        %v1399 = vld [vmem:[%s711 + $0x10f] sm:$0xff]
        %v1400 = vld [vmem:[%s711 + $0x127] sm:$0xff]
        %v1401 = vld [vmem:[%s711 + $0x12f] sm:$0xff]
        %v1402 = vld [vmem:[%s711 + $0x147] sm:$0xff]
        %v1403 = vld [vmem:[%s711 + $0x14f] sm:$0xff]
        %v1404 = vld [vmem:[%s711 + $0x167] sm:$0xff]
        %v1405 = vld [vmem:[%s711 + $0x16f] sm:$0xff]
        %v1406 = vld [vmem:[%s711 + $0x187] sm:$0xff]
        %v1407 = vld [vmem:[%s711 + $0x18f] sm:$0xff]
        %v1408 = vld [vmem:[%s711 + $0x1a7] sm:$0xff]
        %v1409 = vld [vmem:[%s711 + $0x1af] sm:$0xff]
        %v1410 = vld [vmem:[%s711 + $0x1c7] sm:$0xff]
        %v1411 = vld [vmem:[%s711 + $0x1cf] sm:$0xff]
        %v1412 = vld [vmem:[%s711 + $0x1e7] sm:$0xff]
        %v1413 = vld [vmem:[%s711 + $0x1ef] sm:$0xff]
        %v1414 = vpack.c.bf16 %v1383, %v1382
        %v1415 = vpack.c.bf16 %v1385, %v1384
        %v1416 = vpack.c.bf16 %v1387, %v1386
        %v1417 = vpack.c.bf16 %v1389, %v1388
        %v1418 = vpack.c.bf16 %v1391, %v1390
        %v1419 = vpack.c.bf16 %v1393, %v1392
        %v1420 = vpack.c.bf16 %v1395, %v1394
        %v1421 = vpack.c.bf16 %v1397, %v1396
        %v1422 = vpack.c.bf16 %v1399, %v1398
        %v1423 = vpack.c.bf16 %v1401, %v1400
        %v1424 = vpack.c.bf16 %v1403, %v1402
        %v1425 = vpack.c.bf16 %v1405, %v1404
        %v1426 = vpack.c.bf16 %v1407, %v1406
        %v1427 = vpack.c.bf16 %v1409, %v1408
        %v1428 = vpack.c.bf16 %v1411, %v1410
        %v1429 = vpack.c.bf16 %v1413, %v1412
        %s1430 = scalar_lea.vmem [#allocation6], 48
        %v1431 = vld [vmem:[%s1430] sm:$0xf]
        %v1432 = vld [vmem:[%s1430 + $0x4] sm:$0xf]
        %v1433 = vld [vmem:[%s1430 + $0x8] sm:$0xf]
        %v1434 = vld [vmem:[%s1430 + $0xc] sm:$0xf]
        %v1439 = vunpack.c.l.b16 %v1431
        %v1440 = vunpack.c.l.b16 %v1432
        %v1441 = vunpack.c.l.b16 %v1433
        %v1442 = vunpack.c.l.b16 %v1434
        %v1443 = vpack.c.b16 %v1440, %v1439
        %v1444 = vpack.c.b16 %v1442, %v1441
        %v1448 = vsel %vm712, %v1414, 0
        %v1451 = vsel %vm712, %v1415, 0
        %v1454 = vsel %vm712, %v1416, 0
        %v1457 = vsel %vm712, %v1417, 0
        %v1460 = vsel %vm712, %v1418, 0
        %v1463 = vsel %vm712, %v1419, 0
        %v1466 = vsel %vm712, %v1420, 0
        %v1469 = vsel %vm712, %v1421, 0
        %v1472 = vsel %vm712, %v1422, 0
        %v1475 = vsel %vm712, %v1423, 0
        %v1478 = vsel %vm712, %v1424, 0
        %v1481 = vsel %vm712, %v1425, 0
        %v1484 = vsel %vm712, %v1426, 0
        %v1487 = vsel %vm712, %v1427, 0
        %v1490 = vsel %vm712, %v1428, 0
        %v1493 = vsel %vm712, %v1429, 0
        %1495 = vmatpush.bf16.msra.mxu0 0
        %1496 = vmatpush.bf16.msra.mxu0 0
        %1497 = vmatpush.bf16.msra.mxu0 0
        %1498 = vmatpush.bf16.msra.mxu0 0
        %1499 = vmatpush.bf16.msra.mxu0 0
        %1500 = vmatpush.bf16.msra.mxu0 0
        %1501 = vmatpush.bf16.msra.mxu0 %v1444
        %1502 = vmatpush.bf16.msra.mxu0 %v1443
        %1503 = vmatmul.bf16.gmra.mxu0 %v1448
        %v1504 = vpop.f32.mrf.mxu0
        %v1505 = vadd.f32 0.0, %v1504
        %v1506 = vpop.f32.mrf.mxu0
        %v1507 = vadd.f32 0.0, %v1506
        %1508 = vmatmul.bf16.gmra.mxu0 %v1451
        %v1509 = vpop.f32.mrf.mxu0
        %v1510 = vadd.f32 0.0, %v1509
        %v1511 = vpop.f32.mrf.mxu0
        %v1512 = vadd.f32 0.0, %v1511
        %1513 = vmatmul.bf16.gmra.mxu0 %v1454
        %v1514 = vpop.f32.mrf.mxu0
        %v1515 = vadd.f32 0.0, %v1514
        %v1516 = vpop.f32.mrf.mxu0
        %v1517 = vadd.f32 0.0, %v1516
        %1518 = vmatmul.bf16.gmra.mxu0 %v1457
        %v1519 = vpop.f32.mrf.mxu0
        %v1520 = vadd.f32 0.0, %v1519
        %v1521 = vpop.f32.mrf.mxu0
        %v1522 = vadd.f32 0.0, %v1521
        %1523 = vmatmul.bf16.gmra.mxu0 %v1460
        %v1524 = vpop.f32.mrf.mxu0
        %v1525 = vadd.f32 0.0, %v1524
        %v1526 = vpop.f32.mrf.mxu0
        %v1527 = vadd.f32 0.0, %v1526
        %1528 = vmatmul.bf16.gmra.mxu0 %v1463
        %v1529 = vpop.f32.mrf.mxu0
        %v1530 = vadd.f32 0.0, %v1529
        %v1531 = vpop.f32.mrf.mxu0
        %v1532 = vadd.f32 0.0, %v1531
        %1533 = vmatmul.bf16.gmra.mxu0 %v1466
        %v1534 = vpop.f32.mrf.mxu0
        %v1535 = vadd.f32 0.0, %v1534
        %v1536 = vpop.f32.mrf.mxu0
        %v1537 = vadd.f32 0.0, %v1536
        %1538 = vmatmul.bf16.gmra.mxu0 %v1469
        %v1539 = vpop.f32.mrf.mxu0
        %v1540 = vadd.f32 0.0, %v1539
        %v1541 = vpop.f32.mrf.mxu0
        %v1542 = vadd.f32 0.0, %v1541
        %1543 = vmatmul.bf16.gmra.mxu0 %v1472
        %v1544 = vpop.f32.mrf.mxu0
        %v1545 = vadd.f32 0.0, %v1544
        %v1546 = vpop.f32.mrf.mxu0
        %v1547 = vadd.f32 0.0, %v1546
        %1548 = vmatmul.bf16.gmra.mxu0 %v1475
        %v1549 = vpop.f32.mrf.mxu0
        %v1550 = vadd.f32 0.0, %v1549
        %v1551 = vpop.f32.mrf.mxu0
        %v1552 = vadd.f32 0.0, %v1551
        %1553 = vmatmul.bf16.gmra.mxu0 %v1478
        %v1554 = vpop.f32.mrf.mxu0
        %v1555 = vadd.f32 0.0, %v1554
        %v1556 = vpop.f32.mrf.mxu0
        %v1557 = vadd.f32 0.0, %v1556
        %1558 = vmatmul.bf16.gmra.mxu0 %v1481
        %v1559 = vpop.f32.mrf.mxu0
        %v1560 = vadd.f32 0.0, %v1559
        %v1561 = vpop.f32.mrf.mxu0
        %v1562 = vadd.f32 0.0, %v1561
        %1563 = vmatmul.bf16.gmra.mxu0 %v1484
        %v1564 = vpop.f32.mrf.mxu0
        %v1565 = vadd.f32 0.0, %v1564
        %v1566 = vpop.f32.mrf.mxu0
        %v1567 = vadd.f32 0.0, %v1566
        %1568 = vmatmul.bf16.gmra.mxu0 %v1487
        %v1569 = vpop.f32.mrf.mxu0
        %v1570 = vadd.f32 0.0, %v1569
        %v1571 = vpop.f32.mrf.mxu0
        %v1572 = vadd.f32 0.0, %v1571
        %1573 = vmatmul.bf16.gmra.mxu0 %v1490
        %v1574 = vpop.f32.mrf.mxu0
        %v1575 = vadd.f32 0.0, %v1574
        %v1576 = vpop.f32.mrf.mxu0
        %v1577 = vadd.f32 0.0, %v1576
        %1578 = vmatmul.bf16.gmra.mxu0 %v1493
        %v1579 = vpop.f32.mrf.mxu0
        %v1580 = vadd.f32 0.0, %v1579
        %v1581 = vpop.f32.mrf.mxu0
        %v1582 = vadd.f32 0.0, %v1581
        %1583 = vdwg.mxu0
        %v1584 = vadd.f32 %v1350, %v1505
        %v1585 = vadd.f32 %v1351, %v1507
        %v1586 = vadd.f32 %v1352, %v1510
        %v1587 = vadd.f32 %v1353, %v1512
        %v1588 = vadd.f32 %v1354, %v1515
        %v1589 = vadd.f32 %v1355, %v1517
        %v1590 = vadd.f32 %v1356, %v1520
        %v1591 = vadd.f32 %v1357, %v1522
        %v1592 = vadd.f32 %v1358, %v1525
        %v1593 = vadd.f32 %v1359, %v1527
        %v1594 = vadd.f32 %v1360, %v1530
        %v1595 = vadd.f32 %v1361, %v1532
        %v1596 = vadd.f32 %v1362, %v1535
        %v1597 = vadd.f32 %v1363, %v1537
        %v1598 = vadd.f32 %v1364, %v1540
        %v1599 = vadd.f32 %v1365, %v1542
        %v1600 = vadd.f32 %v1366, %v1545
        %v1601 = vadd.f32 %v1367, %v1547
        %v1602 = vadd.f32 %v1368, %v1550
        %v1603 = vadd.f32 %v1369, %v1552
        %v1604 = vadd.f32 %v1370, %v1555
        %v1605 = vadd.f32 %v1371, %v1557
        %v1606 = vadd.f32 %v1372, %v1560
        %v1607 = vadd.f32 %v1373, %v1562
        %v1608 = vadd.f32 %v1374, %v1565
        %v1609 = vadd.f32 %v1375, %v1567
        %v1610 = vadd.f32 %v1376, %v1570
        %v1611 = vadd.f32 %v1377, %v1572
        %v1612 = vadd.f32 %v1378, %v1575
        %v1613 = vadd.f32 %v1379, %v1577
        %v1614 = vadd.f32 %v1380, %v1580
        %v1615 = vadd.f32 %v1381, %v1582
        %v1616 = vld [vmem:[%s711 + $0x8] sm:$0xff]
        %v1617 = vld [vmem:[%s711 + $0x10] sm:$0xff]
        %v1618 = vld [vmem:[%s711 + $0x28] sm:$0xff]
        %v1619 = vld [vmem:[%s711 + $0x30] sm:$0xff]
        %v1620 = vld [vmem:[%s711 + $0x48] sm:$0xff]
        %v1621 = vld [vmem:[%s711 + $0x50] sm:$0xff]
        %v1622 = vld [vmem:[%s711 + $0x68] sm:$0xff]
        %v1623 = vld [vmem:[%s711 + $0x70] sm:$0xff]
        %v1624 = vld [vmem:[%s711 + $0x88] sm:$0xff]
        %v1625 = vld [vmem:[%s711 + $0x90] sm:$0xff]
        %v1626 = vld [vmem:[%s711 + $0xa8] sm:$0xff]
        %v1627 = vld [vmem:[%s711 + $0xb0] sm:$0xff]
        %v1628 = vld [vmem:[%s711 + $0xc8] sm:$0xff]
        %v1629 = vld [vmem:[%s711 + $0xd0] sm:$0xff]
        %v1630 = vld [vmem:[%s711 + $0xe8] sm:$0xff]
        %v1631 = vld [vmem:[%s711 + $0xf0] sm:$0xff]
        %v1632 = vld [vmem:[%s711 + $0x108] sm:$0xff]
        %v1633 = vld [vmem:[%s711 + $0x110] sm:$0xff]
        %v1634 = vld [vmem:[%s711 + $0x128] sm:$0xff]
        %v1635 = vld [vmem:[%s711 + $0x130] sm:$0xff]
        %v1636 = vld [vmem:[%s711 + $0x148] sm:$0xff]
        %v1637 = vld [vmem:[%s711 + $0x150] sm:$0xff]
        %v1638 = vld [vmem:[%s711 + $0x168] sm:$0xff]
        %v1639 = vld [vmem:[%s711 + $0x170] sm:$0xff]
        %v1640 = vld [vmem:[%s711 + $0x188] sm:$0xff]
        %v1641 = vld [vmem:[%s711 + $0x190] sm:$0xff]
        %v1642 = vld [vmem:[%s711 + $0x1a8] sm:$0xff]
        %v1643 = vld [vmem:[%s711 + $0x1b0] sm:$0xff]
        %v1644 = vld [vmem:[%s711 + $0x1c8] sm:$0xff]
        %v1645 = vld [vmem:[%s711 + $0x1d0] sm:$0xff]
        %v1646 = vld [vmem:[%s711 + $0x1e8] sm:$0xff]
        %v1647 = vld [vmem:[%s711 + $0x1f0] sm:$0xff]
        %v1648 = vpack.c.bf16 %v1617, %v1616
        %v1649 = vpack.c.bf16 %v1619, %v1618
        %v1650 = vpack.c.bf16 %v1621, %v1620
        %v1651 = vpack.c.bf16 %v1623, %v1622
        %v1652 = vpack.c.bf16 %v1625, %v1624
        %v1653 = vpack.c.bf16 %v1627, %v1626
        %v1654 = vpack.c.bf16 %v1629, %v1628
        %v1655 = vpack.c.bf16 %v1631, %v1630
        %v1656 = vpack.c.bf16 %v1633, %v1632
        %v1657 = vpack.c.bf16 %v1635, %v1634
        %v1658 = vpack.c.bf16 %v1637, %v1636
        %v1659 = vpack.c.bf16 %v1639, %v1638
        %v1660 = vpack.c.bf16 %v1641, %v1640
        %v1661 = vpack.c.bf16 %v1643, %v1642
        %v1662 = vpack.c.bf16 %v1645, %v1644
        %v1663 = vpack.c.bf16 %v1647, %v1646
        %s1664 = scalar_lea.vmem [#allocation6], 64
        %v1665 = vld [vmem:[%s1664] sm:$0xf]
        %v1666 = vld [vmem:[%s1664 + $0x4] sm:$0xf]
        %v1667 = vld [vmem:[%s1664 + $0x8] sm:$0xf]
        %v1668 = vld [vmem:[%s1664 + $0xc] sm:$0xf]
        %v1673 = vunpack.c.l.b16 %v1665
        %v1674 = vunpack.c.l.b16 %v1666
        %v1675 = vunpack.c.l.b16 %v1667
        %v1676 = vunpack.c.l.b16 %v1668
        %v1677 = vpack.c.b16 %v1674, %v1673
        %v1678 = vpack.c.b16 %v1676, %v1675
        %v1682 = vsel %vm712, %v1648, 0
        %v1685 = vsel %vm712, %v1649, 0
        %v1688 = vsel %vm712, %v1650, 0
        %v1691 = vsel %vm712, %v1651, 0
        %v1694 = vsel %vm712, %v1652, 0
        %v1697 = vsel %vm712, %v1653, 0
        %v1700 = vsel %vm712, %v1654, 0
        %v1703 = vsel %vm712, %v1655, 0
        %v1706 = vsel %vm712, %v1656, 0
        %v1709 = vsel %vm712, %v1657, 0
        %v1712 = vsel %vm712, %v1658, 0
        %v1715 = vsel %vm712, %v1659, 0
        %v1718 = vsel %vm712, %v1660, 0
        %v1721 = vsel %vm712, %v1661, 0
        %v1724 = vsel %vm712, %v1662, 0
        %v1727 = vsel %vm712, %v1663, 0
        %1729 = vmatpush.bf16.msra.mxu0 0
        %1730 = vmatpush.bf16.msra.mxu0 0
        %1731 = vmatpush.bf16.msra.mxu0 0
        %1732 = vmatpush.bf16.msra.mxu0 0
        %1733 = vmatpush.bf16.msra.mxu0 0
        %1734 = vmatpush.bf16.msra.mxu0 0
        %1735 = vmatpush.bf16.msra.mxu0 %v1678
        %1736 = vmatpush.bf16.msra.mxu0 %v1677
        %1737 = vmatmul.bf16.gmra.mxu0 %v1682
        %v1738 = vpop.f32.mrf.mxu0
        %v1739 = vadd.f32 0.0, %v1738
        %v1740 = vpop.f32.mrf.mxu0
        %v1741 = vadd.f32 0.0, %v1740
        %1742 = vmatmul.bf16.gmra.mxu0 %v1685
        %v1743 = vpop.f32.mrf.mxu0
        %v1744 = vadd.f32 0.0, %v1743
        %v1745 = vpop.f32.mrf.mxu0
        %v1746 = vadd.f32 0.0, %v1745
        %1747 = vmatmul.bf16.gmra.mxu0 %v1688
        %v1748 = vpop.f32.mrf.mxu0
        %v1749 = vadd.f32 0.0, %v1748
        %v1750 = vpop.f32.mrf.mxu0
        %v1751 = vadd.f32 0.0, %v1750
        %1752 = vmatmul.bf16.gmra.mxu0 %v1691
        %v1753 = vpop.f32.mrf.mxu0
        %v1754 = vadd.f32 0.0, %v1753
        %v1755 = vpop.f32.mrf.mxu0
        %v1756 = vadd.f32 0.0, %v1755
        %1757 = vmatmul.bf16.gmra.mxu0 %v1694
        %v1758 = vpop.f32.mrf.mxu0
        %v1759 = vadd.f32 0.0, %v1758
        %v1760 = vpop.f32.mrf.mxu0
        %v1761 = vadd.f32 0.0, %v1760
        %1762 = vmatmul.bf16.gmra.mxu0 %v1697
        %v1763 = vpop.f32.mrf.mxu0
        %v1764 = vadd.f32 0.0, %v1763
        %v1765 = vpop.f32.mrf.mxu0
        %v1766 = vadd.f32 0.0, %v1765
        %1767 = vmatmul.bf16.gmra.mxu0 %v1700
        %v1768 = vpop.f32.mrf.mxu0
        %v1769 = vadd.f32 0.0, %v1768
        %v1770 = vpop.f32.mrf.mxu0
        %v1771 = vadd.f32 0.0, %v1770
        %1772 = vmatmul.bf16.gmra.mxu0 %v1703
        %v1773 = vpop.f32.mrf.mxu0
        %v1774 = vadd.f32 0.0, %v1773
        %v1775 = vpop.f32.mrf.mxu0
        %v1776 = vadd.f32 0.0, %v1775
        %1777 = vmatmul.bf16.gmra.mxu0 %v1706
        %v1778 = vpop.f32.mrf.mxu0
        %v1779 = vadd.f32 0.0, %v1778
        %v1780 = vpop.f32.mrf.mxu0
        %v1781 = vadd.f32 0.0, %v1780
        %1782 = vmatmul.bf16.gmra.mxu0 %v1709
        %v1783 = vpop.f32.mrf.mxu0
        %v1784 = vadd.f32 0.0, %v1783
        %v1785 = vpop.f32.mrf.mxu0
        %v1786 = vadd.f32 0.0, %v1785
        %1787 = vmatmul.bf16.gmra.mxu0 %v1712
        %v1788 = vpop.f32.mrf.mxu0
        %v1789 = vadd.f32 0.0, %v1788
        %v1790 = vpop.f32.mrf.mxu0
        %v1791 = vadd.f32 0.0, %v1790
        %1792 = vmatmul.bf16.gmra.mxu0 %v1715
        %v1793 = vpop.f32.mrf.mxu0
        %v1794 = vadd.f32 0.0, %v1793
        %v1795 = vpop.f32.mrf.mxu0
        %v1796 = vadd.f32 0.0, %v1795
        %1797 = vmatmul.bf16.gmra.mxu0 %v1718
        %v1798 = vpop.f32.mrf.mxu0
        %v1799 = vadd.f32 0.0, %v1798
        %v1800 = vpop.f32.mrf.mxu0
        %v1801 = vadd.f32 0.0, %v1800
        %1802 = vmatmul.bf16.gmra.mxu0 %v1721
        %v1803 = vpop.f32.mrf.mxu0
        %v1804 = vadd.f32 0.0, %v1803
        %v1805 = vpop.f32.mrf.mxu0
        %v1806 = vadd.f32 0.0, %v1805
        %1807 = vmatmul.bf16.gmra.mxu0 %v1724
        %v1808 = vpop.f32.mrf.mxu0
        %v1809 = vadd.f32 0.0, %v1808
        %v1810 = vpop.f32.mrf.mxu0
        %v1811 = vadd.f32 0.0, %v1810
        %1812 = vmatmul.bf16.gmra.mxu0 %v1727
        %v1813 = vpop.f32.mrf.mxu0
        %v1814 = vadd.f32 0.0, %v1813
        %v1815 = vpop.f32.mrf.mxu0
        %v1816 = vadd.f32 0.0, %v1815
        %1817 = vdwg.mxu0
        %v1818 = vadd.f32 %v1584, %v1739
        %v1819 = vadd.f32 %v1585, %v1741
        %v1820 = vadd.f32 %v1586, %v1744
        %v1821 = vadd.f32 %v1587, %v1746
        %v1822 = vadd.f32 %v1588, %v1749
        %v1823 = vadd.f32 %v1589, %v1751
        %v1824 = vadd.f32 %v1590, %v1754
        %v1825 = vadd.f32 %v1591, %v1756
        %v1826 = vadd.f32 %v1592, %v1759
        %v1827 = vadd.f32 %v1593, %v1761
        %v1828 = vadd.f32 %v1594, %v1764
        %v1829 = vadd.f32 %v1595, %v1766
        %v1830 = vadd.f32 %v1596, %v1769
        %v1831 = vadd.f32 %v1597, %v1771
        %v1832 = vadd.f32 %v1598, %v1774
        %v1833 = vadd.f32 %v1599, %v1776
        %v1834 = vadd.f32 %v1600, %v1779
        %v1835 = vadd.f32 %v1601, %v1781
        %v1836 = vadd.f32 %v1602, %v1784
        %v1837 = vadd.f32 %v1603, %v1786
        %v1838 = vadd.f32 %v1604, %v1789
        %v1839 = vadd.f32 %v1605, %v1791
        %v1840 = vadd.f32 %v1606, %v1794
        %v1841 = vadd.f32 %v1607, %v1796
        %v1842 = vadd.f32 %v1608, %v1799
        %v1843 = vadd.f32 %v1609, %v1801
        %v1844 = vadd.f32 %v1610, %v1804
        %v1845 = vadd.f32 %v1611, %v1806
        %v1846 = vadd.f32 %v1612, %v1809
        %v1847 = vadd.f32 %v1613, %v1811
        %v1848 = vadd.f32 %v1614, %v1814
        %v1849 = vadd.f32 %v1615, %v1816
        %v1850 = vld [vmem:[%s711 + $0x9] sm:$0xff]
        %v1851 = vld [vmem:[%s711 + $0x11] sm:$0xff]
        %v1852 = vld [vmem:[%s711 + $0x29] sm:$0xff]
        %v1853 = vld [vmem:[%s711 + $0x31] sm:$0xff]
        %v1854 = vld [vmem:[%s711 + $0x49] sm:$0xff]
        %v1855 = vld [vmem:[%s711 + $0x51] sm:$0xff]
        %v1856 = vld [vmem:[%s711 + $0x69] sm:$0xff]
        %v1857 = vld [vmem:[%s711 + $0x71] sm:$0xff]
        %v1858 = vld [vmem:[%s711 + $0x89] sm:$0xff]
        %v1859 = vld [vmem:[%s711 + $0x91] sm:$0xff]
        %v1860 = vld [vmem:[%s711 + $0xa9] sm:$0xff]
        %v1861 = vld [vmem:[%s711 + $0xb1] sm:$0xff]
        %v1862 = vld [vmem:[%s711 + $0xc9] sm:$0xff]
        %v1863 = vld [vmem:[%s711 + $0xd1] sm:$0xff]
        %v1864 = vld [vmem:[%s711 + $0xe9] sm:$0xff]
        %v1865 = vld [vmem:[%s711 + $0xf1] sm:$0xff]
        %v1866 = vld [vmem:[%s711 + $0x109] sm:$0xff]
        %v1867 = vld [vmem:[%s711 + $0x111] sm:$0xff]
        %v1868 = vld [vmem:[%s711 + $0x129] sm:$0xff]
        %v1869 = vld [vmem:[%s711 + $0x131] sm:$0xff]
        %v1870 = vld [vmem:[%s711 + $0x149] sm:$0xff]
        %v1871 = vld [vmem:[%s711 + $0x151] sm:$0xff]
        %v1872 = vld [vmem:[%s711 + $0x169] sm:$0xff]
        %v1873 = vld [vmem:[%s711 + $0x171] sm:$0xff]
        %v1874 = vld [vmem:[%s711 + $0x189] sm:$0xff]
        %v1875 = vld [vmem:[%s711 + $0x191] sm:$0xff]
        %v1876 = vld [vmem:[%s711 + $0x1a9] sm:$0xff]
        %v1877 = vld [vmem:[%s711 + $0x1b1] sm:$0xff]
        %v1878 = vld [vmem:[%s711 + $0x1c9] sm:$0xff]
        %v1879 = vld [vmem:[%s711 + $0x1d1] sm:$0xff]
        %v1880 = vld [vmem:[%s711 + $0x1e9] sm:$0xff]
        %v1881 = vld [vmem:[%s711 + $0x1f1] sm:$0xff]
        %v1882 = vpack.c.bf16 %v1851, %v1850
        %v1883 = vpack.c.bf16 %v1853, %v1852
        %v1884 = vpack.c.bf16 %v1855, %v1854
        %v1885 = vpack.c.bf16 %v1857, %v1856
        %v1886 = vpack.c.bf16 %v1859, %v1858
        %v1887 = vpack.c.bf16 %v1861, %v1860
        %v1888 = vpack.c.bf16 %v1863, %v1862
        %v1889 = vpack.c.bf16 %v1865, %v1864
        %v1890 = vpack.c.bf16 %v1867, %v1866
        %v1891 = vpack.c.bf16 %v1869, %v1868
        %v1892 = vpack.c.bf16 %v1871, %v1870
        %v1893 = vpack.c.bf16 %v1873, %v1872
        %v1894 = vpack.c.bf16 %v1875, %v1874
        %v1895 = vpack.c.bf16 %v1877, %v1876
        %v1896 = vpack.c.bf16 %v1879, %v1878
        %v1897 = vpack.c.bf16 %v1881, %v1880
        %s1898 = scalar_lea.vmem [#allocation6], 80
        %v1899 = vld [vmem:[%s1898] sm:$0xf]
        %v1900 = vld [vmem:[%s1898 + $0x4] sm:$0xf]
        %v1901 = vld [vmem:[%s1898 + $0x8] sm:$0xf]
        %v1902 = vld [vmem:[%s1898 + $0xc] sm:$0xf]
        %v1907 = vunpack.c.l.b16 %v1899
        %v1908 = vunpack.c.l.b16 %v1900
        %v1909 = vunpack.c.l.b16 %v1901
        %v1910 = vunpack.c.l.b16 %v1902
        %v1911 = vpack.c.b16 %v1908, %v1907
        %v1912 = vpack.c.b16 %v1910, %v1909
        %v1916 = vsel %vm712, %v1882, 0
        %v1919 = vsel %vm712, %v1883, 0
        %v1922 = vsel %vm712, %v1884, 0
        %v1925 = vsel %vm712, %v1885, 0
        %v1928 = vsel %vm712, %v1886, 0
        %v1931 = vsel %vm712, %v1887, 0
        %v1934 = vsel %vm712, %v1888, 0
        %v1937 = vsel %vm712, %v1889, 0
        %v1940 = vsel %vm712, %v1890, 0
        %v1943 = vsel %vm712, %v1891, 0
        %v1946 = vsel %vm712, %v1892, 0
        %v1949 = vsel %vm712, %v1893, 0
        %v1952 = vsel %vm712, %v1894, 0
        %v1955 = vsel %vm712, %v1895, 0
        %v1958 = vsel %vm712, %v1896, 0
        %v1961 = vsel %vm712, %v1897, 0
        %1963 = vmatpush.bf16.msra.mxu0 0
        %1964 = vmatpush.bf16.msra.mxu0 0
        %1965 = vmatpush.bf16.msra.mxu0 0
        %1966 = vmatpush.bf16.msra.mxu0 0
        %1967 = vmatpush.bf16.msra.mxu0 0
        %1968 = vmatpush.bf16.msra.mxu0 0
        %1969 = vmatpush.bf16.msra.mxu0 %v1912
        %1970 = vmatpush.bf16.msra.mxu0 %v1911
        %1971 = vmatmul.bf16.gmra.mxu0 %v1916
        %v1972 = vpop.f32.mrf.mxu0
        %v1973 = vadd.f32 0.0, %v1972
        %v1974 = vpop.f32.mrf.mxu0
        %v1975 = vadd.f32 0.0, %v1974
        %1976 = vmatmul.bf16.gmra.mxu0 %v1919
        %v1977 = vpop.f32.mrf.mxu0
        %v1978 = vadd.f32 0.0, %v1977
        %v1979 = vpop.f32.mrf.mxu0
        %v1980 = vadd.f32 0.0, %v1979
        %1981 = vmatmul.bf16.gmra.mxu0 %v1922
        %v1982 = vpop.f32.mrf.mxu0
        %v1983 = vadd.f32 0.0, %v1982
        %v1984 = vpop.f32.mrf.mxu0
        %v1985 = vadd.f32 0.0, %v1984
        %1986 = vmatmul.bf16.gmra.mxu0 %v1925
        %v1987 = vpop.f32.mrf.mxu0
        %v1988 = vadd.f32 0.0, %v1987
        %v1989 = vpop.f32.mrf.mxu0
        %v1990 = vadd.f32 0.0, %v1989
        %1991 = vmatmul.bf16.gmra.mxu0 %v1928
        %v1992 = vpop.f32.mrf.mxu0
        %v1993 = vadd.f32 0.0, %v1992
        %v1994 = vpop.f32.mrf.mxu0
        %v1995 = vadd.f32 0.0, %v1994
        %1996 = vmatmul.bf16.gmra.mxu0 %v1931
        %v1997 = vpop.f32.mrf.mxu0
        %v1998 = vadd.f32 0.0, %v1997
        %v1999 = vpop.f32.mrf.mxu0
        %v2000 = vadd.f32 0.0, %v1999
        %2001 = vmatmul.bf16.gmra.mxu0 %v1934
        %v2002 = vpop.f32.mrf.mxu0
        %v2003 = vadd.f32 0.0, %v2002
        %v2004 = vpop.f32.mrf.mxu0
        %v2005 = vadd.f32 0.0, %v2004
        %2006 = vmatmul.bf16.gmra.mxu0 %v1937
        %v2007 = vpop.f32.mrf.mxu0
        %v2008 = vadd.f32 0.0, %v2007
        %v2009 = vpop.f32.mrf.mxu0
        %v2010 = vadd.f32 0.0, %v2009
        %2011 = vmatmul.bf16.gmra.mxu0 %v1940
        %v2012 = vpop.f32.mrf.mxu0
        %v2013 = vadd.f32 0.0, %v2012
        %v2014 = vpop.f32.mrf.mxu0
        %v2015 = vadd.f32 0.0, %v2014
        %2016 = vmatmul.bf16.gmra.mxu0 %v1943
        %v2017 = vpop.f32.mrf.mxu0
        %v2018 = vadd.f32 0.0, %v2017
        %v2019 = vpop.f32.mrf.mxu0
        %v2020 = vadd.f32 0.0, %v2019
        %2021 = vmatmul.bf16.gmra.mxu0 %v1946
        %v2022 = vpop.f32.mrf.mxu0
        %v2023 = vadd.f32 0.0, %v2022
        %v2024 = vpop.f32.mrf.mxu0
        %v2025 = vadd.f32 0.0, %v2024
        %2026 = vmatmul.bf16.gmra.mxu0 %v1949
        %v2027 = vpop.f32.mrf.mxu0
        %v2028 = vadd.f32 0.0, %v2027
        %v2029 = vpop.f32.mrf.mxu0
        %v2030 = vadd.f32 0.0, %v2029
        %2031 = vmatmul.bf16.gmra.mxu0 %v1952
        %v2032 = vpop.f32.mrf.mxu0
        %v2033 = vadd.f32 0.0, %v2032
        %v2034 = vpop.f32.mrf.mxu0
        %v2035 = vadd.f32 0.0, %v2034
        %2036 = vmatmul.bf16.gmra.mxu0 %v1955
        %v2037 = vpop.f32.mrf.mxu0
        %v2038 = vadd.f32 0.0, %v2037
        %v2039 = vpop.f32.mrf.mxu0
        %v2040 = vadd.f32 0.0, %v2039
        %2041 = vmatmul.bf16.gmra.mxu0 %v1958
        %v2042 = vpop.f32.mrf.mxu0
        %v2043 = vadd.f32 0.0, %v2042
        %v2044 = vpop.f32.mrf.mxu0
        %v2045 = vadd.f32 0.0, %v2044
        %2046 = vmatmul.bf16.gmra.mxu0 %v1961
        %v2047 = vpop.f32.mrf.mxu0
        %v2048 = vadd.f32 0.0, %v2047
        %v2049 = vpop.f32.mrf.mxu0
        %v2050 = vadd.f32 0.0, %v2049
        %2051 = vdwg.mxu0
        %v2052 = vadd.f32 %v1818, %v1973
        %v2053 = vadd.f32 %v1819, %v1975
        %v2054 = vadd.f32 %v1820, %v1978
        %v2055 = vadd.f32 %v1821, %v1980
        %v2056 = vadd.f32 %v1822, %v1983
        %v2057 = vadd.f32 %v1823, %v1985
        %v2058 = vadd.f32 %v1824, %v1988
        %v2059 = vadd.f32 %v1825, %v1990
        %v2060 = vadd.f32 %v1826, %v1993
        %v2061 = vadd.f32 %v1827, %v1995
        %v2062 = vadd.f32 %v1828, %v1998
        %v2063 = vadd.f32 %v1829, %v2000
        %v2064 = vadd.f32 %v1830, %v2003
        %v2065 = vadd.f32 %v1831, %v2005
        %v2066 = vadd.f32 %v1832, %v2008
        %v2067 = vadd.f32 %v1833, %v2010
        %v2068 = vadd.f32 %v1834, %v2013
        %v2069 = vadd.f32 %v1835, %v2015
        %v2070 = vadd.f32 %v1836, %v2018
        %v2071 = vadd.f32 %v1837, %v2020
        %v2072 = vadd.f32 %v1838, %v2023
        %v2073 = vadd.f32 %v1839, %v2025
        %v2074 = vadd.f32 %v1840, %v2028
        %v2075 = vadd.f32 %v1841, %v2030
        %v2076 = vadd.f32 %v1842, %v2033
        %v2077 = vadd.f32 %v1843, %v2035
        %v2078 = vadd.f32 %v1844, %v2038
        %v2079 = vadd.f32 %v1845, %v2040
        %v2080 = vadd.f32 %v1846, %v2043
        %v2081 = vadd.f32 %v1847, %v2045
        %v2082 = vadd.f32 %v1848, %v2048
        %v2083 = vadd.f32 %v1849, %v2050
        %s2084 = scalar_lea.vmem [#allocation2], 64
        %v2085 = vld [vmem:[%s2084 + $0x7] sm:$0xff]
        %v2086 = vld [vmem:[%s2084 + $0xf] sm:$0xff]
        %v2087 = vld [vmem:[%s2084 + $0x27] sm:$0xff]
        %v2088 = vld [vmem:[%s2084 + $0x2f] sm:$0xff]
        %v2089 = vld [vmem:[%s2084 + $0x47] sm:$0xff]
        %v2090 = vld [vmem:[%s2084 + $0x4f] sm:$0xff]
        %v2091 = vld [vmem:[%s2084 + $0x67] sm:$0xff]
        %v2092 = vld [vmem:[%s2084 + $0x6f] sm:$0xff]
        %v2093 = vld [vmem:[%s2084 + $0x87] sm:$0xff]
        %v2094 = vld [vmem:[%s2084 + $0x8f] sm:$0xff]
        %v2095 = vld [vmem:[%s2084 + $0xa7] sm:$0xff]
        %v2096 = vld [vmem:[%s2084 + $0xaf] sm:$0xff]
        %v2097 = vld [vmem:[%s2084 + $0xc7] sm:$0xff]
        %v2098 = vld [vmem:[%s2084 + $0xcf] sm:$0xff]
        %v2099 = vld [vmem:[%s2084 + $0xe7] sm:$0xff]
        %v2100 = vld [vmem:[%s2084 + $0xef] sm:$0xff]
        %v2101 = vld [vmem:[%s2084 + $0x107] sm:$0xff]
        %v2102 = vld [vmem:[%s2084 + $0x10f] sm:$0xff]
        %v2103 = vld [vmem:[%s2084 + $0x127] sm:$0xff]
        %v2104 = vld [vmem:[%s2084 + $0x12f] sm:$0xff]
        %v2105 = vld [vmem:[%s2084 + $0x147] sm:$0xff]
        %v2106 = vld [vmem:[%s2084 + $0x14f] sm:$0xff]
        %v2107 = vld [vmem:[%s2084 + $0x167] sm:$0xff]
        %v2108 = vld [vmem:[%s2084 + $0x16f] sm:$0xff]
        %v2109 = vld [vmem:[%s2084 + $0x187] sm:$0xff]
        %v2110 = vld [vmem:[%s2084 + $0x18f] sm:$0xff]
        %v2111 = vld [vmem:[%s2084 + $0x1a7] sm:$0xff]
        %v2112 = vld [vmem:[%s2084 + $0x1af] sm:$0xff]
        %v2113 = vld [vmem:[%s2084 + $0x1c7] sm:$0xff]
        %v2114 = vld [vmem:[%s2084 + $0x1cf] sm:$0xff]
        %v2115 = vld [vmem:[%s2084 + $0x1e7] sm:$0xff]
        %v2116 = vld [vmem:[%s2084 + $0x1ef] sm:$0xff]
        %v2117 = vpack.c.bf16 %v2086, %v2085
        %v2118 = vpack.c.bf16 %v2088, %v2087
        %v2119 = vpack.c.bf16 %v2090, %v2089
        %v2120 = vpack.c.bf16 %v2092, %v2091
        %v2121 = vpack.c.bf16 %v2094, %v2093
        %v2122 = vpack.c.bf16 %v2096, %v2095
        %v2123 = vpack.c.bf16 %v2098, %v2097
        %v2124 = vpack.c.bf16 %v2100, %v2099
        %v2125 = vpack.c.bf16 %v2102, %v2101
        %v2126 = vpack.c.bf16 %v2104, %v2103
        %v2127 = vpack.c.bf16 %v2106, %v2105
        %v2128 = vpack.c.bf16 %v2108, %v2107
        %v2129 = vpack.c.bf16 %v2110, %v2109
        %v2130 = vpack.c.bf16 %v2112, %v2111
        %v2131 = vpack.c.bf16 %v2114, %v2113
        %v2132 = vpack.c.bf16 %v2116, %v2115
        %s2133 = scalar_lea.vmem [#allocation6], 96
        %v2134 = vld [vmem:[%s2133] sm:$0xf]
        %v2135 = vld [vmem:[%s2133 + $0x4] sm:$0xf]
        %v2136 = vld [vmem:[%s2133 + $0x8] sm:$0xf]
        %v2137 = vld [vmem:[%s2133 + $0xc] sm:$0xf]
        %v2142 = vunpack.c.l.b16 %v2134
        %v2143 = vunpack.c.l.b16 %v2135
        %v2144 = vunpack.c.l.b16 %v2136
        %v2145 = vunpack.c.l.b16 %v2137
        %v2146 = vpack.c.b16 %v2143, %v2142
        %v2147 = vpack.c.b16 %v2145, %v2144
        %v2151 = vsel %vm712, %v2117, 0
        %v2154 = vsel %vm712, %v2118, 0
        %v2157 = vsel %vm712, %v2119, 0
        %v2160 = vsel %vm712, %v2120, 0
        %v2163 = vsel %vm712, %v2121, 0
        %v2166 = vsel %vm712, %v2122, 0
        %v2169 = vsel %vm712, %v2123, 0
        %v2172 = vsel %vm712, %v2124, 0
        %v2175 = vsel %vm712, %v2125, 0
        %v2178 = vsel %vm712, %v2126, 0
        %v2181 = vsel %vm712, %v2127, 0
        %v2184 = vsel %vm712, %v2128, 0
        %v2187 = vsel %vm712, %v2129, 0
        %v2190 = vsel %vm712, %v2130, 0
        %v2193 = vsel %vm712, %v2131, 0
        %v2196 = vsel %vm712, %v2132, 0
        %2198 = vmatpush.bf16.msra.mxu0 0
        %2199 = vmatpush.bf16.msra.mxu0 0
        %2200 = vmatpush.bf16.msra.mxu0 0
        %2201 = vmatpush.bf16.msra.mxu0 0
        %2202 = vmatpush.bf16.msra.mxu0 0
        %2203 = vmatpush.bf16.msra.mxu0 0
        %2204 = vmatpush.bf16.msra.mxu0 %v2147
        %2205 = vmatpush.bf16.msra.mxu0 %v2146
        %2206 = vmatmul.bf16.gmra.mxu0 %v2151
        %v2207 = vpop.f32.mrf.mxu0
        %v2208 = vadd.f32 0.0, %v2207
        %v2209 = vpop.f32.mrf.mxu0
        %v2210 = vadd.f32 0.0, %v2209
        %2211 = vmatmul.bf16.gmra.mxu0 %v2154
        %v2212 = vpop.f32.mrf.mxu0
        %v2213 = vadd.f32 0.0, %v2212
        %v2214 = vpop.f32.mrf.mxu0
        %v2215 = vadd.f32 0.0, %v2214
        %2216 = vmatmul.bf16.gmra.mxu0 %v2157
        %v2217 = vpop.f32.mrf.mxu0
        %v2218 = vadd.f32 0.0, %v2217
        %v2219 = vpop.f32.mrf.mxu0
        %v2220 = vadd.f32 0.0, %v2219
        %2221 = vmatmul.bf16.gmra.mxu0 %v2160
        %v2222 = vpop.f32.mrf.mxu0
        %v2223 = vadd.f32 0.0, %v2222
        %v2224 = vpop.f32.mrf.mxu0
        %v2225 = vadd.f32 0.0, %v2224
        %2226 = vmatmul.bf16.gmra.mxu0 %v2163
        %v2227 = vpop.f32.mrf.mxu0
        %v2228 = vadd.f32 0.0, %v2227
        %v2229 = vpop.f32.mrf.mxu0
        %v2230 = vadd.f32 0.0, %v2229
        %2231 = vmatmul.bf16.gmra.mxu0 %v2166
        %v2232 = vpop.f32.mrf.mxu0
        %v2233 = vadd.f32 0.0, %v2232
        %v2234 = vpop.f32.mrf.mxu0
        %v2235 = vadd.f32 0.0, %v2234
        %2236 = vmatmul.bf16.gmra.mxu0 %v2169
        %v2237 = vpop.f32.mrf.mxu0
        %v2238 = vadd.f32 0.0, %v2237
        %v2239 = vpop.f32.mrf.mxu0
        %v2240 = vadd.f32 0.0, %v2239
        %2241 = vmatmul.bf16.gmra.mxu0 %v2172
        %v2242 = vpop.f32.mrf.mxu0
        %v2243 = vadd.f32 0.0, %v2242
        %v2244 = vpop.f32.mrf.mxu0
        %v2245 = vadd.f32 0.0, %v2244
        %2246 = vmatmul.bf16.gmra.mxu0 %v2175
        %v2247 = vpop.f32.mrf.mxu0
        %v2248 = vadd.f32 0.0, %v2247
        %v2249 = vpop.f32.mrf.mxu0
        %v2250 = vadd.f32 0.0, %v2249
        %2251 = vmatmul.bf16.gmra.mxu0 %v2178
        %v2252 = vpop.f32.mrf.mxu0
        %v2253 = vadd.f32 0.0, %v2252
        %v2254 = vpop.f32.mrf.mxu0
        %v2255 = vadd.f32 0.0, %v2254
        %2256 = vmatmul.bf16.gmra.mxu0 %v2181
        %v2257 = vpop.f32.mrf.mxu0
        %v2258 = vadd.f32 0.0, %v2257
        %v2259 = vpop.f32.mrf.mxu0
        %v2260 = vadd.f32 0.0, %v2259
        %2261 = vmatmul.bf16.gmra.mxu0 %v2184
        %v2262 = vpop.f32.mrf.mxu0
        %v2263 = vadd.f32 0.0, %v2262
        %v2264 = vpop.f32.mrf.mxu0
        %v2265 = vadd.f32 0.0, %v2264
        %2266 = vmatmul.bf16.gmra.mxu0 %v2187
        %v2267 = vpop.f32.mrf.mxu0
        %v2268 = vadd.f32 0.0, %v2267
        %v2269 = vpop.f32.mrf.mxu0
        %v2270 = vadd.f32 0.0, %v2269
        %2271 = vmatmul.bf16.gmra.mxu0 %v2190
        %v2272 = vpop.f32.mrf.mxu0
        %v2273 = vadd.f32 0.0, %v2272
        %v2274 = vpop.f32.mrf.mxu0
        %v2275 = vadd.f32 0.0, %v2274
        %2276 = vmatmul.bf16.gmra.mxu0 %v2193
        %v2277 = vpop.f32.mrf.mxu0
        %v2278 = vadd.f32 0.0, %v2277
        %v2279 = vpop.f32.mrf.mxu0
        %v2280 = vadd.f32 0.0, %v2279
        %2281 = vmatmul.bf16.gmra.mxu0 %v2196
        %v2282 = vpop.f32.mrf.mxu0
        %v2283 = vadd.f32 0.0, %v2282
        %v2284 = vpop.f32.mrf.mxu0
        %v2285 = vadd.f32 0.0, %v2284
        %2286 = vdwg.mxu0
        %v2287 = vadd.f32 %v2052, %v2208
        %v2288 = vadd.f32 %v2053, %v2210
        %v2289 = vadd.f32 %v2054, %v2213
        %v2290 = vadd.f32 %v2055, %v2215
        %v2291 = vadd.f32 %v2056, %v2218
        %v2292 = vadd.f32 %v2057, %v2220
        %v2293 = vadd.f32 %v2058, %v2223
        %v2294 = vadd.f32 %v2059, %v2225
        %v2295 = vadd.f32 %v2060, %v2228
        %v2296 = vadd.f32 %v2061, %v2230
        %v2297 = vadd.f32 %v2062, %v2233
        %v2298 = vadd.f32 %v2063, %v2235
        %v2299 = vadd.f32 %v2064, %v2238
        %v2300 = vadd.f32 %v2065, %v2240
        %v2301 = vadd.f32 %v2066, %v2243
        %v2302 = vadd.f32 %v2067, %v2245
        %v2303 = vadd.f32 %v2068, %v2248
        %v2304 = vadd.f32 %v2069, %v2250
        %v2305 = vadd.f32 %v2070, %v2253
        %v2306 = vadd.f32 %v2071, %v2255
        %v2307 = vadd.f32 %v2072, %v2258
        %v2308 = vadd.f32 %v2073, %v2260
        %v2309 = vadd.f32 %v2074, %v2263
        %v2310 = vadd.f32 %v2075, %v2265
        %v2311 = vadd.f32 %v2076, %v2268
        %v2312 = vadd.f32 %v2077, %v2270
        %v2313 = vadd.f32 %v2078, %v2273
        %v2314 = vadd.f32 %v2079, %v2275
        %v2315 = vadd.f32 %v2080, %v2278
        %v2316 = vadd.f32 %v2081, %v2280
        %v2317 = vadd.f32 %v2082, %v2283
        %v2318 = vadd.f32 %v2083, %v2285
        %v2319 = vld [vmem:[%s2084 + $0x8] sm:$0xff]
        %v2320 = vld [vmem:[%s2084 + $0x10] sm:$0xff]
        %v2321 = vld [vmem:[%s2084 + $0x28] sm:$0xff]
        %v2322 = vld [vmem:[%s2084 + $0x30] sm:$0xff]
        %v2323 = vld [vmem:[%s2084 + $0x48] sm:$0xff]
        %v2324 = vld [vmem:[%s2084 + $0x50] sm:$0xff]
        %v2325 = vld [vmem:[%s2084 + $0x68] sm:$0xff]
        %v2326 = vld [vmem:[%s2084 + $0x70] sm:$0xff]
        %v2327 = vld [vmem:[%s2084 + $0x88] sm:$0xff]
        %v2328 = vld [vmem:[%s2084 + $0x90] sm:$0xff]
        %v2329 = vld [vmem:[%s2084 + $0xa8] sm:$0xff]
        %v2330 = vld [vmem:[%s2084 + $0xb0] sm:$0xff]
        %v2331 = vld [vmem:[%s2084 + $0xc8] sm:$0xff]
        %v2332 = vld [vmem:[%s2084 + $0xd0] sm:$0xff]
        %v2333 = vld [vmem:[%s2084 + $0xe8] sm:$0xff]
        %v2334 = vld [vmem:[%s2084 + $0xf0] sm:$0xff]
        %v2335 = vld [vmem:[%s2084 + $0x108] sm:$0xff]
        %v2336 = vld [vmem:[%s2084 + $0x110] sm:$0xff]
        %v2337 = vld [vmem:[%s2084 + $0x128] sm:$0xff]
        %v2338 = vld [vmem:[%s2084 + $0x130] sm:$0xff]
        %v2339 = vld [vmem:[%s2084 + $0x148] sm:$0xff]
        %v2340 = vld [vmem:[%s2084 + $0x150] sm:$0xff]
        %v2341 = vld [vmem:[%s2084 + $0x168] sm:$0xff]
        %v2342 = vld [vmem:[%s2084 + $0x170] sm:$0xff]
        %v2343 = vld [vmem:[%s2084 + $0x188] sm:$0xff]
        %v2344 = vld [vmem:[%s2084 + $0x190] sm:$0xff]
        %v2345 = vld [vmem:[%s2084 + $0x1a8] sm:$0xff]
        %v2346 = vld [vmem:[%s2084 + $0x1b0] sm:$0xff]
        %v2347 = vld [vmem:[%s2084 + $0x1c8] sm:$0xff]
        %v2348 = vld [vmem:[%s2084 + $0x1d0] sm:$0xff]
        %v2349 = vld [vmem:[%s2084 + $0x1e8] sm:$0xff]
        %v2350 = vld [vmem:[%s2084 + $0x1f0] sm:$0xff]
        %v2351 = vpack.c.bf16 %v2320, %v2319
        %v2352 = vpack.c.bf16 %v2322, %v2321
        %v2353 = vpack.c.bf16 %v2324, %v2323
        %v2354 = vpack.c.bf16 %v2326, %v2325
        %v2355 = vpack.c.bf16 %v2328, %v2327
        %v2356 = vpack.c.bf16 %v2330, %v2329
        %v2357 = vpack.c.bf16 %v2332, %v2331
        %v2358 = vpack.c.bf16 %v2334, %v2333
        %v2359 = vpack.c.bf16 %v2336, %v2335
        %v2360 = vpack.c.bf16 %v2338, %v2337
        %v2361 = vpack.c.bf16 %v2340, %v2339
        %v2362 = vpack.c.bf16 %v2342, %v2341
        %v2363 = vpack.c.bf16 %v2344, %v2343
        %v2364 = vpack.c.bf16 %v2346, %v2345
        %v2365 = vpack.c.bf16 %v2348, %v2347
        %v2366 = vpack.c.bf16 %v2350, %v2349
        %s2367 = scalar_lea.vmem [#allocation6], 112
        %v2368 = vld [vmem:[%s2367] sm:$0xf]
        %v2369 = vld [vmem:[%s2367 + $0x4] sm:$0xf]
        %v2370 = vld [vmem:[%s2367 + $0x8] sm:$0xf]
        %v2371 = vld [vmem:[%s2367 + $0xc] sm:$0xf]
        %v2376 = vunpack.c.l.b16 %v2368
        %v2377 = vunpack.c.l.b16 %v2369
        %v2378 = vunpack.c.l.b16 %v2370
        %v2379 = vunpack.c.l.b16 %v2371
        %v2380 = vpack.c.b16 %v2377, %v2376
        %v2381 = vpack.c.b16 %v2379, %v2378
        %v2385 = vsel %vm712, %v2351, 0
        %v2388 = vsel %vm712, %v2352, 0
        %v2391 = vsel %vm712, %v2353, 0
        %v2394 = vsel %vm712, %v2354, 0
        %v2397 = vsel %vm712, %v2355, 0
        %v2400 = vsel %vm712, %v2356, 0
        %v2403 = vsel %vm712, %v2357, 0
        %v2406 = vsel %vm712, %v2358, 0
        %v2409 = vsel %vm712, %v2359, 0
        %v2412 = vsel %vm712, %v2360, 0
        %v2415 = vsel %vm712, %v2361, 0
        %v2418 = vsel %vm712, %v2362, 0
        %v2421 = vsel %vm712, %v2363, 0
        %v2424 = vsel %vm712, %v2364, 0
        %v2427 = vsel %vm712, %v2365, 0
        %v2430 = vsel %vm712, %v2366, 0
        %2432 = vmatpush.bf16.msra.mxu0 0
        %2433 = vmatpush.bf16.msra.mxu0 0
        %2434 = vmatpush.bf16.msra.mxu0 0
        %2435 = vmatpush.bf16.msra.mxu0 0
        %2436 = vmatpush.bf16.msra.mxu0 0
        %2437 = vmatpush.bf16.msra.mxu0 0
        %2438 = vmatpush.bf16.msra.mxu0 %v2381
        %2439 = vmatpush.bf16.msra.mxu0 %v2380
        %2440 = vmatmul.bf16.gmra.mxu0 %v2385
        %v2441 = vpop.f32.mrf.mxu0
        %v2442 = vadd.f32 0.0, %v2441
        %v2443 = vpop.f32.mrf.mxu0
        %v2444 = vadd.f32 0.0, %v2443
        %2445 = vmatmul.bf16.gmra.mxu0 %v2388
        %v2446 = vpop.f32.mrf.mxu0
        %v2447 = vadd.f32 0.0, %v2446
        %v2448 = vpop.f32.mrf.mxu0
        %v2449 = vadd.f32 0.0, %v2448
        %2450 = vmatmul.bf16.gmra.mxu0 %v2391
        %v2451 = vpop.f32.mrf.mxu0
        %v2452 = vadd.f32 0.0, %v2451
        %v2453 = vpop.f32.mrf.mxu0
        %v2454 = vadd.f32 0.0, %v2453
        %2455 = vmatmul.bf16.gmra.mxu0 %v2394
        %v2456 = vpop.f32.mrf.mxu0
        %v2457 = vadd.f32 0.0, %v2456
        %v2458 = vpop.f32.mrf.mxu0
        %v2459 = vadd.f32 0.0, %v2458
        %2460 = vmatmul.bf16.gmra.mxu0 %v2397
        %v2461 = vpop.f32.mrf.mxu0
        %v2462 = vadd.f32 0.0, %v2461
        %v2463 = vpop.f32.mrf.mxu0
        %v2464 = vadd.f32 0.0, %v2463
        %2465 = vmatmul.bf16.gmra.mxu0 %v2400
        %v2466 = vpop.f32.mrf.mxu0
        %v2467 = vadd.f32 0.0, %v2466
        %v2468 = vpop.f32.mrf.mxu0
        %v2469 = vadd.f32 0.0, %v2468
        %2470 = vmatmul.bf16.gmra.mxu0 %v2403
        %v2471 = vpop.f32.mrf.mxu0
        %v2472 = vadd.f32 0.0, %v2471
        %v2473 = vpop.f32.mrf.mxu0
        %v2474 = vadd.f32 0.0, %v2473
        %2475 = vmatmul.bf16.gmra.mxu0 %v2406
        %v2476 = vpop.f32.mrf.mxu0
        %v2477 = vadd.f32 0.0, %v2476
        %v2478 = vpop.f32.mrf.mxu0
        %v2479 = vadd.f32 0.0, %v2478
        %2480 = vmatmul.bf16.gmra.mxu0 %v2409
        %v2481 = vpop.f32.mrf.mxu0
        %v2482 = vadd.f32 0.0, %v2481
        %v2483 = vpop.f32.mrf.mxu0
        %v2484 = vadd.f32 0.0, %v2483
        %2485 = vmatmul.bf16.gmra.mxu0 %v2412
        %v2486 = vpop.f32.mrf.mxu0
        %v2487 = vadd.f32 0.0, %v2486
        %v2488 = vpop.f32.mrf.mxu0
        %v2489 = vadd.f32 0.0, %v2488
        %2490 = vmatmul.bf16.gmra.mxu0 %v2415
        %v2491 = vpop.f32.mrf.mxu0
        %v2492 = vadd.f32 0.0, %v2491
        %v2493 = vpop.f32.mrf.mxu0
        %v2494 = vadd.f32 0.0, %v2493
        %2495 = vmatmul.bf16.gmra.mxu0 %v2418
        %v2496 = vpop.f32.mrf.mxu0
        %v2497 = vadd.f32 0.0, %v2496
        %v2498 = vpop.f32.mrf.mxu0
        %v2499 = vadd.f32 0.0, %v2498
        %2500 = vmatmul.bf16.gmra.mxu0 %v2421
        %v2501 = vpop.f32.mrf.mxu0
        %v2502 = vadd.f32 0.0, %v2501
        %v2503 = vpop.f32.mrf.mxu0
        %v2504 = vadd.f32 0.0, %v2503
        %2505 = vmatmul.bf16.gmra.mxu0 %v2424
        %v2506 = vpop.f32.mrf.mxu0
        %v2507 = vadd.f32 0.0, %v2506
        %v2508 = vpop.f32.mrf.mxu0
        %v2509 = vadd.f32 0.0, %v2508
        %2510 = vmatmul.bf16.gmra.mxu0 %v2427
        %v2511 = vpop.f32.mrf.mxu0
        %v2512 = vadd.f32 0.0, %v2511
        %v2513 = vpop.f32.mrf.mxu0
        %v2514 = vadd.f32 0.0, %v2513
        %2515 = vmatmul.bf16.gmra.mxu0 %v2430
        %v2516 = vpop.f32.mrf.mxu0
        %v2517 = vadd.f32 0.0, %v2516
        %v2518 = vpop.f32.mrf.mxu0
        %v2519 = vadd.f32 0.0, %v2518
        %2520 = vdwg.mxu0
        %v2521 = vadd.f32 %v2287, %v2442
        %v2522 = vadd.f32 %v2288, %v2444
        %v2523 = vadd.f32 %v2289, %v2447
        %v2524 = vadd.f32 %v2290, %v2449
        %v2525 = vadd.f32 %v2291, %v2452
        %v2526 = vadd.f32 %v2292, %v2454
        %v2527 = vadd.f32 %v2293, %v2457
        %v2528 = vadd.f32 %v2294, %v2459
        %v2529 = vadd.f32 %v2295, %v2462
        %v2530 = vadd.f32 %v2296, %v2464
        %v2531 = vadd.f32 %v2297, %v2467
        %v2532 = vadd.f32 %v2298, %v2469
        %v2533 = vadd.f32 %v2299, %v2472
        %v2534 = vadd.f32 %v2300, %v2474
        %v2535 = vadd.f32 %v2301, %v2477
        %v2536 = vadd.f32 %v2302, %v2479
        %v2537 = vadd.f32 %v2303, %v2482
        %v2538 = vadd.f32 %v2304, %v2484
        %v2539 = vadd.f32 %v2305, %v2487
        %v2540 = vadd.f32 %v2306, %v2489
        %v2541 = vadd.f32 %v2307, %v2492
        %v2542 = vadd.f32 %v2308, %v2494
        %v2543 = vadd.f32 %v2309, %v2497
        %v2544 = vadd.f32 %v2310, %v2499
        %v2545 = vadd.f32 %v2311, %v2502
        %v2546 = vadd.f32 %v2312, %v2504
        %v2547 = vadd.f32 %v2313, %v2507
        %v2548 = vadd.f32 %v2314, %v2509
        %v2549 = vadd.f32 %v2315, %v2512
        %v2550 = vadd.f32 %v2316, %v2514
        %v2551 = vadd.f32 %v2317, %v2517
        %v2552 = vadd.f32 %v2318, %v2519
        %v2553 = vld [vmem:[%s2084 + $0x9] sm:$0xff]
        %v2554 = vld [vmem:[%s2084 + $0x11] sm:$0xff]
        %v2555 = vld [vmem:[%s2084 + $0x29] sm:$0xff]
        %v2556 = vld [vmem:[%s2084 + $0x31] sm:$0xff]
        %v2557 = vld [vmem:[%s2084 + $0x49] sm:$0xff]
        %v2558 = vld [vmem:[%s2084 + $0x51] sm:$0xff]
        %v2559 = vld [vmem:[%s2084 + $0x69] sm:$0xff]
        %v2560 = vld [vmem:[%s2084 + $0x71] sm:$0xff]
        %v2561 = vld [vmem:[%s2084 + $0x89] sm:$0xff]
        %v2562 = vld [vmem:[%s2084 + $0x91] sm:$0xff]
        %v2563 = vld [vmem:[%s2084 + $0xa9] sm:$0xff]
        %v2564 = vld [vmem:[%s2084 + $0xb1] sm:$0xff]
        %v2565 = vld [vmem:[%s2084 + $0xc9] sm:$0xff]
        %v2566 = vld [vmem:[%s2084 + $0xd1] sm:$0xff]
        %v2567 = vld [vmem:[%s2084 + $0xe9] sm:$0xff]
        %v2568 = vld [vmem:[%s2084 + $0xf1] sm:$0xff]
        %v2569 = vld [vmem:[%s2084 + $0x109] sm:$0xff]
        %v2570 = vld [vmem:[%s2084 + $0x111] sm:$0xff]
        %v2571 = vld [vmem:[%s2084 + $0x129] sm:$0xff]
        %v2572 = vld [vmem:[%s2084 + $0x131] sm:$0xff]
        %v2573 = vld [vmem:[%s2084 + $0x149] sm:$0xff]
        %v2574 = vld [vmem:[%s2084 + $0x151] sm:$0xff]
        %v2575 = vld [vmem:[%s2084 + $0x169] sm:$0xff]
        %v2576 = vld [vmem:[%s2084 + $0x171] sm:$0xff]
        %v2577 = vld [vmem:[%s2084 + $0x189] sm:$0xff]
        %v2578 = vld [vmem:[%s2084 + $0x191] sm:$0xff]
        %v2579 = vld [vmem:[%s2084 + $0x1a9] sm:$0xff]
        %v2580 = vld [vmem:[%s2084 + $0x1b1] sm:$0xff]
        %v2581 = vld [vmem:[%s2084 + $0x1c9] sm:$0xff]
        %v2582 = vld [vmem:[%s2084 + $0x1d1] sm:$0xff]
        %v2583 = vld [vmem:[%s2084 + $0x1e9] sm:$0xff]
        %v2584 = vld [vmem:[%s2084 + $0x1f1] sm:$0xff]
        %v2585 = vpack.c.bf16 %v2554, %v2553
        %v2586 = vpack.c.bf16 %v2556, %v2555
        %v2587 = vpack.c.bf16 %v2558, %v2557
        %v2588 = vpack.c.bf16 %v2560, %v2559
        %v2589 = vpack.c.bf16 %v2562, %v2561
        %v2590 = vpack.c.bf16 %v2564, %v2563
        %v2591 = vpack.c.bf16 %v2566, %v2565
        %v2592 = vpack.c.bf16 %v2568, %v2567
        %v2593 = vpack.c.bf16 %v2570, %v2569
        %v2594 = vpack.c.bf16 %v2572, %v2571
        %v2595 = vpack.c.bf16 %v2574, %v2573
        %v2596 = vpack.c.bf16 %v2576, %v2575
        %v2597 = vpack.c.bf16 %v2578, %v2577
        %v2598 = vpack.c.bf16 %v2580, %v2579
        %v2599 = vpack.c.bf16 %v2582, %v2581
        %v2600 = vpack.c.bf16 %v2584, %v2583
        %s2601 = scalar_lea.vmem [#allocation6], 128
        %v2602 = vld [vmem:[%s2601] sm:$0xf]
        %v2603 = vld [vmem:[%s2601 + $0x4] sm:$0xf]
        %v2604 = vld [vmem:[%s2601 + $0x8] sm:$0xf]
        %v2605 = vld [vmem:[%s2601 + $0xc] sm:$0xf]
        %v2610 = vunpack.c.l.b16 %v2602
        %v2611 = vunpack.c.l.b16 %v2603
        %v2612 = vunpack.c.l.b16 %v2604
        %v2613 = vunpack.c.l.b16 %v2605
        %v2614 = vpack.c.b16 %v2611, %v2610
        %v2615 = vpack.c.b16 %v2613, %v2612
        %v2619 = vsel %vm712, %v2585, 0
        %v2622 = vsel %vm712, %v2586, 0
        %v2625 = vsel %vm712, %v2587, 0
        %v2628 = vsel %vm712, %v2588, 0
        %v2631 = vsel %vm712, %v2589, 0
        %v2634 = vsel %vm712, %v2590, 0
        %v2637 = vsel %vm712, %v2591, 0
        %v2640 = vsel %vm712, %v2592, 0
        %v2643 = vsel %vm712, %v2593, 0
        %v2646 = vsel %vm712, %v2594, 0
        %v2649 = vsel %vm712, %v2595, 0
        %v2652 = vsel %vm712, %v2596, 0
        %v2655 = vsel %vm712, %v2597, 0
        %v2658 = vsel %vm712, %v2598, 0
        %v2661 = vsel %vm712, %v2599, 0
        %v2664 = vsel %vm712, %v2600, 0
        %2666 = vmatpush.bf16.msra.mxu0 0
        %2667 = vmatpush.bf16.msra.mxu0 0
        %2668 = vmatpush.bf16.msra.mxu0 0
        %2669 = vmatpush.bf16.msra.mxu0 0
        %2670 = vmatpush.bf16.msra.mxu0 0
        %2671 = vmatpush.bf16.msra.mxu0 0
        %2672 = vmatpush.bf16.msra.mxu0 %v2615
        %2673 = vmatpush.bf16.msra.mxu0 %v2614
        %2674 = vmatmul.bf16.gmra.mxu0 %v2619
        %v2675 = vpop.f32.mrf.mxu0
        %v2676 = vadd.f32 0.0, %v2675
        %v2677 = vpop.f32.mrf.mxu0
        %v2678 = vadd.f32 0.0, %v2677
        %2679 = vmatmul.bf16.gmra.mxu0 %v2622
        %v2680 = vpop.f32.mrf.mxu0
        %v2681 = vadd.f32 0.0, %v2680
        %v2682 = vpop.f32.mrf.mxu0
        %v2683 = vadd.f32 0.0, %v2682
        %2684 = vmatmul.bf16.gmra.mxu0 %v2625
        %v2685 = vpop.f32.mrf.mxu0
        %v2686 = vadd.f32 0.0, %v2685
        %v2687 = vpop.f32.mrf.mxu0
        %v2688 = vadd.f32 0.0, %v2687
        %2689 = vmatmul.bf16.gmra.mxu0 %v2628
        %v2690 = vpop.f32.mrf.mxu0
        %v2691 = vadd.f32 0.0, %v2690
        %v2692 = vpop.f32.mrf.mxu0
        %v2693 = vadd.f32 0.0, %v2692
        %2694 = vmatmul.bf16.gmra.mxu0 %v2631
        %v2695 = vpop.f32.mrf.mxu0
        %v2696 = vadd.f32 0.0, %v2695
        %v2697 = vpop.f32.mrf.mxu0
        %v2698 = vadd.f32 0.0, %v2697
        %2699 = vmatmul.bf16.gmra.mxu0 %v2634
        %v2700 = vpop.f32.mrf.mxu0
        %v2701 = vadd.f32 0.0, %v2700
        %v2702 = vpop.f32.mrf.mxu0
        %v2703 = vadd.f32 0.0, %v2702
        %2704 = vmatmul.bf16.gmra.mxu0 %v2637
        %v2705 = vpop.f32.mrf.mxu0
        %v2706 = vadd.f32 0.0, %v2705
        %v2707 = vpop.f32.mrf.mxu0
        %v2708 = vadd.f32 0.0, %v2707
        %2709 = vmatmul.bf16.gmra.mxu0 %v2640
        %v2710 = vpop.f32.mrf.mxu0
        %v2711 = vadd.f32 0.0, %v2710
        %v2712 = vpop.f32.mrf.mxu0
        %v2713 = vadd.f32 0.0, %v2712
        %2714 = vmatmul.bf16.gmra.mxu0 %v2643
        %v2715 = vpop.f32.mrf.mxu0
        %v2716 = vadd.f32 0.0, %v2715
        %v2717 = vpop.f32.mrf.mxu0
        %v2718 = vadd.f32 0.0, %v2717
        %2719 = vmatmul.bf16.gmra.mxu0 %v2646
        %v2720 = vpop.f32.mrf.mxu0
        %v2721 = vadd.f32 0.0, %v2720
        %v2722 = vpop.f32.mrf.mxu0
        %v2723 = vadd.f32 0.0, %v2722
        %2724 = vmatmul.bf16.gmra.mxu0 %v2649
        %v2725 = vpop.f32.mrf.mxu0
        %v2726 = vadd.f32 0.0, %v2725
        %v2727 = vpop.f32.mrf.mxu0
        %v2728 = vadd.f32 0.0, %v2727
        %2729 = vmatmul.bf16.gmra.mxu0 %v2652
        %v2730 = vpop.f32.mrf.mxu0
        %v2731 = vadd.f32 0.0, %v2730
        %v2732 = vpop.f32.mrf.mxu0
        %v2733 = vadd.f32 0.0, %v2732
        %2734 = vmatmul.bf16.gmra.mxu0 %v2655
        %v2735 = vpop.f32.mrf.mxu0
        %v2736 = vadd.f32 0.0, %v2735
        %v2737 = vpop.f32.mrf.mxu0
        %v2738 = vadd.f32 0.0, %v2737
        %2739 = vmatmul.bf16.gmra.mxu0 %v2658
        %v2740 = vpop.f32.mrf.mxu0
        %v2741 = vadd.f32 0.0, %v2740
        %v2742 = vpop.f32.mrf.mxu0
        %v2743 = vadd.f32 0.0, %v2742
        %2744 = vmatmul.bf16.gmra.mxu0 %v2661
        %v2745 = vpop.f32.mrf.mxu0
        %v2746 = vadd.f32 0.0, %v2745
        %v2747 = vpop.f32.mrf.mxu0
        %v2748 = vadd.f32 0.0, %v2747
        %2749 = vmatmul.bf16.gmra.mxu0 %v2664
        %v2750 = vpop.f32.mrf.mxu0
        %v2751 = vadd.f32 0.0, %v2750
        %v2752 = vpop.f32.mrf.mxu0
        %v2753 = vadd.f32 0.0, %v2752
        %2754 = vdwg.mxu0
        %v2755 = vadd.f32 %v2521, %v2676
        %v2756 = vadd.f32 %v2522, %v2678
        %v2757 = vadd.f32 %v2523, %v2681
        %v2758 = vadd.f32 %v2524, %v2683
        %v2759 = vadd.f32 %v2525, %v2686
        %v2760 = vadd.f32 %v2526, %v2688
        %v2761 = vadd.f32 %v2527, %v2691
        %v2762 = vadd.f32 %v2528, %v2693
        %v2763 = vadd.f32 %v2529, %v2696
        %v2764 = vadd.f32 %v2530, %v2698
        %v2765 = vadd.f32 %v2531, %v2701
        %v2766 = vadd.f32 %v2532, %v2703
        %v2767 = vadd.f32 %v2533, %v2706
        %v2768 = vadd.f32 %v2534, %v2708
        %v2769 = vadd.f32 %v2535, %v2711
        %v2770 = vadd.f32 %v2536, %v2713
        %v2771 = vadd.f32 %v2537, %v2716
        %v2772 = vadd.f32 %v2538, %v2718
        %v2773 = vadd.f32 %v2539, %v2721
        %v2774 = vadd.f32 %v2540, %v2723
        %v2775 = vadd.f32 %v2541, %v2726
        %v2776 = vadd.f32 %v2542, %v2728
        %v2777 = vadd.f32 %v2543, %v2731
        %v2778 = vadd.f32 %v2544, %v2733
        %v2779 = vadd.f32 %v2545, %v2736
        %v2780 = vadd.f32 %v2546, %v2738
        %v2781 = vadd.f32 %v2547, %v2741
        %v2782 = vadd.f32 %v2548, %v2743
        %v2783 = vadd.f32 %v2549, %v2746
        %v2784 = vadd.f32 %v2550, %v2748
        %v2785 = vadd.f32 %v2551, %v2751
        %v2786 = vadd.f32 %v2552, %v2753
        %v2787 = vld [vmem:[%s4] sm:$0x1]
        %v2789 = vperm.slane %v2787, 0
        %v2791 = vadd.f32 %v2755, %v2789
        %v2792 = vadd.f32 %v2756, %v2789
        %v2793 = vadd.f32 %v2757, %v2789
        %v2794 = vadd.f32 %v2758, %v2789
        %v2795 = vadd.f32 %v2759, %v2789
        %v2796 = vadd.f32 %v2760, %v2789
        %v2797 = vadd.f32 %v2761, %v2789
        %v2798 = vadd.f32 %v2762, %v2789
        %v2799 = vadd.f32 %v2763, %v2789
        %v2800 = vadd.f32 %v2764, %v2789
        %v2801 = vadd.f32 %v2765, %v2789
        %v2802 = vadd.f32 %v2766, %v2789
        %v2803 = vadd.f32 %v2767, %v2789
        %v2804 = vadd.f32 %v2768, %v2789
        %v2805 = vadd.f32 %v2769, %v2789
        %v2806 = vadd.f32 %v2770, %v2789
        %v2807 = vadd.f32 %v2771, %v2789
        %v2808 = vadd.f32 %v2772, %v2789
        %v2809 = vadd.f32 %v2773, %v2789
        %v2810 = vadd.f32 %v2774, %v2789
        %v2811 = vadd.f32 %v2775, %v2789
        %v2812 = vadd.f32 %v2776, %v2789
        %v2813 = vadd.f32 %v2777, %v2789
        %v2814 = vadd.f32 %v2778, %v2789
        %v2815 = vadd.f32 %v2779, %v2789
        %v2816 = vadd.f32 %v2780, %v2789
        %v2817 = vadd.f32 %v2781, %v2789
        %v2818 = vadd.f32 %v2782, %v2789
        %v2819 = vadd.f32 %v2783, %v2789
        %v2820 = vadd.f32 %v2784, %v2789
        %v2821 = vadd.f32 %v2785, %v2789
        %v2822 = vadd.f32 %v2786, %v2789
        %v2823 = vmax.f32 %v2791, 0.0
        %v2824 = vmax.f32 %v2792, 0.0
        %v2825 = vmax.f32 %v2793, 0.0
        %v2826 = vmax.f32 %v2794, 0.0
        %v2827 = vmax.f32 %v2795, 0.0
        %v2828 = vmax.f32 %v2796, 0.0
        %v2829 = vmax.f32 %v2797, 0.0
        %v2830 = vmax.f32 %v2798, 0.0
        %v2831 = vmax.f32 %v2799, 0.0
        %v2832 = vmax.f32 %v2800, 0.0
        %v2833 = vmax.f32 %v2801, 0.0
        %v2834 = vmax.f32 %v2802, 0.0
        %v2835 = vmax.f32 %v2803, 0.0
        %v2836 = vmax.f32 %v2804, 0.0
        %v2837 = vmax.f32 %v2805, 0.0
        %v2838 = vmax.f32 %v2806, 0.0
        %v2839 = vmax.f32 %v2807, 0.0
        %v2840 = vmax.f32 %v2808, 0.0
        %v2841 = vmax.f32 %v2809, 0.0
        %v2842 = vmax.f32 %v2810, 0.0
        %v2843 = vmax.f32 %v2811, 0.0
        %v2844 = vmax.f32 %v2812, 0.0
        %v2845 = vmax.f32 %v2813, 0.0
        %v2846 = vmax.f32 %v2814, 0.0
        %v2847 = vmax.f32 %v2815, 0.0
        %v2848 = vmax.f32 %v2816, 0.0
        %v2849 = vmax.f32 %v2817, 0.0
        %v2850 = vmax.f32 %v2818, 0.0
        %v2851 = vmax.f32 %v2819, 0.0
        %v2852 = vmax.f32 %v2820, 0.0
        %v2853 = vmax.f32 %v2821, 0.0
        %v2854 = vmax.f32 %v2822, 0.0
        %v2855 = vpack.c.bf16 %v2824, %v2823
        %v2856 = vpack.c.bf16 %v2826, %v2825
        %v2857 = vpack.c.bf16 %v2828, %v2827
        %v2858 = vpack.c.bf16 %v2830, %v2829
        %v2859 = vpack.c.bf16 %v2832, %v2831
        %v2860 = vpack.c.bf16 %v2834, %v2833
        %v2861 = vpack.c.bf16 %v2836, %v2835
        %v2862 = vpack.c.bf16 %v2838, %v2837
        %v2863 = vpack.c.bf16 %v2840, %v2839
        %v2864 = vpack.c.bf16 %v2842, %v2841
        %v2865 = vpack.c.bf16 %v2844, %v2843
        %v2866 = vpack.c.bf16 %v2846, %v2845
        %v2867 = vpack.c.bf16 %v2848, %v2847
        %v2868 = vpack.c.bf16 %v2850, %v2849
        %v2869 = vpack.c.bf16 %v2852, %v2851
        %v2870 = vpack.c.bf16 %v2854, %v2853
        %v2871 = vld [vmem:[%s5] sm:$0xf]
        %v2872 = vld [vmem:[%s5 + $0x4] sm:$0xf]
        %v2873 = vld [vmem:[%s5 + $0x8] sm:$0xf]
        %v2874 = vld [vmem:[%s5 + $0xc] sm:$0xf]
        %v2875 = vld [vmem:[%s6] sm:$0x1]
        %v2877 = vperm.slane %v2875, 0
        %v2883 = vunpack.c.l.b16 %v2871
        %v2884 = vunpack.c.l.b16 %v2872
        %v2885 = vunpack.c.l.b16 %v2873
        %v2886 = vunpack.c.l.b16 %v2874
        %v2887 = vpack.c.b16 %v2884, %v2883
        %v2888 = vpack.c.b16 %v2886, %v2885
        %v2892 = vsel %vm712, %v2855, 0
        %v2895 = vsel %vm712, %v2856, 0
        %v2898 = vsel %vm712, %v2857, 0
        %v2901 = vsel %vm712, %v2858, 0
        %v2904 = vsel %vm712, %v2859, 0
        %v2907 = vsel %vm712, %v2860, 0
        %v2910 = vsel %vm712, %v2861, 0
        %v2913 = vsel %vm712, %v2862, 0
        %v2916 = vsel %vm712, %v2863, 0
        %v2919 = vsel %vm712, %v2864, 0
        %v2922 = vsel %vm712, %v2865, 0
        %v2925 = vsel %vm712, %v2866, 0
        %v2928 = vsel %vm712, %v2867, 0
        %v2931 = vsel %vm712, %v2868, 0
        %v2934 = vsel %vm712, %v2869, 0
        %v2937 = vsel %vm712, %v2870, 0
        %2939 = vmatpush.bf16.msra.mxu0 0
        %2940 = vmatpush.bf16.msra.mxu0 0
        %2941 = vmatpush.bf16.msra.mxu0 0
        %2942 = vmatpush.bf16.msra.mxu0 0
        %2943 = vmatpush.bf16.msra.mxu0 0
        %2944 = vmatpush.bf16.msra.mxu0 0
        %2945 = vmatpush.bf16.msra.mxu0 %v2888
        %2946 = vmatpush.bf16.msra.mxu0 %v2887
        %2947 = vmatmul.bf16.gmra.mxu0 %v2892
        %v2948 = vpop.f32.mrf.mxu0
        %v2949 = vadd.f32 %v2877, %v2948
        %v2950 = vpop.f32.mrf.mxu0
        %v2951 = vadd.f32 %v2877, %v2950
        %2952 = vmatmul.bf16.gmra.mxu0 %v2895
        %v2953 = vpop.f32.mrf.mxu0
        %v2954 = vadd.f32 %v2877, %v2953
        %v2955 = vpop.f32.mrf.mxu0
        %v2956 = vadd.f32 %v2877, %v2955
        %2957 = vmatmul.bf16.gmra.mxu0 %v2898
        %v2958 = vpop.f32.mrf.mxu0
        %v2959 = vadd.f32 %v2877, %v2958
        %v2960 = vpop.f32.mrf.mxu0
        %v2961 = vadd.f32 %v2877, %v2960
        %2962 = vmatmul.bf16.gmra.mxu0 %v2901
        %v2963 = vpop.f32.mrf.mxu0
        %v2964 = vadd.f32 %v2877, %v2963
        %v2965 = vpop.f32.mrf.mxu0
        %v2966 = vadd.f32 %v2877, %v2965
        %2967 = vmatmul.bf16.gmra.mxu0 %v2904
        %v2968 = vpop.f32.mrf.mxu0
        %v2969 = vadd.f32 %v2877, %v2968
        %v2970 = vpop.f32.mrf.mxu0
        %v2971 = vadd.f32 %v2877, %v2970
        %2972 = vmatmul.bf16.gmra.mxu0 %v2907
        %v2973 = vpop.f32.mrf.mxu0
        %v2974 = vadd.f32 %v2877, %v2973
        %v2975 = vpop.f32.mrf.mxu0
        %v2976 = vadd.f32 %v2877, %v2975
        %2977 = vmatmul.bf16.gmra.mxu0 %v2910
        %v2978 = vpop.f32.mrf.mxu0
        %v2979 = vadd.f32 %v2877, %v2978
        %v2980 = vpop.f32.mrf.mxu0
        %v2981 = vadd.f32 %v2877, %v2980
        %2982 = vmatmul.bf16.gmra.mxu0 %v2913
        %v2983 = vpop.f32.mrf.mxu0
        %v2984 = vadd.f32 %v2877, %v2983
        %v2985 = vpop.f32.mrf.mxu0
        %v2986 = vadd.f32 %v2877, %v2985
        %2987 = vmatmul.bf16.gmra.mxu0 %v2916
        %v2988 = vpop.f32.mrf.mxu0
        %v2989 = vadd.f32 %v2877, %v2988
        %v2990 = vpop.f32.mrf.mxu0
        %v2991 = vadd.f32 %v2877, %v2990
        %2992 = vmatmul.bf16.gmra.mxu0 %v2919
        %v2993 = vpop.f32.mrf.mxu0
        %v2994 = vadd.f32 %v2877, %v2993
        %v2995 = vpop.f32.mrf.mxu0
        %v2996 = vadd.f32 %v2877, %v2995
        %2997 = vmatmul.bf16.gmra.mxu0 %v2922
        %v2998 = vpop.f32.mrf.mxu0
        %v2999 = vadd.f32 %v2877, %v2998
        %v3000 = vpop.f32.mrf.mxu0
        %v3001 = vadd.f32 %v2877, %v3000
        %3002 = vmatmul.bf16.gmra.mxu0 %v2925
        %v3003 = vpop.f32.mrf.mxu0
        %v3004 = vadd.f32 %v2877, %v3003
        %v3005 = vpop.f32.mrf.mxu0
        %v3006 = vadd.f32 %v2877, %v3005
        %3007 = vmatmul.bf16.gmra.mxu0 %v2928
        %v3008 = vpop.f32.mrf.mxu0
        %v3009 = vadd.f32 %v2877, %v3008
        %v3010 = vpop.f32.mrf.mxu0
        %v3011 = vadd.f32 %v2877, %v3010
        %3012 = vmatmul.bf16.gmra.mxu0 %v2931
        %v3013 = vpop.f32.mrf.mxu0
        %v3014 = vadd.f32 %v2877, %v3013
        %v3015 = vpop.f32.mrf.mxu0
        %v3016 = vadd.f32 %v2877, %v3015
        %3017 = vmatmul.bf16.gmra.mxu0 %v2934
        %v3018 = vpop.f32.mrf.mxu0
        %v3019 = vadd.f32 %v2877, %v3018
        %v3020 = vpop.f32.mrf.mxu0
        %v3021 = vadd.f32 %v2877, %v3020
        %3022 = vmatmul.bf16.gmra.mxu0 %v2937
        %v3023 = vpop.f32.mrf.mxu0
        %v3024 = vadd.f32 %v2877, %v3023
        %v3025 = vpop.f32.mrf.mxu0
        %v3026 = vadd.f32 %v2877, %v3025
        %3027 = vdwg.mxu0
        %v3028 = vunpack.c.l.bf16 %v317
        %v3029 = vunpack.c.l.bf16 %v318
        %v3030 = vunpack.c.l.bf16 %v319
        %v3031 = vunpack.c.l.bf16 %v320
        %v3032 = vunpack.c.l.bf16 %v321
        %v3033 = vunpack.c.l.bf16 %v322
        %v3034 = vunpack.c.l.bf16 %v323
        %v3035 = vunpack.c.l.bf16 %v324
        %v3036 = vunpack.c.l.bf16 %v325
        %v3037 = vunpack.c.l.bf16 %v326
        %v3038 = vunpack.c.l.bf16 %v327
        %v3039 = vunpack.c.l.bf16 %v328
        %v3040 = vunpack.c.l.bf16 %v329
        %v3041 = vunpack.c.l.bf16 %v330
        %v3042 = vunpack.c.l.bf16 %v331
        %v3043 = vunpack.c.l.bf16 %v332
        %v3044 = vunpack.c.l.bf16 %v333
        %v3045 = vunpack.c.l.bf16 %v334
        %v3046 = vunpack.c.l.bf16 %v335
        %v3047 = vunpack.c.l.bf16 %v336
        %v3048 = vunpack.c.l.bf16 %v337
        %v3049 = vunpack.c.l.bf16 %v338
        %v3050 = vunpack.c.l.bf16 %v339
        %v3051 = vunpack.c.l.bf16 %v340
        %v3052 = vunpack.c.l.bf16 %v341
        %v3053 = vunpack.c.l.bf16 %v342
        %v3054 = vunpack.c.l.bf16 %v343
        %v3055 = vunpack.c.l.bf16 %v344
        %v3056 = vunpack.c.l.bf16 %v345
        %v3057 = vunpack.c.l.bf16 %v346
        %v3058 = vunpack.c.l.bf16 %v347
        %v3059 = vunpack.c.l.bf16 %v348
        %v3060 = vadd.f32 %v2949, %v3028
        %v3061 = vadd.f32 %v2951, %v3029
        %v3062 = vadd.f32 %v2954, %v3030
        %v3063 = vadd.f32 %v2956, %v3031
        %v3064 = vadd.f32 %v2959, %v3032
        %v3065 = vadd.f32 %v2961, %v3033
        %v3066 = vadd.f32 %v2964, %v3034
        %v3067 = vadd.f32 %v2966, %v3035
        %v3068 = vadd.f32 %v2969, %v3036
        %v3069 = vadd.f32 %v2971, %v3037
        %v3070 = vadd.f32 %v2974, %v3038
        %v3071 = vadd.f32 %v2976, %v3039
        %v3072 = vadd.f32 %v2979, %v3040
        %v3073 = vadd.f32 %v2981, %v3041
        %v3074 = vadd.f32 %v2984, %v3042
        %v3075 = vadd.f32 %v2986, %v3043
        %v3076 = vadd.f32 %v2989, %v3044
        %v3077 = vadd.f32 %v2991, %v3045
        %v3078 = vadd.f32 %v2994, %v3046
        %v3079 = vadd.f32 %v2996, %v3047
        %v3080 = vadd.f32 %v2999, %v3048
        %v3081 = vadd.f32 %v3001, %v3049
        %v3082 = vadd.f32 %v3004, %v3050
        %v3083 = vadd.f32 %v3006, %v3051
        %v3084 = vadd.f32 %v3009, %v3052
        %v3085 = vadd.f32 %v3011, %v3053
        %v3086 = vadd.f32 %v3014, %v3054
        %v3087 = vadd.f32 %v3016, %v3055
        %v3088 = vadd.f32 %v3019, %v3056
        %v3089 = vadd.f32 %v3021, %v3057
        %v3090 = vadd.f32 %v3024, %v3058
        %v3091 = vadd.f32 %v3026, %v3059
        %v3092 = vmax.f32 %v3060, 0.0
        %v3093 = vmax.f32 %v3061, 0.0
        %v3094 = vmax.f32 %v3062, 0.0
        %v3095 = vmax.f32 %v3063, 0.0
        %v3096 = vmax.f32 %v3064, 0.0
        %v3097 = vmax.f32 %v3065, 0.0
        %v3098 = vmax.f32 %v3066, 0.0
        %v3099 = vmax.f32 %v3067, 0.0
        %v3100 = vmax.f32 %v3068, 0.0
        %v3101 = vmax.f32 %v3069, 0.0
        %v3102 = vmax.f32 %v3070, 0.0
        %v3103 = vmax.f32 %v3071, 0.0
        %v3104 = vmax.f32 %v3072, 0.0
        %v3105 = vmax.f32 %v3073, 0.0
        %v3106 = vmax.f32 %v3074, 0.0
        %v3107 = vmax.f32 %v3075, 0.0
        %v3108 = vmax.f32 %v3076, 0.0
        %v3109 = vmax.f32 %v3077, 0.0
        %v3110 = vmax.f32 %v3078, 0.0
        %v3111 = vmax.f32 %v3079, 0.0
        %v3112 = vmax.f32 %v3080, 0.0
        %v3113 = vmax.f32 %v3081, 0.0
        %v3114 = vmax.f32 %v3082, 0.0
        %v3115 = vmax.f32 %v3083, 0.0
        %v3116 = vmax.f32 %v3084, 0.0
        %v3117 = vmax.f32 %v3085, 0.0
        %v3118 = vmax.f32 %v3086, 0.0
        %v3119 = vmax.f32 %v3087, 0.0
        %v3120 = vmax.f32 %v3088, 0.0
        %v3121 = vmax.f32 %v3089, 0.0
        %v3122 = vmax.f32 %v3090, 0.0
        %v3123 = vmax.f32 %v3091, 0.0
        %3124 = vst [vmem:[%s315] sm:$0xff] %v3092
        %3125 = vst [vmem:[%s315 + $0x8] sm:$0xff] %v3093
        %3126 = vst [vmem:[%s315 + $0x10] sm:$0xff] %v3094
        %3127 = vst [vmem:[%s315 + $0x18] sm:$0xff] %v3095
        %3128 = vst [vmem:[%s315 + $0x20] sm:$0xff] %v3096
        %3129 = vst [vmem:[%s315 + $0x28] sm:$0xff] %v3097
        %3130 = vst [vmem:[%s315 + $0x30] sm:$0xff] %v3098
        %3131 = vst [vmem:[%s315 + $0x38] sm:$0xff] %v3099
        %3132 = vst [vmem:[%s315 + $0x40] sm:$0xff] %v3100
        %3133 = vst [vmem:[%s315 + $0x48] sm:$0xff] %v3101
        %3134 = vst [vmem:[%s315 + $0x50] sm:$0xff] %v3102
        %3135 = vst [vmem:[%s315 + $0x58] sm:$0xff] %v3103
        %3136 = vst [vmem:[%s315 + $0x60] sm:$0xff] %v3104
        %3137 = vst [vmem:[%s315 + $0x68] sm:$0xff] %v3105
        %3138 = vst [vmem:[%s315 + $0x70] sm:$0xff] %v3106
        %3139 = vst [vmem:[%s315 + $0x78] sm:$0xff] %v3107
        %3140 = vst [vmem:[%s315 + $0x80] sm:$0xff] %v3108
        %3141 = vst [vmem:[%s315 + $0x88] sm:$0xff] %v3109
        %3142 = vst [vmem:[%s315 + $0x90] sm:$0xff] %v3110
        %3143 = vst [vmem:[%s315 + $0x98] sm:$0xff] %v3111
        %3144 = vst [vmem:[%s315 + $0xa0] sm:$0xff] %v3112
        %3145 = vst [vmem:[%s315 + $0xa8] sm:$0xff] %v3113
        %3146 = vst [vmem:[%s315 + $0xb0] sm:$0xff] %v3114
        %3147 = vst [vmem:[%s315 + $0xb8] sm:$0xff] %v3115
        %3148 = vst [vmem:[%s315 + $0xc0] sm:$0xff] %v3116
        %3149 = vst [vmem:[%s315 + $0xc8] sm:$0xff] %v3117
        %3150 = vst [vmem:[%s315 + $0xd0] sm:$0xff] %v3118
        %3151 = vst [vmem:[%s315 + $0xd8] sm:$0xff] %v3119
        %3152 = vst [vmem:[%s315 + $0xe0] sm:$0xff] %v3120
        %3153 = vst [vmem:[%s315 + $0xe8] sm:$0xff] %v3121
        %3154 = vst [vmem:[%s315 + $0xf0] sm:$0xff] %v3122
        %3155 = vst [vmem:[%s315 + $0xf8] sm:$0xff] %v3123
        %s3156 = sand.u32 %s185, 1
        %s3157 = scalar_lea.sflag [#allocation5], %s3156
        %s3158 = sand.u32 %s185, 1
        %s3159 = smul.addr %s3158, 256
        %s3160 = scalar_lea.vmem [#allocation8], %s3159
        // Predicated region
        $region61: #{tpu_custom_call.1} parent=47 // pred_check
          %p3161 = pneg %p195
        $region62: #{tpu_custom_call.1} parent=47 // pred_check_branch
          %3163 = sbr.rel (%p3161) target = $region64
        $region63: #{tpu_custom_call.1} parent=47 // pred_region
          %3165 = vsyncadd %s3157, 0
          %s3166 = smul.addr %s25, 32
          %s3167 = smul.addr %s3166, 8
          %s3168 = scalar_lea.hbm %s7, %s3167
          %s3169 = sshll.u32 %s3160, 4
          %s3170 = int_to_ptr.vmem [resolvable:$true] %s3169
          %s3171 = sshll.u32 %s3168, 4
          %s3172 = int_to_ptr.hbm [resolvable:$true] %s3171
          %3177 = dma.vmem_to_hbm [thread:$0]  %s3170, 4096, %s3172, %s3157, 128, 128, 8
        $region64: #{tpu_custom_call.1} parent=47 // pred_fallthru
          _
      $region48: #{tpu_custom_call.1} parent=5 // pred_fallthru
        _
      %p3178 = scmp.le.s32.totalorder 2, %s20
      // Predicated region
      $region65: #{tpu_custom_call.1} parent=5 // pred_check
        %p3179 = pneg %p3178
      $region66: #{tpu_custom_call.1} parent=5 // pred_check_branch
        %3181 = sbr.rel (%p3179) target = $region68
      $region67: #{tpu_custom_call.1} parent=5 // pred_region
        %s3182 = ssub.s32 %s20, 2
        // Predicated region
        $region69: #{tpu_custom_call.1} parent=67 // pred_check
          %p3183 = pneg %p201
        $region70: #{tpu_custom_call.1} parent=67 // pred_check_branch
          %3185 = sbr.rel (%p3183) target = $region72
        $region71: #{tpu_custom_call.1} parent=67 // pred_region
          %s3186 = sand.u32 %s186, 1
          %s3187 = scalar_lea.sflag [#allocation5], %s3186
          %s3188 = sand.u32 %s186, 1
          %s3189 = smul.addr %s3188, 256
          %s3190 = scalar_lea.vmem [#allocation8], %s3189
          %3192 = dma.done %s3187, 4096
        $region72: #{tpu_custom_call.1} parent=67 // pred_fallthru
          _
      $region68: #{tpu_custom_call.1} parent=5 // pred_fallthru
        _
    $region6: #{tpu_custom_call.1} parent=1 // loop_footer
      %s24 = sadd.s32 1, %s20
    $region7: #{tpu_custom_call.1} parent=1 // loop_footer_branch
      %19 = sbr.rel target = $region3
    $region8: #{tpu_custom_call.1} parent=1 // loop_exit
      _
    %3193 = vsyncpa [#allocation4], 1
    %s3194 = scalar_lea.sflag [#allocation4], 1
    %3195 = vsyncpa %s3194, 1
    %3196 = vsyncpa [#allocation7], 1
    %3197 = vsyncpa [#allocation5], 1
    %s3198 = scalar_lea.sflag [#allocation5], 1
    %3199 = vsyncpa %s3198, 1

</llo_original>
